<compile_context>
chip_gen: v5e
topology: v5e:2x2
jax: 0.10.0
libtpu: 0.0.40
codegen_flags: <defaults>
</compile_context>

<pallas_src>
import functools

import jax
import jax.numpy as jnp
from jax.experimental import pallas as pl
from jax.experimental.pallas import tpu as pltpu


# ----------------------------- in-kernel helpers -----------------------------

def _ln_f32(x, g, b, eps):
    """LayerNorm over the last axis, all math in f32."""
    mean = jnp.mean(x, axis=-1, keepdims=True)
    var = jnp.mean((x - mean) ** 2, axis=-1, keepdims=True)
    return (x - mean) * jax.lax.rsqrt(var + eps) * g + b


# ----------------------------- Pallas kernels -----------------------------

def _embed_ln_kernel(x_ref, g_ref, b_ref, o_ref, *, eps):
    x = x_ref[...].astype(jnp.float32)                       # [S, H]
    o_ref[...] = _ln_f32(x, g_ref[...], b_ref[...], eps).astype(o_ref.dtype)


def embed_layer_norm(x, g, b, eps):
    """x: [B, S, H] -> [B, S, H]; grid over batch (parallel)."""
    B, S, H = x.shape
    return pl.pallas_call(
        functools.partial(_embed_ln_kernel, eps=eps),
        out_shape=jax.ShapeDtypeStruct((B, S, H), jnp.float32),
        grid=(B,),
        in_specs=[
            pl.BlockSpec((None, S, H), lambda i: (i, 0, 0)),
            pl.BlockSpec((1, H), lambda i: (0, 0)),
            pl.BlockSpec((1, H), lambda i: (0, 0)),
        ],
        out_specs=pl.BlockSpec((None, S, H), lambda i: (i, 0, 0)),
        compiler_params=pltpu.CompilerParams(
            dimension_semantics=("parallel",)),
    )(x, g, b)


def _layer_kernel(x_ref, bias_ref, wqkv_ref, bqkv_ref, wo_ref, bo_ref,
                  ln1_g_ref, ln1_b_ref, w1_ref, b1_ref, w2_ref, b2_ref,
                  ln2_g_ref, ln2_b_ref, o_ref, *, num_heads, head_dim, eps):
    """Full transformer layer for one batch element: QKV -> MHA -> Wo -> LN1
    -> FFN -> LN2. Everything stays resident in VMEM/vregs."""
    S, H = x_ref.shape
    D = head_dim
    scale = 1.0 / float(D) ** 0.5

    x = x_ref[...].astype(jnp.float32)                       # [S, H]
    bias = bias_ref[...]                                      # [1, S] additive mask

    # --- fused QKV projection (bf16 weights, f32 accumulation) ---
    qkv = jnp.dot(x.astype(jnp.bfloat16), wqkv_ref[...],
                  preferred_element_type=jnp.float32) + bqkv_ref[...]   # [S, 3H]

    # --- per-head attention (static head loop; no cross-kernel transposes) ---
    ctx_heads = []
    for h in range(num_heads):
        q = qkv[:, h * D:(h + 1) * D].astype(jnp.bfloat16)          # [S, D]
        k = qkv[:, H + h * D:H + (h + 1) * D].astype(jnp.bfloat16)  # [S, D]
        v = qkv[:, 2 * H + h * D:2 * H + (h + 1) * D].astype(jnp.bfloat16)

        s = jax.lax.dot_general(q, k, (((1,), (1,)), ((), ())),
                                preferred_element_type=jnp.float32) * scale
        s = s + bias                                          # broadcast over rows
        s = s - jnp.max(s, axis=-1, keepdims=True)
        p = jnp.exp(s)
        p = p * pl.reciprocal(jnp.sum(p, axis=-1, keepdims=True), approx=True)
        ctx_heads.append(jnp.dot(p.astype(jnp.bfloat16), v,
                                 preferred_element_type=jnp.float32))  # [S, D]

    ctx = jnp.concatenate(ctx_heads, axis=-1)                 # [S, H] lane-dense

    attn_out = jnp.dot(ctx.astype(jnp.bfloat16), wo_ref[...],
                       preferred_element_type=jnp.float32) + bo_ref[...]
    y = _ln_f32(attn_out + x, ln1_g_ref[...], ln1_b_ref[...], eps)

    # --- FFN (bf16 matmuls, f32 gelu/bias epilogue) ---
    h1 = jnp.dot(y.astype(jnp.bfloat16), w1_ref[...],
                 preferred_element_type=jnp.float32) + b1_ref[...]
    h1 = jax.nn.gelu(h1, approximate=True)
    ffn = jnp.dot(h1.astype(jnp.bfloat16), w2_ref[...],
                  preferred_element_type=jnp.float32) + b2_ref[...]
    z = _ln_f32(ffn + y, ln2_g_ref[...], ln2_b_ref[...], eps)

    o_ref[...] = z.astype(o_ref.dtype)


def transformer_layer(x, mask_bias, lp, cfg):
    """x: [B, S, H], mask_bias: [B, 1, S] -> [B, S, H]. One pallas_call."""
    B, S, H = x.shape
    I = cfg.intermediate
    kernel = functools.partial(_layer_kernel, num_heads=cfg.num_heads,
                               head_dim=cfg.head_dim, eps=cfg.ln_eps)

    def rep(shape):   # weight replicated across the batch grid (no re-DMA)
        return pl.BlockSpec(shape, lambda i: (0, 0))

    return pl.pallas_call(
        kernel,
        out_shape=jax.ShapeDtypeStruct((B, S, H), jnp.float32),
        grid=(B,),
        in_specs=[
            pl.BlockSpec((None, S, H), lambda i: (i, 0, 0)),   # x
            pl.BlockSpec((None, 1, S), lambda i: (i, 0, 0)),   # mask bias
            rep((H, 3 * H)), rep((1, 3 * H)),                  # wqkv, bqkv
            rep((H, H)), rep((1, H)),                          # wo, bo
            rep((1, H)), rep((1, H)),                          # ln1 g, b
            rep((H, I)), rep((1, I)),                          # w1, b1
            rep((I, H)), rep((1, H)),                          # w2, b2
            rep((1, H)), rep((1, H)),                          # ln2 g, b
        ],
        out_specs=pl.BlockSpec((None, S, H), lambda i: (i, 0, 0)),
        compiler_params=pltpu.CompilerParams(
            dimension_semantics=("parallel",)),
    )(x, mask_bias, lp["wqkv"], lp["bqkv"], lp["wo"], lp["bo"],
      lp["ln1_g"], lp["ln1_b"], lp["w1"], lp["b1"], lp["w2"], lp["b2"],
      lp["ln2_g"], lp["ln2_b"])


def _head_kernel(x_ref, pw_ref, pb_ref, cw_ref, cb_ref, oh_ref,
                 prob_ref, nll_ref):
    """ContextPooler (dense+gelu) + classifier + softmax + cross-entropy.
    Classifier weight/bias are padded to 128 lanes (pad-column bias = -1e9),
    so both outputs are lane-dense [B, 128]."""
    x = x_ref[...].astype(jnp.float32)                         # [B, H]
    pooled = jnp.dot(x.astype(jnp.bfloat16), pw_ref[...],
                     preferred_element_type=jnp.float32) + pb_ref[...]
    pooled = jax.nn.gelu(pooled, approximate=True)
    logits = jnp.dot(pooled.astype(jnp.bfloat16), cw_ref[...],
                     preferred_element_type=jnp.float32) + cb_ref[...]  # [B, CPAD]

    m = jnp.max(logits, axis=-1, keepdims=True)
    e = jnp.exp(logits - m)
    denom = jnp.sum(e, axis=-1, keepdims=True)
    prob_ref[...] = (e / denom).astype(prob_ref.dtype)         # exact normalization

    logp = (logits - m) - jnp.log(denom)
    nll = -jnp.sum(oh_ref[...] * logp, axis=-1, keepdims=True)  # [B, 1]
    nll_ref[...] = jnp.broadcast_to(nll, nll_ref.shape).astype(nll_ref.dtype)


def head_forward(cls_tok, pw, pb, cw, cb, onehot):
    """cls_tok: [B, H]; cw/cb/onehot padded to CPAD lanes."""
    B, H = cls_tok.shape
    CPAD = cw.shape[1]
    return pl.pallas_call(
        _head_kernel,
        out_shape=(jax.ShapeDtypeStruct((B, CPAD), jnp.float32),
                   jax.ShapeDtypeStruct((B, CPAD), jnp.float32)),
        grid=(1,),
        in_specs=[
            pl.BlockSpec((B, H), lambda i: (0, 0)),
            pl.BlockSpec((H, H), lambda i: (0, 0)),
            pl.BlockSpec((1, H), lambda i: (0, 0)),
            pl.BlockSpec((H, CPAD), lambda i: (0, 0)),
            pl.BlockSpec((1, CPAD), lambda i: (0, 0)),
            pl.BlockSpec((B, CPAD), lambda i: (0, 0)),
        ],
        out_specs=(pl.BlockSpec((B, CPAD), lambda i: (0, 0)),
                   pl.BlockSpec((B, CPAD), lambda i: (0, 0))),
    )(cls_tok, pw, pb, cw, cb, onehot)


# ----------------------------- Model definition -----------------------------

class Config:
    vocab_size = 64
    hidden = 128
    num_heads = 2
    head_dim = 64            # hidden // num_heads
    intermediate = 256
    num_layers = 2
    num_labels = 3
    cpad = 128               # classifier lane padding (lane-dense outputs)
    ln_eps = 1e-7


def init_params(cfg, key):
    def normal(k, shape, std=0.02, dtype=jnp.float32):
        return (std * jax.random.normal(k, shape)).astype(dtype)

    keys = iter(jax.random.split(key, 64))
    H, I, C, CPAD = cfg.hidden, cfg.intermediate, cfg.num_labels, cfg.cpad

    p = {}
    p["word_emb"] = normal(next(keys), (cfg.vocab_size, H))
    p["emb_ln_g"] = jnp.ones((1, H), jnp.float32)
    p["emb_ln_b"] = jnp.zeros((1, H), jnp.float32)

    p["layers"] = []
    for _ in range(cfg.num_layers):
        lp = {
            # fused [Wq | Wk | Wv] in bf16 (single matmul per layer)
            "wqkv": normal(next(keys), (H, 3 * H), dtype=jnp.bfloat16),
            "bqkv": jnp.zeros((1, 3 * H), jnp.float32),
            "wo": normal(next(keys), (H, H), dtype=jnp.bfloat16),
            "bo": jnp.zeros((1, H), jnp.float32),
            "ln1_g": jnp.ones((1, H), jnp.float32),
            "ln1_b": jnp.zeros((1, H), jnp.float32),
            "w1": normal(next(keys), (H, I), dtype=jnp.bfloat16),
            "b1": jnp.zeros((1, I), jnp.float32),
            "w2": normal(next(keys), (I, H), dtype=jnp.bfloat16),
            "b2": jnp.zeros((1, H), jnp.float32),
            "ln2_g": jnp.ones((1, H), jnp.float32),
            "ln2_b": jnp.zeros((1, H), jnp.float32),
        }
        p["layers"].append(lp)

    p["pooler_w"] = normal(next(keys), (H, H), dtype=jnp.bfloat16)
    p["pooler_b"] = jnp.zeros((1, H), jnp.float32)

    # Classifier padded to CPAD lanes; pad columns get bias -1e9 so the padded
    # softmax is exact over the first C classes.
    cls_w = normal(next(keys), (H, C))
    p["cls_w"] = jnp.pad(cls_w, ((0, 0), (0, CPAD - C))).astype(jnp.bfloat16)
    p["cls_b"] = jnp.concatenate(
        [jnp.zeros((1, C), jnp.float32),
         jnp.full((1, CPAD - C), -1e9, jnp.float32)], axis=1)
    return p


def nlp_model_forward(params, cfg, input_ids, attention_mask, labels=None):
    """Mirrors NLPModel.forward: returns (prob, loss)."""
    B, S = input_ids.shape

    # Embedding gather is glue; LN is a Pallas kernel. Activations stay [B,S,H].
    emb = jnp.take(params["word_emb"], input_ids, axis=0)         # [B, S, H]
    x = embed_layer_norm(emb, params["emb_ln_g"], params["emb_ln_b"],
                         cfg.ln_eps)

    # Additive attention-mask bias: 0 where attended, -1e9 where padded.
    mask_bias = ((attention_mask.astype(jnp.float32) - 1.0) * 1e9
                 ).reshape(B, 1, S)

    for lp in params["layers"]:
        x = transformer_layer(x, mask_bias, lp, cfg)              # 1 call/layer

    # ContextPooler on token 0 + classifier + softmax + CE, one fused kernel.
    cls_tok = x[:, 0, :]                                          # [B, H]
    if labels is not None:
        onehot = jax.nn.one_hot(labels, cfg.cpad, dtype=jnp.float32)
    else:
        onehot = jnp.zeros((B, cfg.cpad), jnp.float32)

    prob_pad, nll = head_forward(cls_tok, params["pooler_w"],
                                 params["pooler_b"], params["cls_w"],
                                 params["cls_b"], onehot)
    prob = prob_pad[:, :cfg.num_labels]                           # [B, C]
    loss = jnp.mean(nll[:, 0]) if labels is not None else None
    return prob, loss


# --------------------------------- Driver ----------------------------------

if __name__ == "__main__":
    cfg = Config()
    key = jax.random.PRNGKey(0)
    pkey, ikey = jax.random.split(key)

    params = init_params(cfg, pkey)

    B, S = 2, 8
    input_ids = jax.random.randint(ikey, (B, S), 0, cfg.vocab_size,
                                   dtype=jnp.int32)
    attention_mask = jnp.ones((B, S), jnp.int32).at[1, 6:].set(0)   # pad tail
    labels = jnp.array([0, 1], jnp.int32)

    fwd = jax.jit(functools.partial(nlp_model_forward, params, cfg))
    prob, loss = fwd(input_ids, attention_mask, labels)
    prob = jax.block_until_ready(prob)
    loss = jax.block_until_ready(loss)

    assert prob.shape == (B, cfg.num_labels)
    assert jnp.allclose(jnp.sum(prob, axis=1), 1.0, atol=1e-5)
    assert jnp.isfinite(loss)
    print("KERNEL_OK")
</pallas_src>

<mosaic_0001>
module attributes {stable_mosaic.version = 11 : i64} {
  func.func @_embed_ln_kernel(%arg0: i32, %arg1: memref<1x8x128xf32, #tpu.memory_space<vmem>>, %arg2: memref<1x128xf32, #tpu.memory_space<vmem>>, %arg3: memref<1x128xf32, #tpu.memory_space<vmem>>, %arg4: memref<1x8x128xf32, #tpu.memory_space<vmem>>) attributes {dimension_semantics = [#tpu.dimension_semantics<parallel>], iteration_bounds = array<i64: 2>, scalar_prefetch = 0 : i64, scratch_operands = 0 : i64, tpu.core_type = #tpu.core_type<tc>, window_params = [{transform_indices = @transform_0, window_bounds = array<i64: 1, 8, 128>}, {pipeline_mode = #tpu.pipeline_mode<synchronous>, transform_indices = @transform_1, window_bounds = array<i64: 1, 128>}, {pipeline_mode = #tpu.pipeline_mode<synchronous>, transform_indices = @transform_2, window_bounds = array<i64: 1, 128>}, {transform_indices = @transform_3, window_bounds = array<i64: 1, 8, 128>}]} {
    %c0 = arith.constant 0 : index
    %c0_0 = arith.constant 0 : index
    %c0_1 = arith.constant 0 : index
    %0 = vector.load %arg1[%c0, %c0_0, %c0_1] : memref<1x8x128xf32, #tpu.memory_space<vmem>>, vector<1x8x128xf32>
    %1 = vector.shape_cast %0 : vector<1x8x128xf32> to vector<8x128xf32>
    %c0_2 = arith.constant 0 : index
    %c0_3 = arith.constant 0 : index
    %2 = vector.load %arg2[%c0_2, %c0_3] : memref<1x128xf32, #tpu.memory_space<vmem>>, vector<1x128xf32>
    %c0_4 = arith.constant 0 : index
    %c0_5 = arith.constant 0 : index
    %3 = vector.load %arg3[%c0_4, %c0_5] : memref<1x128xf32, #tpu.memory_space<vmem>>, vector<1x128xf32>
    %cst = arith.constant dense<0.000000e+00> : vector<8xf32>
    %4 = vector.multi_reduction <add>, %1, %cst [1] : vector<8x128xf32> to vector<8xf32>
    %5 = vector.shape_cast %4 : vector<8xf32> to vector<8x1xf32>
    %cst_6 = arith.constant 1.280000e+02 : f32
    %6 = vector.broadcast %cst_6 : f32 to vector<8x1xf32>
    %7 = arith.divf %5, %6 : vector<8x1xf32>
    %8 = vector.broadcast %7 : vector<8x1xf32> to vector<8x128xf32>
    %9 = arith.subf %1, %8 : vector<8x128xf32>
    %10 = arith.mulf %9, %9 : vector<8x128xf32>
    %cst_7 = arith.constant dense<0.000000e+00> : vector<8xf32>
    %11 = vector.multi_reduction <add>, %10, %cst_7 [1] : vector<8x128xf32> to vector<8xf32>
    %12 = vector.shape_cast %11 : vector<8xf32> to vector<8x1xf32>
    %cst_8 = arith.constant 1.280000e+02 : f32
    %13 = vector.broadcast %cst_8 : f32 to vector<8x1xf32>
    %14 = arith.divf %12, %13 : vector<8x1xf32>
    %15 = vector.broadcast %7 : vector<8x1xf32> to vector<8x128xf32>
    %16 = arith.subf %1, %15 : vector<8x128xf32>
    %cst_9 = arith.constant 1.000000e-07 : f32
    %17 = vector.broadcast %cst_9 : f32 to vector<8x1xf32>
    %18 = arith.addf %14, %17 : vector<8x1xf32>
    %19 = math.rsqrt %18 : vector<8x1xf32>
    %20 = vector.broadcast %19 : vector<8x1xf32> to vector<8x128xf32>
    %21 = arith.mulf %16, %20 : vector<8x128xf32>
    %22 = vector.broadcast %2 : vector<1x128xf32> to vector<8x128xf32>
    %23 = arith.mulf %21, %22 : vector<8x128xf32>
    %24 = vector.broadcast %3 : vector<1x128xf32> to vector<8x128xf32>
    %25 = arith.addf %23, %24 : vector<8x128xf32>
    %c0_10 = arith.constant 0 : index
    %c0_11 = arith.constant 0 : index
    %c0_12 = arith.constant 0 : index
    %26 = vector.load %arg4[%c0_10, %c0_11, %c0_12] : memref<1x8x128xf32, #tpu.memory_space<vmem>>, vector<1x8x128xf32>
    %27 = vector.shape_cast %26 : vector<1x8x128xf32> to vector<8x128xf32>
    %28 = vector.shape_cast %25 : vector<8x128xf32> to vector<1x8x128xf32>
    tpu.vector_store %arg4[%c0_10, %c0_11, %c0_12], %28 {strides = array<i32>} : memref<1x8x128xf32, #tpu.memory_space<vmem>>, vector<1x8x128xf32>,
    return
  }
  func.func @transform_0(%arg0: i32) -> (i32, i32, i32) {
    %c0_i32 = arith.constant 0 : i32
    %c0_i32_0 = arith.constant 0 : i32
    %c0_i32_1 = arith.constant 0 : i32
    return %arg0, %c0_i32, %c0_i32_0 : i32, i32, i32
  }
  func.func @transform_1(%arg0: i32) -> (i32, i32) {
    %c0_i32 = arith.constant 0 : i32
    %c0_i32_0 = arith.constant 0 : i32
    %c0_i32_1 = arith.constant 0 : i32
    return %c0_i32, %c0_i32_0 : i32, i32
  }
  func.func @transform_2(%arg0: i32) -> (i32, i32) {
    %c0_i32 = arith.constant 0 : i32
    %c0_i32_0 = arith.constant 0 : i32
    %c0_i32_1 = arith.constant 0 : i32
    return %c0_i32, %c0_i32_0 : i32, i32
  }
  func.func @transform_3(%arg0: i32) -> (i32, i32, i32) {
    %c0_i32 = arith.constant 0 : i32
    %c0_i32_0 = arith.constant 0 : i32
    %c0_i32_1 = arith.constant 0 : i32
    return %arg0, %c0_i32, %c0_i32_0 : i32, i32, i32
  }
}

module attributes {stable_mosaic.version = 11 : i64} {
  func.func @_layer_kernel(%arg0: i32, %arg1: memref<1x8x128xf32, #tpu.memory_space<vmem>>, %arg2: memref<1x1x8xf32, #tpu.memory_space<vmem>>, %arg3: memref<128x384xbf16, #tpu.memory_space<vmem>>, %arg4: memref<1x384xf32, #tpu.memory_space<vmem>>, %arg5: memref<128x128xbf16, #tpu.memory_space<vmem>>, %arg6: memref<1x128xf32, #tpu.memory_space<vmem>>, %arg7: memref<1x128xf32, #tpu.memory_space<vmem>>, %arg8: memref<1x128xf32, #tpu.memory_space<vmem>>, %arg9: memref<128x256xbf16, #tpu.memory_space<vmem>>, %arg10: memref<1x256xf32, #tpu.memory_space<vmem>>, %arg11: memref<256x128xbf16, #tpu.memory_space<vmem>>, %arg12: memref<1x128xf32, #tpu.memory_space<vmem>>, %arg13: memref<1x128xf32, #tpu.memory_space<vmem>>, %arg14: memref<1x128xf32, #tpu.memory_space<vmem>>, %arg15: memref<1x8x128xf32, #tpu.memory_space<vmem>>) attributes {dimension_semantics = [#tpu.dimension_semantics<parallel>], iteration_bounds = array<i64: 2>, scalar_prefetch = 0 : i64, scratch_operands = 0 : i64, tpu.core_type = #tpu.core_type<tc>, window_params = [{transform_indices = @transform_0, window_bounds = array<i64: 1, 8, 128>}, {transform_indices = @transform_1, window_bounds = array<i64: 1, 1, 8>}, {pipeline_mode = #tpu.pipeline_mode<synchronous>, transform_indices = @transform_2, window_bounds = array<i64: 128, 384>}, {pipeline_mode = #tpu.pipeline_mode<synchronous>, transform_indices = @transform_3, window_bounds = array<i64: 1, 384>}, {pipeline_mode = #tpu.pipeline_mode<synchronous>, transform_indices = @transform_4, window_bounds = array<i64: 128, 128>}, {pipeline_mode = #tpu.pipeline_mode<synchronous>, transform_indices = @transform_5, window_bounds = array<i64: 1, 128>}, {pipeline_mode = #tpu.pipeline_mode<synchronous>, transform_indices = @transform_6, window_bounds = array<i64: 1, 128>}, {pipeline_mode = #tpu.pipeline_mode<synchronous>, transform_indices = @transform_7, window_bounds = array<i64: 1, 128>}, {pipeline_mode = #tpu.pipeline_mode<synchronous>, transform_indices = @transform_8, window_bounds = array<i64: 128, 256>}, {pipeline_mode = #tpu.pipeline_mode<synchronous>, transform_indices = @transform_9, window_bounds = array<i64: 1, 256>}, {pipeline_mode = #tpu.pipeline_mode<synchronous>, transform_indices = @transform_10, window_bounds = array<i64: 256, 128>}, {pipeline_mode = #tpu.pipeline_mode<synchronous>, transform_indices = @transform_11, window_bounds = array<i64: 1, 128>}, {pipeline_mode = #tpu.pipeline_mode<synchronous>, transform_indices = @transform_12, window_bounds = array<i64: 1, 128>}, {pipeline_mode = #tpu.pipeline_mode<synchronous>, transform_indices = @transform_13, window_bounds = array<i64: 1, 128>}, {transform_indices = @transform_14, window_bounds = array<i64: 1, 8, 128>}]} {
    %c0 = arith.constant 0 : index
    %c0_0 = arith.constant 0 : index
    %c0_1 = arith.constant 0 : index
    %0 = vector.load %arg1[%c0, %c0_0, %c0_1] : memref<1x8x128xf32, #tpu.memory_space<vmem>>, vector<1x8x128xf32>
    %1 = vector.shape_cast %0 : vector<1x8x128xf32> to vector<8x128xf32>
    %c0_2 = arith.constant 0 : index
    %c0_3 = arith.constant 0 : index
    %c0_4 = arith.constant 0 : index
    %2 = vector.load %arg2[%c0_2, %c0_3, %c0_4] : memref<1x1x8xf32, #tpu.memory_space<vmem>>, vector<1x1x8xf32>
    %3 = vector.shape_cast %2 : vector<1x1x8xf32> to vector<1x8xf32>
    %4 = arith.truncf %1 : vector<8x128xf32> to vector<8x128xbf16>
    %c0_5 = arith.constant 0 : index
    %c0_6 = arith.constant 0 : index
    %5 = vector.load %arg3[%c0_5, %c0_6] : memref<128x384xbf16, #tpu.memory_space<vmem>>, vector<128x384xbf16>
    %cst = arith.constant dense<0.000000e+00> : vector<8x384xf32>
    %6 = tpu.matmul %4, %5, %cst {dimension_numbers = #tpu.dot_dimension_numbers<[1], [0], [0], [1], [0, 0, 1, 1], [], []>} : vector<8x128xbf16>, vector<128x384xbf16>, vector<8x384xf32> -> vector<8x384xf32>
    %c0_7 = arith.constant 0 : index
    %c0_8 = arith.constant 0 : index
    %7 = vector.load %arg4[%c0_7, %c0_8] : memref<1x384xf32, #tpu.memory_space<vmem>>, vector<1x384xf32>
    %8 = vector.broadcast %7 : vector<1x384xf32> to vector<8x384xf32>
    %9 = arith.addf %6, %8 : vector<8x384xf32>
    %10 = vector.extract_strided_slice %9 {offsets = [0, 0], sizes = [8, 64], strides = [1, 1]} : vector<8x384xf32> to vector<8x64xf32>
    %11 = arith.truncf %10 : vector<8x64xf32> to vector<8x64xbf16>
    %12 = vector.extract_strided_slice %9 {offsets = [0, 128], sizes = [8, 64], strides = [1, 1]} : vector<8x384xf32> to vector<8x64xf32>
    %13 = arith.truncf %12 : vector<8x64xf32> to vector<8x64xbf16>
    %14 = vector.extract_strided_slice %9 {offsets = [0, 256], sizes = [8, 64], strides = [1, 1]} : vector<8x384xf32> to vector<8x64xf32>
    %15 = arith.truncf %14 : vector<8x64xf32> to vector<8x64xbf16>
    %cst_9 = arith.constant dense<0.000000e+00> : vector<8x8xf32>
    %16 = tpu.matmul %11, %13, %cst_9 {dimension_numbers = #tpu.dot_dimension_numbers<[1], [1], [0], [0], [0, 0, 1, 0], [], []>} : vector<8x64xbf16>, vector<8x64xbf16>, vector<8x8xf32> -> vector<8x8xf32>
    %cst_10 = arith.constant 1.250000e-01 : f32
    %17 = vector.broadcast %cst_10 : f32 to vector<8x8xf32>
    %18 = arith.mulf %16, %17 : vector<8x8xf32>
    %19 = vector.broadcast %3 : vector<1x8xf32> to vector<8x8xf32>
    %20 = arith.addf %18, %19 : vector<8x8xf32>
    %cst_11 = arith.constant dense<0xFF800000> : vector<8xf32>
    %21 = vector.multi_reduction <maximumf>, %20, %cst_11 [1] : vector<8x8xf32> to vector<8xf32>
    %22 = vector.shape_cast %21 : vector<8xf32> to vector<8x1xf32>
    %23 = vector.broadcast %22 : vector<8x1xf32> to vector<8x8xf32>
    %24 = arith.subf %20, %23 : vector<8x8xf32>
    %25 = math.exp %24 : vector<8x8xf32>
    %cst_12 = arith.constant dense<0.000000e+00> : vector<8xf32>
    %26 = vector.multi_reduction <add>, %25, %cst_12 [1] : vector<8x8xf32> to vector<8xf32>
    %27 = vector.shape_cast %26 : vector<8xf32> to vector<8x1xf32>
    %28 = tpu.reciprocal %27 {approx = true} : vector<8x1xf32> -> vector<8x1xf32>
    %29 = vector.broadcast %28 : vector<8x1xf32> to vector<8x8xf32>
    %30 = arith.mulf %25, %29 : vector<8x8xf32>
    %31 = arith.truncf %30 : vector<8x8xf32> to vector<8x8xbf16>
    %cst_13 = arith.constant dense<0.000000e+00> : vector<8x64xf32>
    %32 = tpu.matmul %31, %15, %cst_13 {dimension_numbers = #tpu.dot_dimension_numbers<[1], [0], [0], [1], [0, 0, 1, 1], [], []>} : vector<8x8xbf16>, vector<8x64xbf16>, vector<8x64xf32> -> vector<8x64xf32>
    %33 = vector.extract_strided_slice %9 {offsets = [0, 64], sizes = [8, 64], strides = [1, 1]} : vector<8x384xf32> to vector<8x64xf32>
    %34 = arith.truncf %33 : vector<8x64xf32> to vector<8x64xbf16>
    %35 = vector.extract_strided_slice %9 {offsets = [0, 192], sizes = [8, 64], strides = [1, 1]} : vector<8x384xf32> to vector<8x64xf32>
    %36 = arith.truncf %35 : vector<8x64xf32> to vector<8x64xbf16>
    %37 = vector.extract_strided_slice %9 {offsets = [0, 320], sizes = [8, 64], strides = [1, 1]} : vector<8x384xf32> to vector<8x64xf32>
    %38 = arith.truncf %37 : vector<8x64xf32> to vector<8x64xbf16>
    %cst_14 = arith.constant dense<0.000000e+00> : vector<8x8xf32>
    %39 = tpu.matmul %34, %36, %cst_14 {dimension_numbers = #tpu.dot_dimension_numbers<[1], [1], [0], [0], [0, 0, 1, 0], [], []>} : vector<8x64xbf16>, vector<8x64xbf16>, vector<8x8xf32> -> vector<8x8xf32>
    %cst_15 = arith.constant 1.250000e-01 : f32
    %40 = vector.broadcast %cst_15 : f32 to vector<8x8xf32>
    %41 = arith.mulf %39, %40 : vector<8x8xf32>
    %42 = vector.broadcast %3 : vector<1x8xf32> to vector<8x8xf32>
    %43 = arith.addf %41, %42 : vector<8x8xf32>
    %cst_16 = arith.constant dense<0xFF800000> : vector<8xf32>
    %44 = vector.multi_reduction <maximumf>, %43, %cst_16 [1] : vector<8x8xf32> to vector<8xf32>
    %45 = vector.shape_cast %44 : vector<8xf32> to vector<8x1xf32>
    %46 = vector.broadcast %45 : vector<8x1xf32> to vector<8x8xf32>
    %47 = arith.subf %43, %46 : vector<8x8xf32>
    %48 = math.exp %47 : vector<8x8xf32>
    %cst_17 = arith.constant dense<0.000000e+00> : vector<8xf32>
    %49 = vector.multi_reduction <add>, %48, %cst_17 [1] : vector<8x8xf32> to vector<8xf32>
    %50 = vector.shape_cast %49 : vector<8xf32> to vector<8x1xf32>
    %51 = tpu.reciprocal %50 {approx = true} : vector<8x1xf32> -> vector<8x1xf32>
    %52 = vector.broadcast %51 : vector<8x1xf32> to vector<8x8xf32>
    %53 = arith.mulf %48, %52 : vector<8x8xf32>
    %54 = arith.truncf %53 : vector<8x8xf32> to vector<8x8xbf16>
    %cst_18 = arith.constant dense<0.000000e+00> : vector<8x64xf32>
    %55 = tpu.matmul %54, %38, %cst_18 {dimension_numbers = #tpu.dot_dimension_numbers<[1], [0], [0], [1], [0, 0, 1, 1], [], []>} : vector<8x8xbf16>, vector<8x64xbf16>, vector<8x64xf32> -> vector<8x64xf32>
    %56 = tpu.concatenate %32, %55 in 1 : vector<8x64xf32>, vector<8x64xf32> -> vector<8x128xf32>
    %57 = arith.truncf %56 : vector<8x128xf32> to vector<8x128xbf16>
    %c0_19 = arith.constant 0 : index
    %c0_20 = arith.constant 0 : index
    %58 = vector.load %arg5[%c0_19, %c0_20] : memref<128x128xbf16, #tpu.memory_space<vmem>>, vector<128x128xbf16>
    %cst_21 = arith.constant dense<0.000000e+00> : vector<8x128xf32>
    %59 = tpu.matmul %57, %58, %cst_21 {dimension_numbers = #tpu.dot_dimension_numbers<[1], [0], [0], [1], [0, 0, 1, 1], [], []>} : vector<8x128xbf16>, vector<128x128xbf16>, vector<8x128xf32> -> vector<8x128xf32>
    %c0_22 = arith.constant 0 : index
    %c0_23 = arith.constant 0 : index
    %60 = vector.load %arg6[%c0_22, %c0_23] : memref<1x128xf32, #tpu.memory_space<vmem>>, vector<1x128xf32>
    %61 = vector.broadcast %60 : vector<1x128xf32> to vector<8x128xf32>
    %62 = arith.addf %59, %61 : vector<8x128xf32>
    %63 = arith.addf %62, %1 : vector<8x128xf32>
    %c0_24 = arith.constant 0 : index
    %c0_25 = arith.constant 0 : index
    %64 = vector.load %arg7[%c0_24, %c0_25] : memref<1x128xf32, #tpu.memory_space<vmem>>, vector<1x128xf32>
    %c0_26 = arith.constant 0 : index
    %c0_27 = arith.constant 0 : index
    %65 = vector.load %arg8[%c0_26, %c0_27] : memref<1x128xf32, #tpu.memory_space<vmem>>, vector<1x128xf32>
    %cst_28 = arith.constant dense<0.000000e+00> : vector<8xf32>
    %66 = vector.multi_reduction <add>, %63, %cst_28 [1] : vector<8x128xf32> to vector<8xf32>
    %67 = vector.shape_cast %66 : vector<8xf32> to vector<8x1xf32>
    %cst_29 = arith.constant 1.280000e+02 : f32
    %68 = vector.broadcast %cst_29 : f32 to vector<8x1xf32>
    %69 = arith.divf %67, %68 : vector<8x1xf32>
    %70 = vector.broadcast %69 : vector<8x1xf32> to vector<8x128xf32>
    %71 = arith.subf %63, %70 : vector<8x128xf32>
    %72 = arith.mulf %71, %71 : vector<8x128xf32>
    %cst_30 = arith.constant dense<0.000000e+00> : vector<8xf32>
    %73 = vector.multi_reduction <add>, %72, %cst_30 [1] : vector<8x128xf32> to vector<8xf32>
    %74 = vector.shape_cast %73 : vector<8xf32> to vector<8x1xf32>
    %cst_31 = arith.constant 1.280000e+02 : f32
    %75 = vector.broadcast %cst_31 : f32 to vector<8x1xf32>
    %76 = arith.divf %74, %75 : vector<8x1xf32>
    %77 = vector.broadcast %69 : vector<8x1xf32> to vector<8x128xf32>
    %78 = arith.subf %63, %77 : vector<8x128xf32>
    %cst_32 = arith.constant 1.000000e-07 : f32
    %79 = vector.broadcast %cst_32 : f32 to vector<8x1xf32>
    %80 = arith.addf %76, %79 : vector<8x1xf32>
    %81 = math.rsqrt %80 : vector<8x1xf32>
    %82 = vector.broadcast %81 : vector<8x1xf32> to vector<8x128xf32>
    %83 = arith.mulf %78, %82 : vector<8x128xf32>
    %84 = vector.broadcast %64 : vector<1x128xf32> to vector<8x128xf32>
    %85 = arith.mulf %83, %84 : vector<8x128xf32>
    %86 = vector.broadcast %65 : vector<1x128xf32> to vector<8x128xf32>
    %87 = arith.addf %85, %86 : vector<8x128xf32>
    %88 = arith.truncf %87 : vector<8x128xf32> to vector<8x128xbf16>
    %c0_33 = arith.constant 0 : index
    %c0_34 = arith.constant 0 : index
    %89 = vector.load %arg9[%c0_33, %c0_34] : memref<128x256xbf16, #tpu.memory_space<vmem>>, vector<128x256xbf16>
    %cst_35 = arith.constant dense<0.000000e+00> : vector<8x256xf32>
    %90 = tpu.matmul %88, %89, %cst_35 {dimension_numbers = #tpu.dot_dimension_numbers<[1], [0], [0], [1], [0, 0, 1, 1], [], []>} : vector<8x128xbf16>, vector<128x256xbf16>, vector<8x256xf32> -> vector<8x256xf32>
    %c0_36 = arith.constant 0 : index
    %c0_37 = arith.constant 0 : index
    %91 = vector.load %arg10[%c0_36, %c0_37] : memref<1x256xf32, #tpu.memory_space<vmem>>, vector<1x256xf32>
    %92 = vector.broadcast %91 : vector<1x256xf32> to vector<8x256xf32>
    %93 = arith.addf %90, %92 : vector<8x256xf32>
    %94 = arith.mulf %93, %93 : vector<8x256xf32>
    %95 = arith.mulf %93, %94 : vector<8x256xf32>
    %cst_38 = arith.constant 4.471500e-02 : f32
    %96 = vector.broadcast %cst_38 : f32 to vector<8x256xf32>
    %97 = arith.mulf %96, %95 : vector<8x256xf32>
    %98 = arith.addf %93, %97 : vector<8x256xf32>
    %cst_39 = arith.constant 0.797884583 : f32
    %99 = vector.broadcast %cst_39 : f32 to vector<8x256xf32>
    %100 = arith.mulf %99, %98 : vector<8x256xf32>
    %101 = math.tanh %100 : vector<8x256xf32>
    %cst_40 = arith.constant 1.000000e+00 : f32
    %102 = vector.broadcast %cst_40 : f32 to vector<8x256xf32>
    %103 = arith.addf %102, %101 : vector<8x256xf32>
    %cst_41 = arith.constant 5.000000e-01 : f32
    %104 = vector.broadcast %cst_41 : f32 to vector<8x256xf32>
    %105 = arith.mulf %104, %103 : vector<8x256xf32>
    %106 = arith.mulf %93, %105 : vector<8x256xf32>
    %107 = arith.truncf %106 : vector<8x256xf32> to vector<8x256xbf16>
    %c0_42 = arith.constant 0 : index
    %c0_43 = arith.constant 0 : index
    %108 = vector.load %arg11[%c0_42, %c0_43] : memref<256x128xbf16, #tpu.memory_space<vmem>>, vector<256x128xbf16>
    %cst_44 = arith.constant dense<0.000000e+00> : vector<8x128xf32>
    %109 = tpu.matmul %107, %108, %cst_44 {dimension_numbers = #tpu.dot_dimension_numbers<[1], [0], [0], [1], [0, 0, 1, 1], [], []>} : vector<8x256xbf16>, vector<256x128xbf16>, vector<8x128xf32> -> vector<8x128xf32>
    %c0_45 = arith.constant 0 : index
    %c0_46 = arith.constant 0 : index
    %110 = vector.load %arg12[%c0_45, %c0_46] : memref<1x128xf32, #tpu.memory_space<vmem>>, vector<1x128xf32>
    %111 = vector.broadcast %110 : vector<1x128xf32> to vector<8x128xf32>
    %112 = arith.addf %109, %111 : vector<8x128xf32>
    %113 = arith.addf %112, %87 : vector<8x128xf32>
    %c0_47 = arith.constant 0 : index
    %c0_48 = arith.constant 0 : index
    %114 = vector.load %arg13[%c0_47, %c0_48] : memref<1x128xf32, #tpu.memory_space<vmem>>, vector<1x128xf32>
    %c0_49 = arith.constant 0 : index
    %c0_50 = arith.constant 0 : index
    %115 = vector.load %arg14[%c0_49, %c0_50] : memref<1x128xf32, #tpu.memory_space<vmem>>, vector<1x128xf32>
    %cst_51 = arith.constant dense<0.000000e+00> : vector<8xf32>
    %116 = vector.multi_reduction <add>, %113, %cst_51 [1] : vector<8x128xf32> to vector<8xf32>
    %117 = vector.shape_cast %116 : vector<8xf32> to vector<8x1xf32>
    %cst_52 = arith.constant 1.280000e+02 : f32
    %118 = vector.broadcast %cst_52 : f32 to vector<8x1xf32>
    %119 = arith.divf %117, %118 : vector<8x1xf32>
    %120 = vector.broadcast %119 : vector<8x1xf32> to vector<8x128xf32>
    %121 = arith.subf %113, %120 : vector<8x128xf32>
    %122 = arith.mulf %121, %121 : vector<8x128xf32>
    %cst_53 = arith.constant dense<0.000000e+00> : vector<8xf32>
    %123 = vector.multi_reduction <add>, %122, %cst_53 [1] : vector<8x128xf32> to vector<8xf32>
    %124 = vector.shape_cast %123 : vector<8xf32> to vector<8x1xf32>
    %cst_54 = arith.constant 1.280000e+02 : f32
    %125 = vector.broadcast %cst_54 : f32 to vector<8x1xf32>
    %126 = arith.divf %124, %125 : vector<8x1xf32>
    %127 = vector.broadcast %119 : vector<8x1xf32> to vector<8x128xf32>
    %128 = arith.subf %113, %127 : vector<8x128xf32>
    %cst_55 = arith.constant 1.000000e-07 : f32
    %129 = vector.broadcast %cst_55 : f32 to vector<8x1xf32>
    %130 = arith.addf %126, %129 : vector<8x1xf32>
    %131 = math.rsqrt %130 : vector<8x1xf32>
    %132 = vector.broadcast %131 : vector<8x1xf32> to vector<8x128xf32>
    %133 = arith.mulf %128, %132 : vector<8x128xf32>
    %134 = vector.broadcast %114 : vector<1x128xf32> to vector<8x128xf32>
    %135 = arith.mulf %133, %134 : vector<8x128xf32>
    %136 = vector.broadcast %115 : vector<1x128xf32> to vector<8x128xf32>
    %137 = arith.addf %135, %136 : vector<8x128xf32>
    %c0_56 = arith.constant 0 : index
    %c0_57 = arith.constant 0 : index
    %c0_58 = arith.constant 0 : index
    %138 = vector.load %arg15[%c0_56, %c0_57, %c0_58] : memref<1x8x128xf32, #tpu.memory_space<vmem>>, vector<1x8x128xf32>
    %139 = vector.shape_cast %138 : vector<1x8x128xf32> to vector<8x128xf32>
    %140 = vector.shape_cast %137 : vector<8x128xf32> to vector<1x8x128xf32>
    tpu.vector_store %arg15[%c0_56, %c0_57, %c0_58], %140 {strides = array<i32>} : memref<1x8x128xf32, #tpu.memory_space<vmem>>, vector<1x8x128xf32>,
    return
  }
  func.func @transform_0(%arg0: i32) -> (i32, i32, i32) {
    %c0_i32 = arith.constant 0 : i32
    %c0_i32_0 = arith.constant 0 : i32
    %c0_i32_1 = arith.constant 0 : i32
    return %arg0, %c0_i32, %c0_i32_0 : i32, i32, i32
  }
  func.func @transform_1(%arg0: i32) -> (i32, i32, i32) {
    %c0_i32 = arith.constant 0 : i32
    %c0_i32_0 = arith.constant 0 : i32
    %c0_i32_1 = arith.constant 0 : i32
    return %arg0, %c0_i32, %c0_i32_0 : i32, i32, i32
  }
  func.func @transform_2(%arg0: i32) -> (i32, i32) {
    %c0_i32 = arith.constant 0 : i32
    %c0_i32_0 = arith.constant 0 : i32
    %c0_i32_1 = arith.constant 0 : i32
    return %c0_i32, %c0_i32_0 : i32, i32
  }
  func.func @transform_3(%arg0: i32) -> (i32, i32) {
    %c0_i32 = arith.constant 0 : i32
    %c0_i32_0 = arith.constant 0 : i32
    %c0_i32_1 = arith.constant 0 : i32
    return %c0_i32, %c0_i32_0 : i32, i32
  }
  func.func @transform_4(%arg0: i32) -> (i32, i32) {
    %c0_i32 = arith.constant 0 : i32
    %c0_i32_0 = arith.constant 0 : i32
    %c0_i32_1 = arith.constant 0 : i32
    return %c0_i32, %c0_i32_0 : i32, i32
  }
  func.func @transform_5(%arg0: i32) -> (i32, i32) {
    %c0_i32 = arith.constant 0 : i32
    %c0_i32_0 = arith.constant 0 : i32
    %c0_i32_1 = arith.constant 0 : i32
    return %c0_i32, %c0_i32_0 : i32, i32
  }
  func.func @transform_6(%arg0: i32) -> (i32, i32) {
    %c0_i32 = arith.constant 0 : i32
    %c0_i32_0 = arith.constant 0 : i32
    %c0_i32_1 = arith.constant 0 : i32
    return %c0_i32, %c0_i32_0 : i32, i32
  }
  func.func @transform_7(%arg0: i32) -> (i32, i32) {
    %c0_i32 = arith.constant 0 : i32
    %c0_i32_0 = arith.constant 0 : i32
    %c0_i32_1 = arith.constant 0 : i32
    return %c0_i32, %c0_i32_0 : i32, i32
  }
  func.func @transform_8(%arg0: i32) -> (i32, i32) {
    %c0_i32 = arith.constant 0 : i32
    %c0_i32_0 = arith.constant 0 : i32
    %c0_i32_1 = arith.constant 0 : i32
    return %c0_i32, %c0_i32_0 : i32, i32
  }
  func.func @transform_9(%arg0: i32) -> (i32, i32) {
    %c0_i32 = arith.constant 0 : i32
    %c0_i32_0 = arith.constant 0 : i32
    %c0_i32_1 = arith.constant 0 : i32
    return %c0_i32, %c0_i32_0 : i32, i32
  }
  func.func @transform_10(%arg0: i32) -> (i32, i32) {
    %c0_i32 = arith.constant 0 : i32
    %c0_i32_0 = arith.constant 0 : i32
    %c0_i32_1 = arith.constant 0 : i32
    return %c0_i32, %c0_i32_0 : i32, i32
  }
  func.func @transform_11(%arg0: i32) -> (i32, i32) {
    %c0_i32 = arith.constant 0 : i32
    %c0_i32_0 = arith.constant 0 : i32
    %c0_i32_1 = arith.constant 0 : i32
    return %c0_i32, %c0_i32_0 : i32, i32
  }
  func.func @transform_12(%arg0: i32) -> (i32, i32) {
    %c0_i32 = arith.constant 0 : i32
    %c0_i32_0 = arith.constant 0 : i32
    %c0_i32_1 = arith.constant 0 : i32
    return %c0_i32, %c0_i32_0 : i32, i32
  }
  func.func @transform_13(%arg0: i32) -> (i32, i32) {
    %c0_i32 = arith.constant 0 : i32
    %c0_i32_0 = arith.constant 0 : i32
    %c0_i32_1 = arith.constant 0 : i32
    return %c0_i32, %c0_i32_0 : i32, i32
  }
  func.func @transform_14(%arg0: i32) -> (i32, i32, i32) {
    %c0_i32 = arith.constant 0 : i32
    %c0_i32_0 = arith.constant 0 : i32
    %c0_i32_1 = arith.constant 0 : i32
    return %arg0, %c0_i32, %c0_i32_0 : i32, i32, i32
  }
}

module attributes {stable_mosaic.version = 11 : i64} {
  func.func @_head_kernel(%arg0: i32, %arg1: memref<2x128xf32, #tpu.memory_space<vmem>>, %arg2: memref<128x128xbf16, #tpu.memory_space<vmem>>, %arg3: memref<1x128xf32, #tpu.memory_space<vmem>>, %arg4: memref<128x128xbf16, #tpu.memory_space<vmem>>, %arg5: memref<1x128xf32, #tpu.memory_space<vmem>>, %arg6: memref<2x128xf32, #tpu.memory_space<vmem>>, %arg7: memref<2x128xf32, #tpu.memory_space<vmem>>, %arg8: memref<2x128xf32, #tpu.memory_space<vmem>>) attributes {dimension_semantics = [#tpu.dimension_semantics<arbitrary>], iteration_bounds = array<i64: 1>, scalar_prefetch = 0 : i64, scratch_operands = 0 : i64, tpu.core_type = #tpu.core_type<tc>, window_params = [{pipeline_mode = #tpu.pipeline_mode<synchronous>, transform_indices = @transform_0, window_bounds = array<i64: 2, 128>}, {pipeline_mode = #tpu.pipeline_mode<synchronous>, transform_indices = @transform_1, window_bounds = array<i64: 128, 128>}, {pipeline_mode = #tpu.pipeline_mode<synchronous>, transform_indices = @transform_2, window_bounds = array<i64: 1, 128>}, {pipeline_mode = #tpu.pipeline_mode<synchronous>, transform_indices = @transform_3, window_bounds = array<i64: 128, 128>}, {pipeline_mode = #tpu.pipeline_mode<synchronous>, transform_indices = @transform_4, window_bounds = array<i64: 1, 128>}, {pipeline_mode = #tpu.pipeline_mode<synchronous>, transform_indices = @transform_5, window_bounds = array<i64: 2, 128>}, {pipeline_mode = #tpu.pipeline_mode<synchronous>, transform_indices = @transform_6, window_bounds = array<i64: 2, 128>}, {pipeline_mode = #tpu.pipeline_mode<synchronous>, transform_indices = @transform_7, window_bounds = array<i64: 2, 128>}]} {
    %c0 = arith.constant 0 : index
    %c0_0 = arith.constant 0 : index
    %0 = vector.load %arg1[%c0, %c0_0] : memref<2x128xf32, #tpu.memory_space<vmem>>, vector<2x128xf32>
    %1 = arith.truncf %0 : vector<2x128xf32> to vector<2x128xbf16>
    %c0_1 = arith.constant 0 : index
    %c0_2 = arith.constant 0 : index
    %2 = vector.load %arg2[%c0_1, %c0_2] : memref<128x128xbf16, #tpu.memory_space<vmem>>, vector<128x128xbf16>
    %cst = arith.constant dense<0.000000e+00> : vector<2x128xf32>
    %3 = tpu.matmul %1, %2, %cst {dimension_numbers = #tpu.dot_dimension_numbers<[1], [0], [0], [1], [0, 0, 1, 1], [], []>} : vector<2x128xbf16>, vector<128x128xbf16>, vector<2x128xf32> -> vector<2x128xf32>
    %c0_3 = arith.constant 0 : index
    %c0_4 = arith.constant 0 : index
    %4 = vector.load %arg3[%c0_3, %c0_4] : memref<1x128xf32, #tpu.memory_space<vmem>>, vector<1x128xf32>
    %5 = vector.broadcast %4 : vector<1x128xf32> to vector<2x128xf32>
    %6 = arith.addf %3, %5 : vector<2x128xf32>
    %7 = arith.mulf %6, %6 : vector<2x128xf32>
    %8 = arith.mulf %6, %7 : vector<2x128xf32>
    %cst_5 = arith.constant 4.471500e-02 : f32
    %9 = vector.broadcast %cst_5 : f32 to vector<2x128xf32>
    %10 = arith.mulf %9, %8 : vector<2x128xf32>
    %11 = arith.addf %6, %10 : vector<2x128xf32>
    %cst_6 = arith.constant 0.797884583 : f32
    %12 = vector.broadcast %cst_6 : f32 to vector<2x128xf32>
    %13 = arith.mulf %12, %11 : vector<2x128xf32>
    %14 = math.tanh %13 : vector<2x128xf32>
    %cst_7 = arith.constant 1.000000e+00 : f32
    %15 = vector.broadcast %cst_7 : f32 to vector<2x128xf32>
    %16 = arith.addf %15, %14 : vector<2x128xf32>
    %cst_8 = arith.constant 5.000000e-01 : f32
    %17 = vector.broadcast %cst_8 : f32 to vector<2x128xf32>
    %18 = arith.mulf %17, %16 : vector<2x128xf32>
    %19 = arith.mulf %6, %18 : vector<2x128xf32>
    %20 = arith.truncf %19 : vector<2x128xf32> to vector<2x128xbf16>
    %c0_9 = arith.constant 0 : index
    %c0_10 = arith.constant 0 : index
    %21 = vector.load %arg4[%c0_9, %c0_10] : memref<128x128xbf16, #tpu.memory_space<vmem>>, vector<128x128xbf16>
    %cst_11 = arith.constant dense<0.000000e+00> : vector<2x128xf32>
    %22 = tpu.matmul %20, %21, %cst_11 {dimension_numbers = #tpu.dot_dimension_numbers<[1], [0], [0], [1], [0, 0, 1, 1], [], []>} : vector<2x128xbf16>, vector<128x128xbf16>, vector<2x128xf32> -> vector<2x128xf32>
    %c0_12 = arith.constant 0 : index
    %c0_13 = arith.constant 0 : index
    %23 = vector.load %arg5[%c0_12, %c0_13] : memref<1x128xf32, #tpu.memory_space<vmem>>, vector<1x128xf32>
    %24 = vector.broadcast %23 : vector<1x128xf32> to vector<2x128xf32>
    %25 = arith.addf %22, %24 : vector<2x128xf32>
    %cst_14 = arith.constant dense<0xFF800000> : vector<2xf32>
    %26 = vector.multi_reduction <maximumf>, %25, %cst_14 [1] : vector<2x128xf32> to vector<2xf32>
    %27 = vector.shape_cast %26 : vector<2xf32> to vector<2x1xf32>
    %28 = vector.broadcast %27 : vector<2x1xf32> to vector<2x128xf32>
    %29 = arith.subf %25, %28 : vector<2x128xf32>
    %30 = math.exp %29 : vector<2x128xf32>
    %cst_15 = arith.constant dense<0.000000e+00> : vector<2xf32>
    %31 = vector.multi_reduction <add>, %30, %cst_15 [1] : vector<2x128xf32> to vector<2xf32>
    %32 = vector.shape_cast %31 : vector<2xf32> to vector<2x1xf32>
    %33 = vector.broadcast %32 : vector<2x1xf32> to vector<2x128xf32>
    %34 = arith.divf %30, %33 : vector<2x128xf32>
    %c0_16 = arith.constant 0 : index
    %c0_17 = arith.constant 0 : index
    %35 = vector.load %arg7[%c0_16, %c0_17] : memref<2x128xf32, #tpu.memory_space<vmem>>, vector<2x128xf32>
    tpu.vector_store %arg7[%c0_16, %c0_17], %34 {strides = array<i32>} : memref<2x128xf32, #tpu.memory_space<vmem>>, vector<2x128xf32>,
    %36 = vector.broadcast %27 : vector<2x1xf32> to vector<2x128xf32>
    %37 = arith.subf %25, %36 : vector<2x128xf32>
    %38 = math.log %32 : vector<2x1xf32>
    %39 = vector.broadcast %38 : vector<2x1xf32> to vector<2x128xf32>
    %40 = arith.subf %37, %39 : vector<2x128xf32>
    %c0_18 = arith.constant 0 : index
    %c0_19 = arith.constant 0 : index
    %41 = vector.load %arg6[%c0_18, %c0_19] : memref<2x128xf32, #tpu.memory_space<vmem>>, vector<2x128xf32>
    %42 = arith.mulf %41, %40 : vector<2x128xf32>
    %cst_20 = arith.constant dense<0.000000e+00> : vector<2xf32>
    %43 = vector.multi_reduction <add>, %42, %cst_20 [1] : vector<2x128xf32> to vector<2xf32>
    %44 = vector.shape_cast %43 : vector<2xf32> to vector<2x1xf32>
    %cst_21 = arith.constant 0.000000e+00 : f32
    %45 = vector.broadcast %cst_21 : f32 to vector<2x1xf32>
    %46 = arith.subf %45, %44 : vector<2x1xf32>
    %47 = vector.shape_cast %46 : vector<2x1xf32> to vector<2x1xf32>
    %48 = vector.broadcast %47 : vector<2x1xf32> to vector<2x128xf32>
    %c0_22 = arith.constant 0 : index
    %c0_23 = arith.constant 0 : index
    %49 = vector.load %arg8[%c0_22, %c0_23] : memref<2x128xf32, #tpu.memory_space<vmem>>, vector<2x128xf32>
    tpu.vector_store %arg8[%c0_22, %c0_23], %48 {strides = array<i32>} : memref<2x128xf32, #tpu.memory_space<vmem>>, vector<2x128xf32>,
    return
  }
  func.func @transform_0(%arg0: i32) -> (i32, i32) {
    %c0_i32 = arith.constant 0 : i32
    %c0_i32_0 = arith.constant 0 : i32
    %c0_i32_1 = arith.constant 0 : i32
    return %c0_i32, %c0_i32_0 : i32, i32
  }
  func.func @transform_1(%arg0: i32) -> (i32, i32) {
    %c0_i32 = arith.constant 0 : i32
    %c0_i32_0 = arith.constant 0 : i32
    %c0_i32_1 = arith.constant 0 : i32
    return %c0_i32, %c0_i32_0 : i32, i32
  }
  func.func @transform_2(%arg0: i32) -> (i32, i32) {
    %c0_i32 = arith.constant 0 : i32
    %c0_i32_0 = arith.constant 0 : i32
    %c0_i32_1 = arith.constant 0 : i32
    return %c0_i32, %c0_i32_0 : i32, i32
  }
  func.func @transform_3(%arg0: i32) -> (i32, i32) {
    %c0_i32 = arith.constant 0 : i32
    %c0_i32_0 = arith.constant 0 : i32
    %c0_i32_1 = arith.constant 0 : i32
    return %c0_i32, %c0_i32_0 : i32, i32
  }
  func.func @transform_4(%arg0: i32) -> (i32, i32) {
    %c0_i32 = arith.constant 0 : i32
    %c0_i32_0 = arith.constant 0 : i32
    %c0_i32_1 = arith.constant 0 : i32
    return %c0_i32, %c0_i32_0 : i32, i32
  }
  func.func @transform_5(%arg0: i32) -> (i32, i32) {
    %c0_i32 = arith.constant 0 : i32
    %c0_i32_0 = arith.constant 0 : i32
    %c0_i32_1 = arith.constant 0 : i32
    return %c0_i32, %c0_i32_0 : i32, i32
  }
  func.func @transform_6(%arg0: i32) -> (i32, i32) {
    %c0_i32 = arith.constant 0 : i32
    %c0_i32_0 = arith.constant 0 : i32
    %c0_i32_1 = arith.constant 0 : i32
    return %c0_i32, %c0_i32_0 : i32, i32
  }
  func.func @transform_7(%arg0: i32) -> (i32, i32) {
    %c0_i32 = arith.constant 0 : i32
    %c0_i32_0 = arith.constant 0 : i32
    %c0_i32_1 = arith.constant 0 : i32
    return %c0_i32, %c0_i32_0 : i32, i32
  }
}

module attributes {stable_mosaic.version = 11 : i64} {
  func.func @_layer_kernel(%arg0: i32, %arg1: memref<1x8x128xf32, #tpu.memory_space<vmem>>, %arg2: memref<1x1x8xf32, #tpu.memory_space<vmem>>, %arg3: memref<128x384xbf16, #tpu.memory_space<vmem>>, %arg4: memref<1x384xf32, #tpu.memory_space<vmem>>, %arg5: memref<128x128xbf16, #tpu.memory_space<vmem>>, %arg6: memref<1x128xf32, #tpu.memory_space<vmem>>, %arg7: memref<1x128xf32, #tpu.memory_space<vmem>>, %arg8: memref<1x128xf32, #tpu.memory_space<vmem>>, %arg9: memref<128x256xbf16, #tpu.memory_space<vmem>>, %arg10: memref<1x256xf32, #tpu.memory_space<vmem>>, %arg11: memref<256x128xbf16, #tpu.memory_space<vmem>>, %arg12: memref<1x128xf32, #tpu.memory_space<vmem>>, %arg13: memref<1x128xf32, #tpu.memory_space<vmem>>, %arg14: memref<1x128xf32, #tpu.memory_space<vmem>>, %arg15: memref<1x8x128xf32, #tpu.memory_space<vmem>>) attributes {dimension_semantics = [#tpu.dimension_semantics<parallel>], iteration_bounds = array<i64: 2>, scalar_prefetch = 0 : i64, scratch_operands = 0 : i64, tpu.core_type = #tpu.core_type<tc>, window_params = [{transform_indices = @transform_0, window_bounds = array<i64: 1, 8, 128>}, {transform_indices = @transform_1, window_bounds = array<i64: 1, 1, 8>}, {pipeline_mode = #tpu.pipeline_mode<synchronous>, transform_indices = @transform_2, window_bounds = array<i64: 128, 384>}, {pipeline_mode = #tpu.pipeline_mode<synchronous>, transform_indices = @transform_3, window_bounds = array<i64: 1, 384>}, {pipeline_mode = #tpu.pipeline_mode<synchronous>, transform_indices = @transform_4, window_bounds = array<i64: 128, 128>}, {pipeline_mode = #tpu.pipeline_mode<synchronous>, transform_indices = @transform_5, window_bounds = array<i64: 1, 128>}, {pipeline_mode = #tpu.pipeline_mode<synchronous>, transform_indices = @transform_6, window_bounds = array<i64: 1, 128>}, {pipeline_mode = #tpu.pipeline_mode<synchronous>, transform_indices = @transform_7, window_bounds = array<i64: 1, 128>}, {pipeline_mode = #tpu.pipeline_mode<synchronous>, transform_indices = @transform_8, window_bounds = array<i64: 128, 256>}, {pipeline_mode = #tpu.pipeline_mode<synchronous>, transform_indices = @transform_9, window_bounds = array<i64: 1, 256>}, {pipeline_mode = #tpu.pipeline_mode<synchronous>, transform_indices = @transform_10, window_bounds = array<i64: 256, 128>}, {pipeline_mode = #tpu.pipeline_mode<synchronous>, transform_indices = @transform_11, window_bounds = array<i64: 1, 128>}, {pipeline_mode = #tpu.pipeline_mode<synchronous>, transform_indices = @transform_12, window_bounds = array<i64: 1, 128>}, {pipeline_mode = #tpu.pipeline_mode<synchronous>, transform_indices = @transform_13, window_bounds = array<i64: 1, 128>}, {transform_indices = @transform_14, window_bounds = array<i64: 1, 8, 128>}]} {
    %c0 = arith.constant 0 : index
    %c0_0 = arith.constant 0 : index
    %c0_1 = arith.constant 0 : index
    %0 = vector.load %arg1[%c0, %c0_0, %c0_1] : memref<1x8x128xf32, #tpu.memory_space<vmem>>, vector<1x8x128xf32>
    %1 = vector.shape_cast %0 : vector<1x8x128xf32> to vector<8x128xf32>
    %c0_2 = arith.constant 0 : index
    %c0_3 = arith.constant 0 : index
    %c0_4 = arith.constant 0 : index
    %2 = vector.load %arg2[%c0_2, %c0_3, %c0_4] : memref<1x1x8xf32, #tpu.memory_space<vmem>>, vector<1x1x8xf32>
    %3 = vector.shape_cast %2 : vector<1x1x8xf32> to vector<1x8xf32>
    %4 = arith.truncf %1 : vector<8x128xf32> to vector<8x128xbf16>
    %c0_5 = arith.constant 0 : index
    %c0_6 = arith.constant 0 : index
    %5 = vector.load %arg3[%c0_5, %c0_6] : memref<128x384xbf16, #tpu.memory_space<vmem>>, vector<128x384xbf16>
    %cst = arith.constant dense<0.000000e+00> : vector<8x384xf32>
    %6 = tpu.matmul %4, %5, %cst {dimension_numbers = #tpu.dot_dimension_numbers<[1], [0], [0], [1], [0, 0, 1, 1], [], []>} : vector<8x128xbf16>, vector<128x384xbf16>, vector<8x384xf32> -> vector<8x384xf32>
    %c0_7 = arith.constant 0 : index
    %c0_8 = arith.constant 0 : index
    %7 = vector.load %arg4[%c0_7, %c0_8] : memref<1x384xf32, #tpu.memory_space<vmem>>, vector<1x384xf32>
    %8 = vector.broadcast %7 : vector<1x384xf32> to vector<8x384xf32>
    %9 = arith.addf %6, %8 : vector<8x384xf32>
    %10 = vector.extract_strided_slice %9 {offsets = [0, 0], sizes = [8, 64], strides = [1, 1]} : vector<8x384xf32> to vector<8x64xf32>
    %11 = arith.truncf %10 : vector<8x64xf32> to vector<8x64xbf16>
    %12 = vector.extract_strided_slice %9 {offsets = [0, 128], sizes = [8, 64], strides = [1, 1]} : vector<8x384xf32> to vector<8x64xf32>
    %13 = arith.truncf %12 : vector<8x64xf32> to vector<8x64xbf16>
    %14 = vector.extract_strided_slice %9 {offsets = [0, 256], sizes = [8, 64], strides = [1, 1]} : vector<8x384xf32> to vector<8x64xf32>
    %15 = arith.truncf %14 : vector<8x64xf32> to vector<8x64xbf16>
    %cst_9 = arith.constant dense<0.000000e+00> : vector<8x8xf32>
    %16 = tpu.matmul %11, %13, %cst_9 {dimension_numbers = #tpu.dot_dimension_numbers<[1], [1], [0], [0], [0, 0, 1, 0], [], []>} : vector<8x64xbf16>, vector<8x64xbf16>, vector<8x8xf32> -> vector<8x8xf32>
    %cst_10 = arith.constant 1.250000e-01 : f32
    %17 = vector.broadcast %cst_10 : f32 to vector<8x8xf32>
    %18 = arith.mulf %16, %17 : vector<8x8xf32>
    %19 = vector.broadcast %3 : vector<1x8xf32> to vector<8x8xf32>
    %20 = arith.addf %18, %19 : vector<8x8xf32>
    %cst_11 = arith.constant dense<0xFF800000> : vector<8xf32>
    %21 = vector.multi_reduction <maximumf>, %20, %cst_11 [1] : vector<8x8xf32> to vector<8xf32>
    %22 = vector.shape_cast %21 : vector<8xf32> to vector<8x1xf32>
    %23 = vector.broadcast %22 : vector<8x1xf32> to vector<8x8xf32>
    %24 = arith.subf %20, %23 : vector<8x8xf32>
    %25 = math.exp %24 : vector<8x8xf32>
    %cst_12 = arith.constant dense<0.000000e+00> : vector<8xf32>
    %26 = vector.multi_reduction <add>, %25, %cst_12 [1] : vector<8x8xf32> to vector<8xf32>
    %27 = vector.shape_cast %26 : vector<8xf32> to vector<8x1xf32>
    %28 = tpu.reciprocal %27 {approx = true} : vector<8x1xf32> -> vector<8x1xf32>
    %29 = vector.broadcast %28 : vector<8x1xf32> to vector<8x8xf32>
    %30 = arith.mulf %25, %29 : vector<8x8xf32>
    %31 = arith.truncf %30 : vector<8x8xf32> to vector<8x8xbf16>
    %cst_13 = arith.constant dense<0.000000e+00> : vector<8x64xf32>
    %32 = tpu.matmul %31, %15, %cst_13 {dimension_numbers = #tpu.dot_dimension_numbers<[1], [0], [0], [1], [0, 0, 1, 1], [], []>} : vector<8x8xbf16>, vector<8x64xbf16>, vector<8x64xf32> -> vector<8x64xf32>
    %33 = vector.extract_strided_slice %9 {offsets = [0, 64], sizes = [8, 64], strides = [1, 1]} : vector<8x384xf32> to vector<8x64xf32>
    %34 = arith.truncf %33 : vector<8x64xf32> to vector<8x64xbf16>
    %35 = vector.extract_strided_slice %9 {offsets = [0, 192], sizes = [8, 64], strides = [1, 1]} : vector<8x384xf32> to vector<8x64xf32>
    %36 = arith.truncf %35 : vector<8x64xf32> to vector<8x64xbf16>
    %37 = vector.extract_strided_slice %9 {offsets = [0, 320], sizes = [8, 64], strides = [1, 1]} : vector<8x384xf32> to vector<8x64xf32>
    %38 = arith.truncf %37 : vector<8x64xf32> to vector<8x64xbf16>
    %cst_14 = arith.constant dense<0.000000e+00> : vector<8x8xf32>
    %39 = tpu.matmul %34, %36, %cst_14 {dimension_numbers = #tpu.dot_dimension_numbers<[1], [1], [0], [0], [0, 0, 1, 0], [], []>} : vector<8x64xbf16>, vector<8x64xbf16>, vector<8x8xf32> -> vector<8x8xf32>
    %cst_15 = arith.constant 1.250000e-01 : f32
    %40 = vector.broadcast %cst_15 : f32 to vector<8x8xf32>
    %41 = arith.mulf %39, %40 : vector<8x8xf32>
    %42 = vector.broadcast %3 : vector<1x8xf32> to vector<8x8xf32>
    %43 = arith.addf %41, %42 : vector<8x8xf32>
    %cst_16 = arith.constant dense<0xFF800000> : vector<8xf32>
    %44 = vector.multi_reduction <maximumf>, %43, %cst_16 [1] : vector<8x8xf32> to vector<8xf32>
    %45 = vector.shape_cast %44 : vector<8xf32> to vector<8x1xf32>
    %46 = vector.broadcast %45 : vector<8x1xf32> to vector<8x8xf32>
    %47 = arith.subf %43, %46 : vector<8x8xf32>
    %48 = math.exp %47 : vector<8x8xf32>
    %cst_17 = arith.constant dense<0.000000e+00> : vector<8xf32>
    %49 = vector.multi_reduction <add>, %48, %cst_17 [1] : vector<8x8xf32> to vector<8xf32>
    %50 = vector.shape_cast %49 : vector<8xf32> to vector<8x1xf32>
    %51 = tpu.reciprocal %50 {approx = true} : vector<8x1xf32> -> vector<8x1xf32>
    %52 = vector.broadcast %51 : vector<8x1xf32> to vector<8x8xf32>
    %53 = arith.mulf %48, %52 : vector<8x8xf32>
    %54 = arith.truncf %53 : vector<8x8xf32> to vector<8x8xbf16>
    %cst_18 = arith.constant dense<0.000000e+00> : vector<8x64xf32>
    %55 = tpu.matmul %54, %38, %cst_18 {dimension_numbers = #tpu.dot_dimension_numbers<[1], [0], [0], [1], [0, 0, 1, 1], [], []>} : vector<8x8xbf16>, vector<8x64xbf16>, vector<8x64xf32> -> vector<8x64xf32>
    %56 = tpu.concatenate %32, %55 in 1 : vector<8x64xf32>, vector<8x64xf32> -> vector<8x128xf32>
    %57 = arith.truncf %56 : vector<8x128xf32> to vector<8x128xbf16>
    %c0_19 = arith.constant 0 : index
    %c0_20 = arith.constant 0 : index
    %58 = vector.load %arg5[%c0_19, %c0_20] : memref<128x128xbf16, #tpu.memory_space<vmem>>, vector<128x128xbf16>
    %cst_21 = arith.constant dense<0.000000e+00> : vector<8x128xf32>
    %59 = tpu.matmul %57, %58, %cst_21 {dimension_numbers = #tpu.dot_dimension_numbers<[1], [0], [0], [1], [0, 0, 1, 1], [], []>} : vector<8x128xbf16>, vector<128x128xbf16>, vector<8x128xf32> -> vector<8x128xf32>
    %c0_22 = arith.constant 0 : index
    %c0_23 = arith.constant 0 : index
    %60 = vector.load %arg6[%c0_22, %c0_23] : memref<1x128xf32, #tpu.memory_space<vmem>>, vector<1x128xf32>
    %61 = vector.broadcast %60 : vector<1x128xf32> to vector<8x128xf32>
    %62 = arith.addf %59, %61 : vector<8x128xf32>
    %63 = arith.addf %62, %1 : vector<8x128xf32>
    %c0_24 = arith.constant 0 : index
    %c0_25 = arith.constant 0 : index
    %64 = vector.load %arg7[%c0_24, %c0_25] : memref<1x128xf32, #tpu.memory_space<vmem>>, vector<1x128xf32>
    %c0_26 = arith.constant 0 : index
    %c0_27 = arith.constant 0 : index
    %65 = vector.load %arg8[%c0_26, %c0_27] : memref<1x128xf32, #tpu.memory_space<vmem>>, vector<1x128xf32>
    %cst_28 = arith.constant dense<0.000000e+00> : vector<8xf32>
    %66 = vector.multi_reduction <add>, %63, %cst_28 [1] : vector<8x128xf32> to vector<8xf32>
    %67 = vector.shape_cast %66 : vector<8xf32> to vector<8x1xf32>
    %cst_29 = arith.constant 1.280000e+02 : f32
    %68 = vector.broadcast %cst_29 : f32 to vector<8x1xf32>
    %69 = arith.divf %67, %68 : vector<8x1xf32>
    %70 = vector.broadcast %69 : vector<8x1xf32> to vector<8x128xf32>
    %71 = arith.subf %63, %70 : vector<8x128xf32>
    %72 = arith.mulf %71, %71 : vector<8x128xf32>
    %cst_30 = arith.constant dense<0.000000e+00> : vector<8xf32>
    %73 = vector.multi_reduction <add>, %72, %cst_30 [1] : vector<8x128xf32> to vector<8xf32>
    %74 = vector.shape_cast %73 : vector<8xf32> to vector<8x1xf32>
    %cst_31 = arith.constant 1.280000e+02 : f32
    %75 = vector.broadcast %cst_31 : f32 to vector<8x1xf32>
    %76 = arith.divf %74, %75 : vector<8x1xf32>
    %77 = vector.broadcast %69 : vector<8x1xf32> to vector<8x128xf32>
    %78 = arith.subf %63, %77 : vector<8x128xf32>
    %cst_32 = arith.constant 1.000000e-07 : f32
    %79 = vector.broadcast %cst_32 : f32 to vector<8x1xf32>
    %80 = arith.addf %76, %79 : vector<8x1xf32>
    %81 = math.rsqrt %80 : vector<8x1xf32>
    %82 = vector.broadcast %81 : vector<8x1xf32> to vector<8x128xf32>
    %83 = arith.mulf %78, %82 : vector<8x128xf32>
    %84 = vector.broadcast %64 : vector<1x128xf32> to vector<8x128xf32>
    %85 = arith.mulf %83, %84 : vector<8x128xf32>
    %86 = vector.broadcast %65 : vector<1x128xf32> to vector<8x128xf32>
    %87 = arith.addf %85, %86 : vector<8x128xf32>
    %88 = arith.truncf %87 : vector<8x128xf32> to vector<8x128xbf16>
    %c0_33 = arith.constant 0 : index
    %c0_34 = arith.constant 0 : index
    %89 = vector.load %arg9[%c0_33, %c0_34] : memref<128x256xbf16, #tpu.memory_space<vmem>>, vector<128x256xbf16>
    %cst_35 = arith.constant dense<0.000000e+00> : vector<8x256xf32>
    %90 = tpu.matmul %88, %89, %cst_35 {dimension_numbers = #tpu.dot_dimension_numbers<[1], [0], [0], [1], [0, 0, 1, 1], [], []>} : vector<8x128xbf16>, vector<128x256xbf16>, vector<8x256xf32> -> vector<8x256xf32>
    %c0_36 = arith.constant 0 : index
    %c0_37 = arith.constant 0 : index
    %91 = vector.load %arg10[%c0_36, %c0_37] : memref<1x256xf32, #tpu.memory_space<vmem>>, vector<1x256xf32>
    %92 = vector.broadcast %91 : vector<1x256xf32> to vector<8x256xf32>
    %93 = arith.addf %90, %92 : vector<8x256xf32>
    %94 = arith.mulf %93, %93 : vector<8x256xf32>
    %95 = arith.mulf %93, %94 : vector<8x256xf32>
    %cst_38 = arith.constant 4.471500e-02 : f32
    %96 = vector.broadcast %cst_38 : f32 to vector<8x256xf32>
    %97 = arith.mulf %96, %95 : vector<8x256xf32>
    %98 = arith.addf %93, %97 : vector<8x256xf32>
    %cst_39 = arith.constant 0.797884583 : f32
    %99 = vector.broadcast %cst_39 : f32 to vector<8x256xf32>
    %100 = arith.mulf %99, %98 : vector<8x256xf32>
    %101 = math.tanh %100 : vector<8x256xf32>
    %cst_40 = arith.constant 1.000000e+00 : f32
    %102 = vector.broadcast %cst_40 : f32 to vector<8x256xf32>
    %103 = arith.addf %102, %101 : vector<8x256xf32>
    %cst_41 = arith.constant 5.000000e-01 : f32
    %104 = vector.broadcast %cst_41 : f32 to vector<8x256xf32>
    %105 = arith.mulf %104, %103 : vector<8x256xf32>
    %106 = arith.mulf %93, %105 : vector<8x256xf32>
    %107 = arith.truncf %106 : vector<8x256xf32> to vector<8x256xbf16>
    %c0_42 = arith.constant 0 : index
    %c0_43 = arith.constant 0 : index
    %108 = vector.load %arg11[%c0_42, %c0_43] : memref<256x128xbf16, #tpu.memory_space<vmem>>, vector<256x128xbf16>
    %cst_44 = arith.constant dense<0.000000e+00> : vector<8x128xf32>
    %109 = tpu.matmul %107, %108, %cst_44 {dimension_numbers = #tpu.dot_dimension_numbers<[1], [0], [0], [1], [0, 0, 1, 1], [], []>} : vector<8x256xbf16>, vector<256x128xbf16>, vector<8x128xf32> -> vector<8x128xf32>
    %c0_45 = arith.constant 0 : index
    %c0_46 = arith.constant 0 : index
    %110 = vector.load %arg12[%c0_45, %c0_46] : memref<1x128xf32, #tpu.memory_space<vmem>>, vector<1x128xf32>
    %111 = vector.broadcast %110 : vector<1x128xf32> to vector<8x128xf32>
    %112 = arith.addf %109, %111 : vector<8x128xf32>
    %113 = arith.addf %112, %87 : vector<8x128xf32>
    %c0_47 = arith.constant 0 : index
    %c0_48 = arith.constant 0 : index
    %114 = vector.load %arg13[%c0_47, %c0_48] : memref<1x128xf32, #tpu.memory_space<vmem>>, vector<1x128xf32>
    %c0_49 = arith.constant 0 : index
    %c0_50 = arith.constant 0 : index
    %115 = vector.load %arg14[%c0_49, %c0_50] : memref<1x128xf32, #tpu.memory_space<vmem>>, vector<1x128xf32>
    %cst_51 = arith.constant dense<0.000000e+00> : vector<8xf32>
    %116 = vector.multi_reduction <add>, %113, %cst_51 [1] : vector<8x128xf32> to vector<8xf32>
    %117 = vector.shape_cast %116 : vector<8xf32> to vector<8x1xf32>
    %cst_52 = arith.constant 1.280000e+02 : f32
    %118 = vector.broadcast %cst_52 : f32 to vector<8x1xf32>
    %119 = arith.divf %117, %118 : vector<8x1xf32>
    %120 = vector.broadcast %119 : vector<8x1xf32> to vector<8x128xf32>
    %121 = arith.subf %113, %120 : vector<8x128xf32>
    %122 = arith.mulf %121, %121 : vector<8x128xf32>
    %cst_53 = arith.constant dense<0.000000e+00> : vector<8xf32>
    %123 = vector.multi_reduction <add>, %122, %cst_53 [1] : vector<8x128xf32> to vector<8xf32>
    %124 = vector.shape_cast %123 : vector<8xf32> to vector<8x1xf32>
    %cst_54 = arith.constant 1.280000e+02 : f32
    %125 = vector.broadcast %cst_54 : f32 to vector<8x1xf32>
    %126 = arith.divf %124, %125 : vector<8x1xf32>
    %127 = vector.broadcast %119 : vector<8x1xf32> to vector<8x128xf32>
    %128 = arith.subf %113, %127 : vector<8x128xf32>
    %cst_55 = arith.constant 1.000000e-07 : f32
    %129 = vector.broadcast %cst_55 : f32 to vector<8x1xf32>
    %130 = arith.addf %126, %129 : vector<8x1xf32>
    %131 = math.rsqrt %130 : vector<8x1xf32>
    %132 = vector.broadcast %131 : vector<8x1xf32> to vector<8x128xf32>
    %133 = arith.mulf %128, %132 : vector<8x128xf32>
    %134 = vector.broadcast %114 : vector<1x128xf32> to vector<8x128xf32>
    %135 = arith.mulf %133, %134 : vector<8x128xf32>
    %136 = vector.broadcast %115 : vector<1x128xf32> to vector<8x128xf32>
    %137 = arith.addf %135, %136 : vector<8x128xf32>
    %c0_56 = arith.constant 0 : index
    %c0_57 = arith.constant 0 : index
    %c0_58 = arith.constant 0 : index
    %138 = vector.load %arg15[%c0_56, %c0_57, %c0_58] : memref<1x8x128xf32, #tpu.memory_space<vmem>>, vector<1x8x128xf32>
    %139 = vector.shape_cast %138 : vector<1x8x128xf32> to vector<8x128xf32>
    %140 = vector.shape_cast %137 : vector<8x128xf32> to vector<1x8x128xf32>
    tpu.vector_store %arg15[%c0_56, %c0_57, %c0_58], %140 {strides = array<i32>} : memref<1x8x128xf32, #tpu.memory_space<vmem>>, vector<1x8x128xf32>,
    return
  }
  func.func @transform_0(%arg0: i32) -> (i32, i32, i32) {
    %c0_i32 = arith.constant 0 : i32
    %c0_i32_0 = arith.constant 0 : i32
    %c0_i32_1 = arith.constant 0 : i32
    return %arg0, %c0_i32, %c0_i32_0 : i32, i32, i32
  }
  func.func @transform_1(%arg0: i32) -> (i32, i32, i32) {
    %c0_i32 = arith.constant 0 : i32
    %c0_i32_0 = arith.constant 0 : i32
    %c0_i32_1 = arith.constant 0 : i32
    return %arg0, %c0_i32, %c0_i32_0 : i32, i32, i32
  }
  func.func @transform_2(%arg0: i32) -> (i32, i32) {
    %c0_i32 = arith.constant 0 : i32
    %c0_i32_0 = arith.constant 0 : i32
    %c0_i32_1 = arith.constant 0 : i32
    return %c0_i32, %c0_i32_0 : i32, i32
  }
  func.func @transform_3(%arg0: i32) -> (i32, i32) {
    %c0_i32 = arith.constant 0 : i32
    %c0_i32_0 = arith.constant 0 : i32
    %c0_i32_1 = arith.constant 0 : i32
    return %c0_i32, %c0_i32_0 : i32, i32
  }
  func.func @transform_4(%arg0: i32) -> (i32, i32) {
    %c0_i32 = arith.constant 0 : i32
    %c0_i32_0 = arith.constant 0 : i32
    %c0_i32_1 = arith.constant 0 : i32
    return %c0_i32, %c0_i32_0 : i32, i32
  }
  func.func @transform_5(%arg0: i32) -> (i32, i32) {
    %c0_i32 = arith.constant 0 : i32
    %c0_i32_0 = arith.constant 0 : i32
    %c0_i32_1 = arith.constant 0 : i32
    return %c0_i32, %c0_i32_0 : i32, i32
  }
  func.func @transform_6(%arg0: i32) -> (i32, i32) {
    %c0_i32 = arith.constant 0 : i32
    %c0_i32_0 = arith.constant 0 : i32
    %c0_i32_1 = arith.constant 0 : i32
    return %c0_i32, %c0_i32_0 : i32, i32
  }
  func.func @transform_7(%arg0: i32) -> (i32, i32) {
    %c0_i32 = arith.constant 0 : i32
    %c0_i32_0 = arith.constant 0 : i32
    %c0_i32_1 = arith.constant 0 : i32
    return %c0_i32, %c0_i32_0 : i32, i32
  }
  func.func @transform_8(%arg0: i32) -> (i32, i32) {
    %c0_i32 = arith.constant 0 : i32
    %c0_i32_0 = arith.constant 0 : i32
    %c0_i32_1 = arith.constant 0 : i32
    return %c0_i32, %c0_i32_0 : i32, i32
  }
  func.func @transform_9(%arg0: i32) -> (i32, i32) {
    %c0_i32 = arith.constant 0 : i32
    %c0_i32_0 = arith.constant 0 : i32
    %c0_i32_1 = arith.constant 0 : i32
    return %c0_i32, %c0_i32_0 : i32, i32
  }
  func.func @transform_10(%arg0: i32) -> (i32, i32) {
    %c0_i32 = arith.constant 0 : i32
    %c0_i32_0 = arith.constant 0 : i32
    %c0_i32_1 = arith.constant 0 : i32
    return %c0_i32, %c0_i32_0 : i32, i32
  }
  func.func @transform_11(%arg0: i32) -> (i32, i32) {
    %c0_i32 = arith.constant 0 : i32
    %c0_i32_0 = arith.constant 0 : i32
    %c0_i32_1 = arith.constant 0 : i32
    return %c0_i32, %c0_i32_0 : i32, i32
  }
  func.func @transform_12(%arg0: i32) -> (i32, i32) {
    %c0_i32 = arith.constant 0 : i32
    %c0_i32_0 = arith.constant 0 : i32
    %c0_i32_1 = arith.constant 0 : i32
    return %c0_i32, %c0_i32_0 : i32, i32
  }
  func.func @transform_13(%arg0: i32) -> (i32, i32) {
    %c0_i32 = arith.constant 0 : i32
    %c0_i32_0 = arith.constant 0 : i32
    %c0_i32_1 = arith.constant 0 : i32
    return %c0_i32, %c0_i32_0 : i32, i32
  }
  func.func @transform_14(%arg0: i32) -> (i32, i32, i32) {
    %c0_i32 = arith.constant 0 : i32
    %c0_i32_0 = arith.constant 0 : i32
    %c0_i32_1 = arith.constant 0 : i32
    return %arg0, %c0_i32, %c0_i32_0 : i32, i32, i32
  }
}

</mosaic_0001>

<llo_original>
// kernel: nlp_model_forward.4
$region0: #{nlp_model_forward.4}
  #allocation0 [shape = 'u32[]', space=smem, size = 0x4, offset = 0x4, fixed_abs, tag = 'smem constant byte address 0x4 - core index']
  #allocation1 [shape = 'u32[72,128]{1,0:T(1,128)}', space=vmem, size = 0x9000, scoped, tag = 'internal scratch']
  %s0 = inlined_call_operand.vmem [shape: f32[2,8,128], index: 0, kind: input, shape index: {}]
  %s1 = inlined_call_operand.vmem [shape: f32[1,128], index: 1, kind: input, shape index: {}]
  %s2 = inlined_call_operand.vmem [shape: f32[1,128], index: 2, kind: input, shape index: {}]
  %s3 = inlined_call_operand.vmem [shape: f32[2,8,128], index: 3, kind: output, shape index: {}]
  %s4 = sld [smem:[#allocation0]]
  $region45: #{nlp_model_forward.4} parent=0
    _
  %s6 = ssub.s32 1, %s4
  %s7 = scalar_select 0, %s6, %s4
  loop: start=0, step=1, limit=4
  $region2: #{nlp_model_forward.4} parent=0 // loop_pre_header
    _
  $region3: #{nlp_model_forward.4} parent=0 // loop_header
    %s9 = sphi 0, %s13
    %p10 = scmp.ge.s32.totalorder %s9, 4
    %s19 = sphi 0, %s21
    %s22 = sphi 0, %s19
    %s23 = sphi 0, %s22
    %s39 = sphi 0, %s23
    %s43 = sphi 0, %s43
    %s45 = sphi 0, %s43
    %s46 = sphi 0, %s45
    %s60 = sphi 0, %s46
    %s64 = sphi 0, %s64
    %s66 = sphi 0, %s64
    %s67 = sphi 0, %s66
    %s81 = sphi 0, %s67
    %s87 = sphi 0, %s89
    %s90 = sphi 0, %s87
    %s91 = sphi 0, %s90
    %s107 = sphi 0, %s91
  $region4: #{nlp_model_forward.4} parent=0 // loop_header_branch
    %12 = sbr.rel (%p10) target = $region8
  $region5: #{nlp_model_forward.4} parent=0 // loop_body
    %s14 = ssub.s32 %s9, 1
    %s15 = ssub.s32 %s9, 2
    %s16 = sadd.s32 %s9, 1
    %s17 = ssub.s32 %s9, %s16
    %p18 = scmp.eq.s32.totalorder %s17, 0
    %s20 = sadd.s32 %s19, 1
    %s21 = scalar_select %p18, %s19, %s20
    %p24 = pneg %p18
    %p25 = scmp.eq.s32.totalorder %s9, 1
    %p26 = por %p24, %p25
    %p27 = scmp.ne.s32.totalorder %s19, %s22
    %p28 = scmp.eq.s32.totalorder %s9, 0
    %p29 = por %p27, %p28
    %p30 = scmp.ne.s32.totalorder %s19, %s22
    %p31 = scmp.eq.s32.totalorder %s14, 1
    %p32 = por %p30, %p31
    %p33 = scmp.ne.s32.totalorder %s22, %s23
    %p34 = scmp.eq.s32.totalorder %s14, 0
    %p35 = por %p33, %p34
    %p36 = scmp.ne.s32.totalorder %s22, %s23
    %p37 = scmp.eq.s32.totalorder %s15, 1
    %p38 = por %p36, %p37
    %p40 = scmp.ne.s32.totalorder %s23, %s39
    %p41 = scmp.eq.s32.totalorder %s15, 0
    %p42 = por %p40, %p41
    %s44 = sadd.s32 %s43, 1
    %p47 = scmp.eq.s32.totalorder %s9, 1
    %p48 = scmp.ne.s32.totalorder %s43, %s45
    %p49 = scmp.eq.s32.totalorder %s9, 0
    %p50 = por %p48, %p49
    %p51 = scmp.ne.s32.totalorder %s43, %s45
    %p52 = scmp.eq.s32.totalorder %s14, 1
    %p53 = por %p51, %p52
    %p54 = scmp.ne.s32.totalorder %s45, %s46
    %p55 = scmp.eq.s32.totalorder %s14, 0
    %p56 = por %p54, %p55
    %p57 = scmp.ne.s32.totalorder %s45, %s46
    %p58 = scmp.eq.s32.totalorder %s15, 1
    %p59 = por %p57, %p58
    %p61 = scmp.ne.s32.totalorder %s46, %s60
    %p62 = scmp.eq.s32.totalorder %s15, 0
    %p63 = por %p61, %p62
    %s65 = sadd.s32 %s64, 1
    %p68 = scmp.eq.s32.totalorder %s9, 1
    %p69 = scmp.ne.s32.totalorder %s64, %s66
    %p70 = scmp.eq.s32.totalorder %s9, 0
    %p71 = por %p69, %p70
    %p72 = scmp.ne.s32.totalorder %s64, %s66
    %p73 = scmp.eq.s32.totalorder %s14, 1
    %p74 = por %p72, %p73
    %p75 = scmp.ne.s32.totalorder %s66, %s67
    %p76 = scmp.eq.s32.totalorder %s14, 0
    %p77 = por %p75, %p76
    %p78 = scmp.ne.s32.totalorder %s66, %s67
    %p79 = scmp.eq.s32.totalorder %s15, 1
    %p80 = por %p78, %p79
    %p82 = scmp.ne.s32.totalorder %s67, %s81
    %p83 = scmp.eq.s32.totalorder %s15, 0
    %p84 = por %p82, %p83
    %s85 = ssub.s32 %s9, %s16
    %p86 = scmp.eq.s32.totalorder %s85, 0
    %s88 = sadd.s32 %s87, 1
    %s89 = scalar_select %p86, %s87, %s88
    %p92 = pneg %p86
    %p93 = scmp.eq.s32.totalorder %s9, 1
    %p94 = por %p92, %p93
    %p95 = scmp.ne.s32.totalorder %s87, %s90
    %p96 = scmp.eq.s32.totalorder %s9, 0
    %p97 = por %p95, %p96
    %p98 = scmp.ne.s32.totalorder %s87, %s90
    %p99 = scmp.eq.s32.totalorder %s14, 1
    %p100 = por %p98, %p99
    %p101 = scmp.ne.s32.totalorder %s90, %s91
    %p102 = scmp.eq.s32.totalorder %s14, 0
    %p103 = por %p101, %p102
    %p104 = scmp.ne.s32.totalorder %s90, %s91
    %p105 = scmp.eq.s32.totalorder %s15, 1
    %p106 = por %p104, %p105
    %p108 = scmp.ne.s32.totalorder %s91, %s107
    %p109 = scmp.eq.s32.totalorder %s15, 0
    %p110 = por %p108, %p109
    %p111 = scmp.le.s32.totalorder 1, %s9
    %p112 = scmp.lt.s32.totalorder %s9, 3
    %p113 = pnand %p111, %p112
    %p114 = pneg %p113
    // Predicated region
    $region9: #{nlp_model_forward.4} parent=5 // pred_check
      _
    $region10: #{nlp_model_forward.4} parent=5 // pred_check_branch
      %116 = sbr.rel (%p113) target = $region12
    $region11: #{nlp_model_forward.4} parent=5 // pred_region
      %s117 = ssub.s32 %s9, 1
      // Predicated region
      $region13: #{nlp_model_forward.4} parent=11 // pred_check
        %p118 = pneg %p56
      $region14: #{nlp_model_forward.4} parent=11 // pred_check_branch
        %120 = sbr.rel (%p118) target = $region16
      $region15: #{nlp_model_forward.4} parent=11 // pred_region
        _
      $region16: #{nlp_model_forward.4} parent=11 // pred_fallthru
        _
      // Predicated region
      $region17: #{nlp_model_forward.4} parent=11 // pred_check
        %p121 = pneg %p77
      $region18: #{nlp_model_forward.4} parent=11 // pred_check_branch
        %123 = sbr.rel (%p121) target = $region20
      $region19: #{nlp_model_forward.4} parent=11 // pred_region
        _
      $region20: #{nlp_model_forward.4} parent=11 // pred_fallthru
        _
    $region12: #{nlp_model_forward.4} parent=5 // pred_fallthru
      _
    %p124 = scmp.lt.s32.totalorder %s9, 2
    // Predicated region
    $region21: #{nlp_model_forward.4} parent=5 // pred_check
      %p125 = pneg %p124
    $region22: #{nlp_model_forward.4} parent=5 // pred_check_branch
      %127 = sbr.rel (%p125) target = $region24
    $region23: #{nlp_model_forward.4} parent=5 // pred_region
      // Predicated region
      $region25: #{nlp_model_forward.4} parent=23 // pred_check
        %p128 = pneg %p29
      $region26: #{nlp_model_forward.4} parent=23 // pred_check_branch
        %130 = sbr.rel (%p128) target = $region28
      $region27: #{nlp_model_forward.4} parent=23 // pred_region
        %p131 = scmp.lt.s32.totalorder %s9, 1
        %s132 = scalar_select %p131, %s9, 1
        %s133 = smul.addr %s132, 8
        %s134 = scalar_lea.vmem %s0, %s133
      $region28: #{nlp_model_forward.4} parent=23 // pred_fallthru
        _
    $region24: #{nlp_model_forward.4} parent=5 // pred_fallthru
      _
    %p135 = scmp.le.s32.totalorder 1, %s9
    %p136 = scmp.lt.s32.totalorder %s9, 3
    %p137 = pnand %p135, %p136
    %p138 = pneg %p137
    // Predicated region
    $region29: #{nlp_model_forward.4} parent=5 // pred_check
      _
    $region30: #{nlp_model_forward.4} parent=5 // pred_check_branch
      %140 = sbr.rel (%p137) target = $region32
    $region31: #{nlp_model_forward.4} parent=5 // pred_region
      %s141 = ssub.s32 %s9, 1
      %p142 = scmp.lt.s32.totalorder %s14, 1
      %s143 = scalar_select %p142, %s14, 1
      %s144 = smul.addr %s143, 8
      %s145 = scalar_lea.vmem %s0, %s144
      %p146 = pneg %p35
      %p147 = pneg %p32
      %p148 = pneg %p56
      %p149 = pneg %p53
      %p150 = pneg %p77
      %p151 = pneg %p74
      %p152 = pneg %p103
      %p153 = pneg %p100
      %p154 = scmp.lt.s32.totalorder %s14, 1
      %s155 = scalar_select %p154, %s14, 1
      %s156 = smul.addr %s155, 8
      %s157 = scalar_lea.vmem %s3, %s156
      %p158 = scmp.lt.s32.totalorder %s14, 1
      %s159 = scalar_select %p158, %s14, 1
      %s160 = smul.addr %s159, 8
      %s161 = scalar_lea.vmem %s0, %s160
      %p162 = scmp.lt.s32.totalorder %s14, 1
      %s163 = scalar_select %p162, %s14, 1
      %s164 = smul.addr %s163, 8
      %s165 = scalar_lea.vmem %s3, %s164
      %v166 = vld [vmem:[%s161] sm:$0xff]
      %v167 = vld [vmem:[%s1] sm:$0x1]
      %v168 = vld [vmem:[%s2] sm:$0x1]
      %169 = vadd.xlane.f32.xlu0 %v166
      %v170 = vpop.xlane.xlu0 %169
      %v171 = vrcp.pop 128.0
      %v172 = vmul.f32 128.0, %v171
      %v173 = vsub.f32 1.0, %v172
      %v174 = vmul.f32 %v171, %v173
      %v175 = vadd.f32 %v171, %v174
      %vm176 = vweird.f32 %v171
      %v177 = vsel %vm176, %v171, %v175
      %v178 = vmul.f32 %v170, %v177
      %v179 = vsub.f32 %v166, %v178
      %v180 = vmul.f32 %v179, %v179
      %181 = vadd.xlane.f32.xlu0 %v180
      %v182 = vpop.xlane.xlu0 %181
      %v183 = vmul.f32 %v182, %v177
      %v184 = vadd.f32 %v183, 1e-07
      %v185 = vrsqrt.pop %v184
      %v186 = vmul.f32 %v185, %v184
      %v187 = vmul.f32 %v186, %v185
      %v188 = vmul.f32 0.5, %v187
      %v189 = vsub.f32 1.5, %v188
      %v190 = vmul.f32 %v185, %v189
      %vm191 = vweird.f32 %v184
      %vm192 = vweird.f32 %v185
      %vm193 = vmor %vm191, %vm192
      %v194 = vsel %vm193, %v185, %v190
      %v195 = vmul.f32 %v179, %v194
      %v197 = vperm.slane %v167, 0
      %v199 = vmul.f32 %v195, %v197
      %v201 = vperm.slane %v168, 0
      %v203 = vadd.f32 %v199, %v201
      %204 = vst [vmem:[%s165] sm:$0xff] %v203
      %p205 = scmp.lt.s32.totalorder %s14, 1
      %s206 = scalar_select %p205, %s14, 1
      %s207 = smul.addr %s206, 8
      %s208 = scalar_lea.vmem %s3, %s207
      // Predicated region
      $region33: #{nlp_model_forward.4} parent=31 // pred_check
        %p209 = pneg %p100
      $region34: #{nlp_model_forward.4} parent=31 // pred_check_branch
        %211 = sbr.rel (%p209) target = $region36
      $region35: #{nlp_model_forward.4} parent=31 // pred_region
        _
      $region36: #{nlp_model_forward.4} parent=31 // pred_fallthru
        _
    $region32: #{nlp_model_forward.4} parent=5 // pred_fallthru
      _
    %p212 = scmp.le.s32.totalorder 2, %s9
    // Predicated region
    $region37: #{nlp_model_forward.4} parent=5 // pred_check
      %p213 = pneg %p212
    $region38: #{nlp_model_forward.4} parent=5 // pred_check_branch
      %215 = sbr.rel (%p213) target = $region40
    $region39: #{nlp_model_forward.4} parent=5 // pred_region
      %s216 = ssub.s32 %s9, 2
      // Predicated region
      $region41: #{nlp_model_forward.4} parent=39 // pred_check
        %p217 = pneg %p106
      $region42: #{nlp_model_forward.4} parent=39 // pred_check_branch
        %219 = sbr.rel (%p217) target = $region44
      $region43: #{nlp_model_forward.4} parent=39 // pred_region
        %p220 = scmp.lt.s32.totalorder %s15, 1
        %s221 = scalar_select %p220, %s15, 1
        %s222 = smul.addr %s221, 8
        %s223 = scalar_lea.vmem %s3, %s222
      $region44: #{nlp_model_forward.4} parent=39 // pred_fallthru
        _
    $region40: #{nlp_model_forward.4} parent=5 // pred_fallthru
      _
  $region6: #{nlp_model_forward.4} parent=0 // loop_footer
    %s13 = sadd.s32 1, %s9
  $region7: #{nlp_model_forward.4} parent=0 // loop_footer_branch
    %8 = sbr.rel target = $region3
  $region8: #{nlp_model_forward.4} parent=0 // loop_exit
    _

// kernel: nlp_model_forward.7
$region0: #{nlp_model_forward.7}
  #allocation0 [shape = 'u32[]', space=smem, size = 0x4, offset = 0x4, fixed_abs, tag = 'smem constant byte address 0x4 - core index']
  #allocation1 [shape = 'u32[72,128]{1,0:T(1,128)}', space=vmem, size = 0x9000, scoped, tag = 'internal scratch']
  %s0 = inlined_call_operand.vmem [shape: f32[2,128], index: 0, kind: input, shape index: {}]
  %s1 = inlined_call_operand.vmem [shape: bf16[128,128], index: 1, kind: input, shape index: {}]
  %s2 = inlined_call_operand.vmem [shape: f32[1,128], index: 2, kind: input, shape index: {}]
  %s3 = inlined_call_operand.hbm [shape: bf16[128,128], index: 3, kind: input, shape index: {}]
  %s4 = inlined_call_operand.vmem [shape: f32[1,128], index: 4, kind: input, shape index: {}]
  %s5 = inlined_call_operand.vmem [shape: f32[2,128], index: 5, kind: input, shape index: {}]
  %s6 = inlined_call_operand.hbm [shape: f32[2,128], index: 6, kind: output, shape index: {0}]
  %s7 = inlined_call_operand.vmem [shape: f32[2,128], index: 7, kind: output, shape index: {1}]
  %8 = xla_tuple %s6, %s7
  %s9 = sld [smem:[#allocation0]]
  $region46: #{nlp_model_forward.7} parent=0
    _
  %s11 = ssub.s32 1, %s9
  %s12 = scalar_select 0, %s11, %s9
  $region1: #{nlp_model_forward.7} parent=0
    #allocation2 [shape = 'u8[32768]{0}', space=vmem, size = 0x8000, scoped, tag = 'input window, operand 3, single buffered']
    #allocation3 [shape = 's32[1]{0}', space=sflag, size = 0x4, scoped, tag = 'scoped memory for nlp_model_forward.7']
    #allocation4 [shape = 's32[1]{0}', space=sflag, size = 0x4, scoped, tag = 'scoped memory for nlp_model_forward.7']
    #allocation5 [shape = 'u8[1024]{0}', space=vmem, size = 0x400, scoped, tag = 'output window, operand 0, single buffered']
    %13 = vsyncpa [#allocation3], 0
    %14 = vsyncpa [#allocation4], 0
    // Predicated region
    $region2: #{nlp_model_forward.7} parent=1 // pred_check
      _
    $region3: #{nlp_model_forward.7} parent=1 // pred_check_branch
      %16 = sbr.rel (0) target = $region5
    $region4: #{nlp_model_forward.7} parent=1 // pred_region
      _
    $region5: #{nlp_model_forward.7} parent=1 // pred_fallthru
      _
    // Predicated region
    $region6: #{nlp_model_forward.7} parent=1 // pred_check
      _
    $region7: #{nlp_model_forward.7} parent=1 // pred_check_branch
      %18 = sbr.rel (0) target = $region9
    $region8: #{nlp_model_forward.7} parent=1 // pred_region
      _
    $region9: #{nlp_model_forward.7} parent=1 // pred_fallthru
      _
    // Predicated region
    $region10: #{nlp_model_forward.7} parent=1 // pred_check
      _
    $region11: #{nlp_model_forward.7} parent=1 // pred_check_branch
      %20 = sbr.rel (0) target = $region13
    $region12: #{nlp_model_forward.7} parent=1 // pred_region
      _
    $region13: #{nlp_model_forward.7} parent=1 // pred_fallthru
      _
    // Predicated region
    $region14: #{nlp_model_forward.7} parent=1 // pred_check
      _
    $region15: #{nlp_model_forward.7} parent=1 // pred_check_branch
      %22 = sbr.rel (0) target = $region17
    $region16: #{nlp_model_forward.7} parent=1 // pred_region
      %24 = vsyncadd [#allocation3], 0
      %s25 = sshll.u32 %s3, 4
      %s26 = int_to_ptr.hbm [resolvable:$true] %s25
      %s27 = sshll.u32 [#allocation2], 4
      %s28 = int_to_ptr.vmem [resolvable:$true] %s27
      %33 = dma.hbm_to_vmem [thread:$0]  %s26, 1024, %s28, [#allocation3], 64, 64, 4
    $region17: #{nlp_model_forward.7} parent=1 // pred_fallthru
      _
    // Predicated region
    $region18: #{nlp_model_forward.7} parent=1 // pred_check
      _
    $region19: #{nlp_model_forward.7} parent=1 // pred_check_branch
      %35 = sbr.rel (0) target = $region21
    $region20: #{nlp_model_forward.7} parent=1 // pred_region
      _
    $region21: #{nlp_model_forward.7} parent=1 // pred_fallthru
      _
    // Predicated region
    $region22: #{nlp_model_forward.7} parent=1 // pred_check
      _
    $region23: #{nlp_model_forward.7} parent=1 // pred_check_branch
      %37 = sbr.rel (0) target = $region25
    $region24: #{nlp_model_forward.7} parent=1 // pred_region
      _
    $region25: #{nlp_model_forward.7} parent=1 // pred_fallthru
      _
    // Predicated region
    $region26: #{nlp_model_forward.7} parent=1 // pred_check
      _
    $region27: #{nlp_model_forward.7} parent=1 // pred_check_branch
      %39 = sbr.rel (0) target = $region29
    $region28: #{nlp_model_forward.7} parent=1 // pred_region
      %41 = dma.done [#allocation3], 1024
    $region29: #{nlp_model_forward.7} parent=1 // pred_fallthru
      _
    %v42 = vld [vmem:[%s0] sm:$0x3]
    %v43 = vpack.c.bf16 %v42, %v42
    %v44 = vld [vmem:[%s1] sm:$0xf]
    %v45 = vld [vmem:[%s1 + $0x4] sm:$0xf]
    %v46 = vld [vmem:[%s1 + $0x8] sm:$0xf]
    %v47 = vld [vmem:[%s1 + $0xc] sm:$0xf]
    %v48 = vld [vmem:[%s1 + $0x10] sm:$0xf]
    %v49 = vld [vmem:[%s1 + $0x14] sm:$0xf]
    %v50 = vld [vmem:[%s1 + $0x18] sm:$0xf]
    %v51 = vld [vmem:[%s1 + $0x1c] sm:$0xf]
    %v52 = vld [vmem:[%s1 + $0x20] sm:$0xf]
    %v53 = vld [vmem:[%s1 + $0x24] sm:$0xf]
    %v54 = vld [vmem:[%s1 + $0x28] sm:$0xf]
    %v55 = vld [vmem:[%s1 + $0x2c] sm:$0xf]
    %v56 = vld [vmem:[%s1 + $0x30] sm:$0xf]
    %v57 = vld [vmem:[%s1 + $0x34] sm:$0xf]
    %v58 = vld [vmem:[%s1 + $0x38] sm:$0xf]
    %v59 = vld [vmem:[%s1 + $0x3c] sm:$0xf]
    %v60 = vld [vmem:[%s2] sm:$0x1]
    %v62 = vperm.slane %v60, 0
    %v80 = vunpack.c.l.b16 %v44
    %v81 = vunpack.c.l.b16 %v45
    %v82 = vunpack.c.l.b16 %v46
    %v83 = vunpack.c.l.b16 %v47
    %v84 = vunpack.c.l.b16 %v48
    %v85 = vunpack.c.l.b16 %v49
    %v86 = vunpack.c.l.b16 %v50
    %v87 = vunpack.c.l.b16 %v51
    %v88 = vunpack.c.l.b16 %v52
    %v89 = vunpack.c.l.b16 %v53
    %v90 = vunpack.c.l.b16 %v54
    %v91 = vunpack.c.l.b16 %v55
    %v92 = vunpack.c.l.b16 %v56
    %v93 = vunpack.c.l.b16 %v57
    %v94 = vunpack.c.l.b16 %v58
    %v95 = vunpack.c.l.b16 %v59
    %v96 = vpack.c.b16 %v81, %v80
    %v97 = vpack.c.b16 %v83, %v82
    %v98 = vpack.c.b16 %v85, %v84
    %v99 = vpack.c.b16 %v87, %v86
    %v100 = vpack.c.b16 %v89, %v88
    %v101 = vpack.c.b16 %v91, %v90
    %v102 = vpack.c.b16 %v93, %v92
    %v103 = vpack.c.b16 %v95, %v94
    %112 = vmatpush.bf16.msra.mxu0 %v103
    %113 = vmatpush.bf16.msra.mxu0 %v102
    %114 = vmatpush.bf16.msra.mxu0 %v101
    %115 = vmatpush.bf16.msra.mxu0 %v100
    %116 = vmatpush.bf16.msra.mxu0 %v99
    %117 = vmatpush.bf16.msra.mxu0 %v98
    %118 = vmatpush.bf16.msra.mxu0 %v97
    %119 = vmatpush.bf16.msra.mxu0 %v96
    %120 = vmatmul.bf16.gmra.mxu0 %v43
    %v121 = vpop.f32.mrf.mxu0
    %v122 = vadd.f32 %v62, %v121
    %v123 = vpop.f32.mrf.mxu0
    %124 = vdwg.mxu0
    %v125 = vmul.f32 %v122, %v122
    %v126 = vmul.f32 %v122, %v125
    %v127 = vmul.f32 %v126, 0.044715
    %v128 = vadd.f32 %v122, %v127
    %v129 = vmul.f32 %v128, 0.7978846
    %v130 = vtanh.pop %v129
    %v131 = vadd.f32 %v130, 1.0
    %v132 = vmul.f32 %v131, 0.5
    %v133 = vmul.f32 %v122, %v132
    %v134 = vpack.c.bf16 %v133, %v133
    %v135 = vld [vmem:[#allocation2] sm:$0xf]
    %v136 = vld [vmem:[#allocation2 + $0x4] sm:$0xf]
    %v137 = vld [vmem:[#allocation2 + $0x8] sm:$0xf]
    %v138 = vld [vmem:[#allocation2 + $0xc] sm:$0xf]
    %v139 = vld [vmem:[#allocation2 + $0x10] sm:$0xf]
    %v140 = vld [vmem:[#allocation2 + $0x14] sm:$0xf]
    %v141 = vld [vmem:[#allocation2 + $0x18] sm:$0xf]
    %v142 = vld [vmem:[#allocation2 + $0x1c] sm:$0xf]
    %v143 = vld [vmem:[#allocation2 + $0x20] sm:$0xf]
    %v144 = vld [vmem:[#allocation2 + $0x24] sm:$0xf]
    %v145 = vld [vmem:[#allocation2 + $0x28] sm:$0xf]
    %v146 = vld [vmem:[#allocation2 + $0x2c] sm:$0xf]
    %v147 = vld [vmem:[#allocation2 + $0x30] sm:$0xf]
    %v148 = vld [vmem:[#allocation2 + $0x34] sm:$0xf]
    %v149 = vld [vmem:[#allocation2 + $0x38] sm:$0xf]
    %v150 = vld [vmem:[#allocation2 + $0x3c] sm:$0xf]
    %v151 = vld [vmem:[%s4] sm:$0x1]
    %v153 = vperm.slane %v151, 0
    %v171 = vunpack.c.l.b16 %v135
    %v172 = vunpack.c.l.b16 %v136
    %v173 = vunpack.c.l.b16 %v137
    %v174 = vunpack.c.l.b16 %v138
    %v175 = vunpack.c.l.b16 %v139
    %v176 = vunpack.c.l.b16 %v140
    %v177 = vunpack.c.l.b16 %v141
    %v178 = vunpack.c.l.b16 %v142
    %v179 = vunpack.c.l.b16 %v143
    %v180 = vunpack.c.l.b16 %v144
    %v181 = vunpack.c.l.b16 %v145
    %v182 = vunpack.c.l.b16 %v146
    %v183 = vunpack.c.l.b16 %v147
    %v184 = vunpack.c.l.b16 %v148
    %v185 = vunpack.c.l.b16 %v149
    %v186 = vunpack.c.l.b16 %v150
    %v187 = vpack.c.b16 %v172, %v171
    %v188 = vpack.c.b16 %v174, %v173
    %v189 = vpack.c.b16 %v176, %v175
    %v190 = vpack.c.b16 %v178, %v177
    %v191 = vpack.c.b16 %v180, %v179
    %v192 = vpack.c.b16 %v182, %v181
    %v193 = vpack.c.b16 %v184, %v183
    %v194 = vpack.c.b16 %v186, %v185
    %203 = vmatpush.bf16.msra.mxu0 %v194
    %204 = vmatpush.bf16.msra.mxu0 %v193
    %205 = vmatpush.bf16.msra.mxu0 %v192
    %206 = vmatpush.bf16.msra.mxu0 %v191
    %207 = vmatpush.bf16.msra.mxu0 %v190
    %208 = vmatpush.bf16.msra.mxu0 %v189
    %209 = vmatpush.bf16.msra.mxu0 %v188
    %210 = vmatpush.bf16.msra.mxu0 %v187
    %211 = vmatmul.bf16.gmra.mxu0 %v134
    %v212 = vpop.f32.mrf.mxu0
    %v213 = vadd.f32 %v153, %v212
    %v214 = vpop.f32.mrf.mxu0
    %215 = vdwg.mxu0
    %vm216 = vcmask 1041408
    %v217 = vsel %vm216, %v213, -inf
    %218 = vmax.xlane.f32.xlu0 %v217
    %v219 = vpop.xlane.xlu0 %218
    %v220 = vsub.f32 %v213, %v219
    %v221 = vmul.f32 %v220, 1.442695
    %v222 = vpow.pop %v221
    %v223 = vsel %vm216, %v222, 0.0
    %224 = vadd.xlane.f32.xlu0 %v223
    %v225 = vpop.xlane.xlu0 %224
    %v226 = vrcp.pop %v225
    %v227 = vmul.f32 %v225, %v226
    %v228 = vsub.f32 1.0, %v227
    %v229 = vmul.f32 %v226, %v228
    %v230 = vadd.f32 %v226, %v229
    %vm231 = vweird.f32 %v225
    %vm232 = vweird.f32 %v226
    %vm233 = vmor %vm231, %vm232
    %v234 = vsel %vm233, %v226, %v230
    %v235 = vand.u32 2147483647, %v225
    %vm236 = vcmp.eq.f32.partialorder %v235, 8.507059e+37
    %v237 = vand.u32 %v225, 2147483648
    %v238 = vor.u32 1.1754944e-38, %v237
    %v239 = vsel %vm236, %v238, %v234
    %v240 = vmul.f32 %v222, %v239
    %241 = vst [vmem:[#allocation5] sm:$0x3] %v240
    %v242 = vlog2.pop %v225
    %v243 = vmul.f32 %v242, 0.6931472
    %v244 = vsub.f32 %v220, %v243
    %v245 = vld [vmem:[%s5] sm:$0x3]
    %v246 = vmul.f32 %v245, %v244
    %v247 = vsel %vm216, %v246, 0.0
    %248 = vadd.xlane.f32.xlu0 %v247
    %v249 = vpop.xlane.xlu0 %248
    %v250 = vsub.f32 0.0, %v249
    %251 = vst [vmem:[%s7] sm:$0x3] %v250
    // Predicated region
    $region30: #{nlp_model_forward.7} parent=1 // pred_check
      _
    $region31: #{nlp_model_forward.7} parent=1 // pred_check_branch
      %253 = sbr.rel (0) target = $region33
    $region32: #{nlp_model_forward.7} parent=1 // pred_region
      %255 = vsyncadd [#allocation4], 0
      %s257 = sshll.u32 [#allocation5], 4
      %s258 = int_to_ptr.vmem [resolvable:$true] %s257
      %s259 = sshll.u32 %s6, 4
      %s260 = int_to_ptr.hbm [resolvable:$true] %s259
      %262 = dma.vmem_to_hbm [thread:$0]  %s258, 32, %s260, [#allocation4]
    $region33: #{nlp_model_forward.7} parent=1 // pred_fallthru
      _
    // Predicated region
    $region34: #{nlp_model_forward.7} parent=1 // pred_check
      _
    $region35: #{nlp_model_forward.7} parent=1 // pred_check_branch
      %264 = sbr.rel (0) target = $region37
    $region36: #{nlp_model_forward.7} parent=1 // pred_region
      _
    $region37: #{nlp_model_forward.7} parent=1 // pred_fallthru
      _
    // Predicated region
    $region38: #{nlp_model_forward.7} parent=1 // pred_check
      _
    $region39: #{nlp_model_forward.7} parent=1 // pred_check_branch
      %266 = sbr.rel (0) target = $region41
    $region40: #{nlp_model_forward.7} parent=1 // pred_region
      %268 = dma.done [#allocation4], 32
    $region41: #{nlp_model_forward.7} parent=1 // pred_fallthru
      _
    // Predicated region
    $region42: #{nlp_model_forward.7} parent=1 // pred_check
      _
    $region43: #{nlp_model_forward.7} parent=1 // pred_check_branch
      %270 = sbr.rel (0) target = $region45
    $region44: #{nlp_model_forward.7} parent=1 // pred_region
      _
    $region45: #{nlp_model_forward.7} parent=1 // pred_fallthru
      _
    %271 = vsyncpa [#allocation3], 1
    %272 = vsyncpa [#allocation4], 1

// kernel: nlp_model_forward.6
$region0: #{nlp_model_forward.6}
  #allocation0 [shape = 'u32[]', space=smem, size = 0x4, offset = 0x4, fixed_abs, tag = 'smem constant byte address 0x4 - core index']
  #allocation1 [shape = 'u32[72,128]{1,0:T(1,128)}', space=vmem, size = 0x9000, scoped, tag = 'internal scratch']
  %s0 = inlined_call_operand.vmem [shape: f32[2,8,128], index: 0, kind: input, shape index: {}]
  %s1 = inlined_call_operand.vmem [shape: f32[2,1,8], index: 1, kind: input, shape index: {}]
  %s2 = inlined_call_operand.hbm [shape: bf16[128,384], index: 2, kind: input, shape index: {}]
  %s3 = inlined_call_operand.vmem [shape: f32[1,384], index: 3, kind: input, shape index: {}]
  %s4 = inlined_call_operand.hbm [shape: bf16[128,128], index: 4, kind: input, shape index: {}]
  %s5 = inlined_call_operand.vmem [shape: f32[1,128], index: 5, kind: input, shape index: {}, may-alias: {5,7,11,13}]
  %s6 = inlined_call_operand.vmem [shape: f32[1,128], index: 6, kind: input, shape index: {}, may-alias: {6,12}]
  %s7 = inlined_call_operand.vmem [shape: f32[1,128], index: 7, kind: input, shape index: {}, may-alias: {5,7,11,13}]
  %s8 = inlined_call_operand.vmem [shape: bf16[128,256], index: 8, kind: input, shape index: {}]
  %s9 = inlined_call_operand.vmem [shape: f32[1,256], index: 9, kind: input, shape index: {}]
  %s10 = inlined_call_operand.hbm [shape: bf16[256,128], index: 10, kind: input, shape index: {}]
  %s11 = inlined_call_operand.vmem [shape: f32[1,128], index: 11, kind: input, shape index: {}, may-alias: {5,7,11,13}]
  %s12 = inlined_call_operand.vmem [shape: f32[1,128], index: 12, kind: input, shape index: {}, may-alias: {6,12}]
  %s13 = inlined_call_operand.vmem [shape: f32[1,128], index: 13, kind: input, shape index: {}, may-alias: {5,7,11,13}]
  %s14 = inlined_call_operand.vmem [shape: f32[2,8,128], index: 14, kind: output, shape index: {}]
  %s15 = sld [smem:[#allocation0]]
  $region101: #{nlp_model_forward.6} parent=0
    _
  %s17 = ssub.s32 1, %s15
  %s18 = scalar_select 0, %s17, %s15
  $region1: #{nlp_model_forward.6} parent=0
    #allocation2 [shape = 'u8[98304]{0}', space=vmem, size = 0x18000, scoped, tag = 'input window, operand 2, single buffered']
    #allocation3 [shape = 's32[2]{0}', space=sflag, size = 0x8, scoped, tag = 'scoped memory for nlp_model_forward.6']
    #allocation4 [shape = 'u8[32768]{0}', space=vmem, size = 0x8000, scoped, tag = 'input window, operand 4, single buffered']
    #allocation5 [shape = 's32[1]{0}', space=sflag, size = 0x4, scoped, tag = 'scoped memory for nlp_model_forward.6']
    #allocation6 [shape = 'u8[65536]{0}', space=vmem, size = 0x10000, scoped, tag = 'input window, operand 10, single buffered']
    %19 = vsyncpa [#allocation3], 0
    %20 = vsyncpa [#allocation5], 0
    loop: start=0, step=1, limit=4
    $region2: #{nlp_model_forward.6} parent=1 // loop_pre_header
      _
    $region3: #{nlp_model_forward.6} parent=1 // loop_header
      %s22 = sphi 0, %s26
      %p23 = scmp.ge.s32.totalorder %s22, 4
      %s32 = sphi 0, %s34
      %s35 = sphi 0, %s32
      %s36 = sphi 0, %s35
      %s52 = sphi 0, %s36
      %s58 = sphi 0, %s60
      %s61 = sphi 0, %s58
      %s62 = sphi 0, %s61
      %s78 = sphi 0, %s62
      %s82 = sphi 0, %s82
      %s84 = sphi 0, %s82
      %s85 = sphi 0, %s84
      %s99 = sphi 0, %s85
      %s103 = sphi 0, %s103
      %s105 = sphi 0, %s103
      %s106 = sphi 0, %s105
      %s120 = sphi 0, %s106
      %s124 = sphi 0, %s124
      %s126 = sphi 0, %s124
      %s127 = sphi 0, %s126
      %s141 = sphi 0, %s127
      %s145 = sphi 0, %s145
      %s147 = sphi 0, %s145
      %s148 = sphi 0, %s147
      %s162 = sphi 0, %s148
      %s166 = sphi 0, %s166
      %s168 = sphi 0, %s166
      %s169 = sphi 0, %s168
      %s183 = sphi 0, %s169
      %s187 = sphi 0, %s187
      %s189 = sphi 0, %s187
      %s190 = sphi 0, %s189
      %s204 = sphi 0, %s190
      %s208 = sphi 0, %s208
      %s210 = sphi 0, %s208
      %s211 = sphi 0, %s210
      %s225 = sphi 0, %s211
      %s229 = sphi 0, %s229
      %s231 = sphi 0, %s229
      %s232 = sphi 0, %s231
      %s246 = sphi 0, %s232
      %s250 = sphi 0, %s250
      %s252 = sphi 0, %s250
      %s253 = sphi 0, %s252
      %s267 = sphi 0, %s253
      %s271 = sphi 0, %s271
      %s273 = sphi 0, %s271
      %s274 = sphi 0, %s273
      %s288 = sphi 0, %s274
      %s292 = sphi 0, %s292
      %s294 = sphi 0, %s292
      %s295 = sphi 0, %s294
      %s309 = sphi 0, %s295
      %s313 = sphi 0, %s313
      %s315 = sphi 0, %s313
      %s316 = sphi 0, %s315
      %s330 = sphi 0, %s316
      %s336 = sphi 0, %s338
      %s339 = sphi 0, %s336
      %s340 = sphi 0, %s339
      %s356 = sphi 0, %s340
    $region4: #{nlp_model_forward.6} parent=1 // loop_header_branch
      %25 = sbr.rel (%p23) target = $region8
    $region5: #{nlp_model_forward.6} parent=1 // loop_body
      %s27 = ssub.s32 %s22, 1
      %s28 = ssub.s32 %s22, 2
      %s29 = sadd.s32 %s22, 1
      %s30 = ssub.s32 %s22, %s29
      %p31 = scmp.eq.s32.totalorder %s30, 0
      %s33 = sadd.s32 %s32, 1
      %s34 = scalar_select %p31, %s32, %s33
      %p37 = pneg %p31
      %p38 = scmp.eq.s32.totalorder %s22, 1
      %p39 = por %p37, %p38
      %p40 = scmp.ne.s32.totalorder %s32, %s35
      %p41 = scmp.eq.s32.totalorder %s22, 0
      %p42 = por %p40, %p41
      %p43 = scmp.ne.s32.totalorder %s32, %s35
      %p44 = scmp.eq.s32.totalorder %s27, 1
      %p45 = por %p43, %p44
      %p46 = scmp.ne.s32.totalorder %s35, %s36
      %p47 = scmp.eq.s32.totalorder %s27, 0
      %p48 = por %p46, %p47
      %p49 = scmp.ne.s32.totalorder %s35, %s36
      %p50 = scmp.eq.s32.totalorder %s28, 1
      %p51 = por %p49, %p50
      %p53 = scmp.ne.s32.totalorder %s36, %s52
      %p54 = scmp.eq.s32.totalorder %s28, 0
      %p55 = por %p53, %p54
      %s56 = ssub.s32 %s22, %s29
      %p57 = scmp.eq.s32.totalorder %s56, 0
      %s59 = sadd.s32 %s58, 1
      %s60 = scalar_select %p57, %s58, %s59
      %p63 = pneg %p57
      %p64 = scmp.eq.s32.totalorder %s22, 1
      %p65 = por %p63, %p64
      %p66 = scmp.ne.s32.totalorder %s58, %s61
      %p67 = scmp.eq.s32.totalorder %s22, 0
      %p68 = por %p66, %p67
      %p69 = scmp.ne.s32.totalorder %s58, %s61
      %p70 = scmp.eq.s32.totalorder %s27, 1
      %p71 = por %p69, %p70
      %p72 = scmp.ne.s32.totalorder %s61, %s62
      %p73 = scmp.eq.s32.totalorder %s27, 0
      %p74 = por %p72, %p73
      %p75 = scmp.ne.s32.totalorder %s61, %s62
      %p76 = scmp.eq.s32.totalorder %s28, 1
      %p77 = por %p75, %p76
      %p79 = scmp.ne.s32.totalorder %s62, %s78
      %p80 = scmp.eq.s32.totalorder %s28, 0
      %p81 = por %p79, %p80
      %s83 = sadd.s32 %s82, 1
      %p86 = scmp.eq.s32.totalorder %s22, 1
      %p87 = scmp.ne.s32.totalorder %s82, %s84
      %p88 = scmp.eq.s32.totalorder %s22, 0
      %p89 = por %p87, %p88
      %p90 = scmp.ne.s32.totalorder %s82, %s84
      %p91 = scmp.eq.s32.totalorder %s27, 1
      %p92 = por %p90, %p91
      %p93 = scmp.ne.s32.totalorder %s84, %s85
      %p94 = scmp.eq.s32.totalorder %s27, 0
      %p95 = por %p93, %p94
      %p96 = scmp.ne.s32.totalorder %s84, %s85
      %p97 = scmp.eq.s32.totalorder %s28, 1
      %p98 = por %p96, %p97
      %p100 = scmp.ne.s32.totalorder %s85, %s99
      %p101 = scmp.eq.s32.totalorder %s28, 0
      %p102 = por %p100, %p101
      %s104 = sadd.s32 %s103, 1
      %p107 = scmp.eq.s32.totalorder %s22, 1
      %p108 = scmp.ne.s32.totalorder %s103, %s105
      %p109 = scmp.eq.s32.totalorder %s22, 0
      %p110 = por %p108, %p109
      %p111 = scmp.ne.s32.totalorder %s103, %s105
      %p112 = scmp.eq.s32.totalorder %s27, 1
      %p113 = por %p111, %p112
      %p114 = scmp.ne.s32.totalorder %s105, %s106
      %p115 = scmp.eq.s32.totalorder %s27, 0
      %p116 = por %p114, %p115
      %p117 = scmp.ne.s32.totalorder %s105, %s106
      %p118 = scmp.eq.s32.totalorder %s28, 1
      %p119 = por %p117, %p118
      %p121 = scmp.ne.s32.totalorder %s106, %s120
      %p122 = scmp.eq.s32.totalorder %s28, 0
      %p123 = por %p121, %p122
      %s125 = sadd.s32 %s124, 1
      %p128 = scmp.eq.s32.totalorder %s22, 1
      %p129 = scmp.ne.s32.totalorder %s124, %s126
      %p130 = scmp.eq.s32.totalorder %s22, 0
      %p131 = por %p129, %p130
      %p132 = scmp.ne.s32.totalorder %s124, %s126
      %p133 = scmp.eq.s32.totalorder %s27, 1
      %p134 = por %p132, %p133
      %p135 = scmp.ne.s32.totalorder %s126, %s127
      %p136 = scmp.eq.s32.totalorder %s27, 0
      %p137 = por %p135, %p136
      %p138 = scmp.ne.s32.totalorder %s126, %s127
      %p139 = scmp.eq.s32.totalorder %s28, 1
      %p140 = por %p138, %p139
      %p142 = scmp.ne.s32.totalorder %s127, %s141
      %p143 = scmp.eq.s32.totalorder %s28, 0
      %p144 = por %p142, %p143
      %s146 = sadd.s32 %s145, 1
      %p149 = scmp.eq.s32.totalorder %s22, 1
      %p150 = scmp.ne.s32.totalorder %s145, %s147
      %p151 = scmp.eq.s32.totalorder %s22, 0
      %p152 = por %p150, %p151
      %p153 = scmp.ne.s32.totalorder %s145, %s147
      %p154 = scmp.eq.s32.totalorder %s27, 1
      %p155 = por %p153, %p154
      %p156 = scmp.ne.s32.totalorder %s147, %s148
      %p157 = scmp.eq.s32.totalorder %s27, 0
      %p158 = por %p156, %p157
      %p159 = scmp.ne.s32.totalorder %s147, %s148
      %p160 = scmp.eq.s32.totalorder %s28, 1
      %p161 = por %p159, %p160
      %p163 = scmp.ne.s32.totalorder %s148, %s162
      %p164 = scmp.eq.s32.totalorder %s28, 0
      %p165 = por %p163, %p164
      %s167 = sadd.s32 %s166, 1
      %p170 = scmp.eq.s32.totalorder %s22, 1
      %p171 = scmp.ne.s32.totalorder %s166, %s168
      %p172 = scmp.eq.s32.totalorder %s22, 0
      %p173 = por %p171, %p172
      %p174 = scmp.ne.s32.totalorder %s166, %s168
      %p175 = scmp.eq.s32.totalorder %s27, 1
      %p176 = por %p174, %p175
      %p177 = scmp.ne.s32.totalorder %s168, %s169
      %p178 = scmp.eq.s32.totalorder %s27, 0
      %p179 = por %p177, %p178
      %p180 = scmp.ne.s32.totalorder %s168, %s169
      %p181 = scmp.eq.s32.totalorder %s28, 1
      %p182 = por %p180, %p181
      %p184 = scmp.ne.s32.totalorder %s169, %s183
      %p185 = scmp.eq.s32.totalorder %s28, 0
      %p186 = por %p184, %p185
      %s188 = sadd.s32 %s187, 1
      %p191 = scmp.eq.s32.totalorder %s22, 1
      %p192 = scmp.ne.s32.totalorder %s187, %s189
      %p193 = scmp.eq.s32.totalorder %s22, 0
      %p194 = por %p192, %p193
      %p195 = scmp.ne.s32.totalorder %s187, %s189
      %p196 = scmp.eq.s32.totalorder %s27, 1
      %p197 = por %p195, %p196
      %p198 = scmp.ne.s32.totalorder %s189, %s190
      %p199 = scmp.eq.s32.totalorder %s27, 0
      %p200 = por %p198, %p199
      %p201 = scmp.ne.s32.totalorder %s189, %s190
      %p202 = scmp.eq.s32.totalorder %s28, 1
      %p203 = por %p201, %p202
      %p205 = scmp.ne.s32.totalorder %s190, %s204
      %p206 = scmp.eq.s32.totalorder %s28, 0
      %p207 = por %p205, %p206
      %s209 = sadd.s32 %s208, 1
      %p212 = scmp.eq.s32.totalorder %s22, 1
      %p213 = scmp.ne.s32.totalorder %s208, %s210
      %p214 = scmp.eq.s32.totalorder %s22, 0
      %p215 = por %p213, %p214
      %p216 = scmp.ne.s32.totalorder %s208, %s210
      %p217 = scmp.eq.s32.totalorder %s27, 1
      %p218 = por %p216, %p217
      %p219 = scmp.ne.s32.totalorder %s210, %s211
      %p220 = scmp.eq.s32.totalorder %s27, 0
      %p221 = por %p219, %p220
      %p222 = scmp.ne.s32.totalorder %s210, %s211
      %p223 = scmp.eq.s32.totalorder %s28, 1
      %p224 = por %p222, %p223
      %p226 = scmp.ne.s32.totalorder %s211, %s225
      %p227 = scmp.eq.s32.totalorder %s28, 0
      %p228 = por %p226, %p227
      %s230 = sadd.s32 %s229, 1
      %p233 = scmp.eq.s32.totalorder %s22, 1
      %p234 = scmp.ne.s32.totalorder %s229, %s231
      %p235 = scmp.eq.s32.totalorder %s22, 0
      %p236 = por %p234, %p235
      %p237 = scmp.ne.s32.totalorder %s229, %s231
      %p238 = scmp.eq.s32.totalorder %s27, 1
      %p239 = por %p237, %p238
      %p240 = scmp.ne.s32.totalorder %s231, %s232
      %p241 = scmp.eq.s32.totalorder %s27, 0
      %p242 = por %p240, %p241
      %p243 = scmp.ne.s32.totalorder %s231, %s232
      %p244 = scmp.eq.s32.totalorder %s28, 1
      %p245 = por %p243, %p244
      %p247 = scmp.ne.s32.totalorder %s232, %s246
      %p248 = scmp.eq.s32.totalorder %s28, 0
      %p249 = por %p247, %p248
      %s251 = sadd.s32 %s250, 1
      %p254 = scmp.eq.s32.totalorder %s22, 1
      %p255 = scmp.ne.s32.totalorder %s250, %s252
      %p256 = scmp.eq.s32.totalorder %s22, 0
      %p257 = por %p255, %p256
      %p258 = scmp.ne.s32.totalorder %s250, %s252
      %p259 = scmp.eq.s32.totalorder %s27, 1
      %p260 = por %p258, %p259
      %p261 = scmp.ne.s32.totalorder %s252, %s253
      %p262 = scmp.eq.s32.totalorder %s27, 0
      %p263 = por %p261, %p262
      %p264 = scmp.ne.s32.totalorder %s252, %s253
      %p265 = scmp.eq.s32.totalorder %s28, 1
      %p266 = por %p264, %p265
      %p268 = scmp.ne.s32.totalorder %s253, %s267
      %p269 = scmp.eq.s32.totalorder %s28, 0
      %p270 = por %p268, %p269
      %s272 = sadd.s32 %s271, 1
      %p275 = scmp.eq.s32.totalorder %s22, 1
      %p276 = scmp.ne.s32.totalorder %s271, %s273
      %p277 = scmp.eq.s32.totalorder %s22, 0
      %p278 = por %p276, %p277
      %p279 = scmp.ne.s32.totalorder %s271, %s273
      %p280 = scmp.eq.s32.totalorder %s27, 1
      %p281 = por %p279, %p280
      %p282 = scmp.ne.s32.totalorder %s273, %s274
      %p283 = scmp.eq.s32.totalorder %s27, 0
      %p284 = por %p282, %p283
      %p285 = scmp.ne.s32.totalorder %s273, %s274
      %p286 = scmp.eq.s32.totalorder %s28, 1
      %p287 = por %p285, %p286
      %p289 = scmp.ne.s32.totalorder %s274, %s288
      %p290 = scmp.eq.s32.totalorder %s28, 0
      %p291 = por %p289, %p290
      %s293 = sadd.s32 %s292, 1
      %p296 = scmp.eq.s32.totalorder %s22, 1
      %p297 = scmp.ne.s32.totalorder %s292, %s294
      %p298 = scmp.eq.s32.totalorder %s22, 0
      %p299 = por %p297, %p298
      %p300 = scmp.ne.s32.totalorder %s292, %s294
      %p301 = scmp.eq.s32.totalorder %s27, 1
      %p302 = por %p300, %p301
      %p303 = scmp.ne.s32.totalorder %s294, %s295
      %p304 = scmp.eq.s32.totalorder %s27, 0
      %p305 = por %p303, %p304
      %p306 = scmp.ne.s32.totalorder %s294, %s295
      %p307 = scmp.eq.s32.totalorder %s28, 1
      %p308 = por %p306, %p307
      %p310 = scmp.ne.s32.totalorder %s295, %s309
      %p311 = scmp.eq.s32.totalorder %s28, 0
      %p312 = por %p310, %p311
      %s314 = sadd.s32 %s313, 1
      %p317 = scmp.eq.s32.totalorder %s22, 1
      %p318 = scmp.ne.s32.totalorder %s313, %s315
      %p319 = scmp.eq.s32.totalorder %s22, 0
      %p320 = por %p318, %p319
      %p321 = scmp.ne.s32.totalorder %s313, %s315
      %p322 = scmp.eq.s32.totalorder %s27, 1
      %p323 = por %p321, %p322
      %p324 = scmp.ne.s32.totalorder %s315, %s316
      %p325 = scmp.eq.s32.totalorder %s27, 0
      %p326 = por %p324, %p325
      %p327 = scmp.ne.s32.totalorder %s315, %s316
      %p328 = scmp.eq.s32.totalorder %s28, 1
      %p329 = por %p327, %p328
      %p331 = scmp.ne.s32.totalorder %s316, %s330
      %p332 = scmp.eq.s32.totalorder %s28, 0
      %p333 = por %p331, %p332
      %s334 = ssub.s32 %s22, %s29
      %p335 = scmp.eq.s32.totalorder %s334, 0
      %s337 = sadd.s32 %s336, 1
      %s338 = scalar_select %p335, %s336, %s337
      %p341 = pneg %p335
      %p342 = scmp.eq.s32.totalorder %s22, 1
      %p343 = por %p341, %p342
      %p344 = scmp.ne.s32.totalorder %s336, %s339
      %p345 = scmp.eq.s32.totalorder %s22, 0
      %p346 = por %p344, %p345
      %p347 = scmp.ne.s32.totalorder %s336, %s339
      %p348 = scmp.eq.s32.totalorder %s27, 1
      %p349 = por %p347, %p348
      %p350 = scmp.ne.s32.totalorder %s339, %s340
      %p351 = scmp.eq.s32.totalorder %s27, 0
      %p352 = por %p350, %p351
      %p353 = scmp.ne.s32.totalorder %s339, %s340
      %p354 = scmp.eq.s32.totalorder %s28, 1
      %p355 = por %p353, %p354
      %p357 = scmp.ne.s32.totalorder %s340, %s356
      %p358 = scmp.eq.s32.totalorder %s28, 0
      %p359 = por %p357, %p358
      %p360 = scmp.le.s32.totalorder 1, %s22
      %p361 = scmp.lt.s32.totalorder %s22, 3
      %p362 = pnand %p360, %p361
      %p363 = pneg %p362
      // Predicated region
      $region9: #{nlp_model_forward.6} parent=5 // pred_check
        _
      $region10: #{nlp_model_forward.6} parent=5 // pred_check_branch
        %365 = sbr.rel (%p362) target = $region12
      $region11: #{nlp_model_forward.6} parent=5 // pred_region
        %s366 = ssub.s32 %s22, 1
        // Predicated region
        $region13: #{nlp_model_forward.6} parent=11 // pred_check
          %p367 = pneg %p95
        $region14: #{nlp_model_forward.6} parent=11 // pred_check_branch
          %369 = sbr.rel (%p367) target = $region16
        $region15: #{nlp_model_forward.6} parent=11 // pred_region
          %371 = vsyncadd [#allocation3], 0
          %s372 = sshll.u32 %s2, 4
          %s373 = int_to_ptr.hbm [resolvable:$true] %s372
          %s374 = sshll.u32 [#allocation2], 4
          %s375 = int_to_ptr.vmem [resolvable:$true] %s374
          %380 = dma.hbm_to_vmem [thread:$0]  %s373, 3072, %s375, [#allocation3], 192, 192, 12
        $region16: #{nlp_model_forward.6} parent=11 // pred_fallthru
          _
        // Predicated region
        $region17: #{nlp_model_forward.6} parent=11 // pred_check
          %p381 = pneg %p116
        $region18: #{nlp_model_forward.6} parent=11 // pred_check_branch
          %383 = sbr.rel (%p381) target = $region20
        $region19: #{nlp_model_forward.6} parent=11 // pred_region
          _
        $region20: #{nlp_model_forward.6} parent=11 // pred_fallthru
          _
        // Predicated region
        $region21: #{nlp_model_forward.6} parent=11 // pred_check
          %p384 = pneg %p137
        $region22: #{nlp_model_forward.6} parent=11 // pred_check_branch
          %386 = sbr.rel (%p384) target = $region24
        $region23: #{nlp_model_forward.6} parent=11 // pred_region
          %388 = vsyncadd [#allocation5], 0
          %s389 = sshll.u32 %s4, 4
          %s390 = int_to_ptr.hbm [resolvable:$true] %s389
          %s391 = sshll.u32 [#allocation4], 4
          %s392 = int_to_ptr.vmem [resolvable:$true] %s391
          %397 = dma.hbm_to_vmem [thread:$0]  %s390, 1024, %s392, [#allocation5], 64, 64, 4
        $region24: #{nlp_model_forward.6} parent=11 // pred_fallthru
          _
        // Predicated region
        $region25: #{nlp_model_forward.6} parent=11 // pred_check
          %p398 = pneg %p158
        $region26: #{nlp_model_forward.6} parent=11 // pred_check_branch
          %400 = sbr.rel (%p398) target = $region28
        $region27: #{nlp_model_forward.6} parent=11 // pred_region
          _
        $region28: #{nlp_model_forward.6} parent=11 // pred_fallthru
          _
        // Predicated region
        $region29: #{nlp_model_forward.6} parent=11 // pred_check
          %p401 = pneg %p179
        $region30: #{nlp_model_forward.6} parent=11 // pred_check_branch
          %403 = sbr.rel (%p401) target = $region32
        $region31: #{nlp_model_forward.6} parent=11 // pred_region
          _
        $region32: #{nlp_model_forward.6} parent=11 // pred_fallthru
          _
        // Predicated region
        $region33: #{nlp_model_forward.6} parent=11 // pred_check
          %p404 = pneg %p200
        $region34: #{nlp_model_forward.6} parent=11 // pred_check_branch
          %406 = sbr.rel (%p404) target = $region36
        $region35: #{nlp_model_forward.6} parent=11 // pred_region
          _
        $region36: #{nlp_model_forward.6} parent=11 // pred_fallthru
          _
        // Predicated region
        $region37: #{nlp_model_forward.6} parent=11 // pred_check
          %p407 = pneg %p221
        $region38: #{nlp_model_forward.6} parent=11 // pred_check_branch
          %409 = sbr.rel (%p407) target = $region40
        $region39: #{nlp_model_forward.6} parent=11 // pred_region
          _
        $region40: #{nlp_model_forward.6} parent=11 // pred_fallthru
          _
        // Predicated region
        $region41: #{nlp_model_forward.6} parent=11 // pred_check
          %p410 = pneg %p242
        $region42: #{nlp_model_forward.6} parent=11 // pred_check_branch
          %412 = sbr.rel (%p410) target = $region44
        $region43: #{nlp_model_forward.6} parent=11 // pred_region
          _
        $region44: #{nlp_model_forward.6} parent=11 // pred_fallthru
          _
        // Predicated region
        $region45: #{nlp_model_forward.6} parent=11 // pred_check
          %p413 = pneg %p263
        $region46: #{nlp_model_forward.6} parent=11 // pred_check_branch
          %415 = sbr.rel (%p413) target = $region48
        $region47: #{nlp_model_forward.6} parent=11 // pred_region
          %417 = vsyncadd [#allocation5], 0
          %s418 = sshll.u32 %s10, 4
          %s419 = int_to_ptr.hbm [resolvable:$true] %s418
          %s420 = sshll.u32 [#allocation6], 4
          %s421 = int_to_ptr.vmem [resolvable:$true] %s420
          %426 = dma.hbm_to_vmem [thread:$0]  %s419, 2048, %s421, [#allocation5], 64, 64, 4
        $region48: #{nlp_model_forward.6} parent=11 // pred_fallthru
          _
        // Predicated region
        $region49: #{nlp_model_forward.6} parent=11 // pred_check
          %p427 = pneg %p284
        $region50: #{nlp_model_forward.6} parent=11 // pred_check_branch
          %429 = sbr.rel (%p427) target = $region52
        $region51: #{nlp_model_forward.6} parent=11 // pred_region
          _
        $region52: #{nlp_model_forward.6} parent=11 // pred_fallthru
          _
        // Predicated region
        $region53: #{nlp_model_forward.6} parent=11 // pred_check
          %p430 = pneg %p305
        $region54: #{nlp_model_forward.6} parent=11 // pred_check_branch
          %432 = sbr.rel (%p430) target = $region56
        $region55: #{nlp_model_forward.6} parent=11 // pred_region
          _
        $region56: #{nlp_model_forward.6} parent=11 // pred_fallthru
          _
        // Predicated region
        $region57: #{nlp_model_forward.6} parent=11 // pred_check
          %p433 = pneg %p326
        $region58: #{nlp_model_forward.6} parent=11 // pred_check_branch
          %435 = sbr.rel (%p433) target = $region60
        $region59: #{nlp_model_forward.6} parent=11 // pred_region
          _
        $region60: #{nlp_model_forward.6} parent=11 // pred_fallthru
          _
      $region12: #{nlp_model_forward.6} parent=5 // pred_fallthru
        _
      %p436 = scmp.lt.s32.totalorder %s22, 2
      // Predicated region
      $region61: #{nlp_model_forward.6} parent=5 // pred_check
        %p437 = pneg %p436
      $region62: #{nlp_model_forward.6} parent=5 // pred_check_branch
        %439 = sbr.rel (%p437) target = $region64
      $region63: #{nlp_model_forward.6} parent=5 // pred_region
        // Predicated region
        $region65: #{nlp_model_forward.6} parent=63 // pred_check
          %p440 = pneg %p42
        $region66: #{nlp_model_forward.6} parent=63 // pred_check_branch
          %442 = sbr.rel (%p440) target = $region68
        $region67: #{nlp_model_forward.6} parent=63 // pred_region
          %p443 = scmp.lt.s32.totalorder %s22, 1
          %s444 = scalar_select %p443, %s22, 1
          %s445 = smul.addr %s444, 8
          %s446 = scalar_lea.vmem %s0, %s445
        $region68: #{nlp_model_forward.6} parent=63 // pred_fallthru
          _
        // Predicated region
        $region69: #{nlp_model_forward.6} parent=63 // pred_check
          %p447 = pneg %p68
        $region70: #{nlp_model_forward.6} parent=63 // pred_check_branch
          %449 = sbr.rel (%p447) target = $region72
        $region71: #{nlp_model_forward.6} parent=63 // pred_region
          %p450 = scmp.lt.s32.totalorder %s22, 1
          %s451 = scalar_select %p450, %s22, 1
          %s452 = scalar_lea.vmem %s1, %s451
        $region72: #{nlp_model_forward.6} parent=63 // pred_fallthru
          _
      $region64: #{nlp_model_forward.6} parent=5 // pred_fallthru
        _
      %p453 = scmp.le.s32.totalorder 1, %s22
      %p454 = scmp.lt.s32.totalorder %s22, 3
      %p455 = pnand %p453, %p454
      %p456 = pneg %p455
      // Predicated region
      $region73: #{nlp_model_forward.6} parent=5 // pred_check
        _
      $region74: #{nlp_model_forward.6} parent=5 // pred_check_branch
        %458 = sbr.rel (%p455) target = $region76
      $region75: #{nlp_model_forward.6} parent=5 // pred_region
        %s459 = ssub.s32 %s22, 1
        // Predicated region
        $region77: #{nlp_model_forward.6} parent=75 // pred_check
          %p460 = pneg %p95
        $region78: #{nlp_model_forward.6} parent=75 // pred_check_branch
          %462 = sbr.rel (%p460) target = $region80
        $region79: #{nlp_model_forward.6} parent=75 // pred_region
          %464 = dma.done [#allocation3], 3072
        $region80: #{nlp_model_forward.6} parent=75 // pred_fallthru
          _
        // Predicated region
        $region81: #{nlp_model_forward.6} parent=75 // pred_check
          %p465 = pneg %p137
        $region82: #{nlp_model_forward.6} parent=75 // pred_check_branch
          %467 = sbr.rel (%p465) target = $region84
        $region83: #{nlp_model_forward.6} parent=75 // pred_region
          %469 = dma.done [#allocation5], 1024
        $region84: #{nlp_model_forward.6} parent=75 // pred_fallthru
          _
        // Predicated region
        $region85: #{nlp_model_forward.6} parent=75 // pred_check
          %p470 = pneg %p263
        $region86: #{nlp_model_forward.6} parent=75 // pred_check_branch
          %472 = sbr.rel (%p470) target = $region88
        $region87: #{nlp_model_forward.6} parent=75 // pred_region
          %474 = dma.done [#allocation5], 2048
        $region88: #{nlp_model_forward.6} parent=75 // pred_fallthru
          _
        %p475 = scmp.lt.s32.totalorder %s27, 1
        %s476 = scalar_select %p475, %s27, 1
        %s477 = smul.addr %s476, 8
        %s478 = scalar_lea.vmem %s0, %s477
        %p479 = pneg %p48
        %p480 = pneg %p45
        %p481 = scmp.lt.s32.totalorder %s27, 1
        %s482 = scalar_select %p481, %s27, 1
        %s483 = scalar_lea.vmem %s1, %s482
        %p484 = pneg %p74
        %p485 = pneg %p71
        %p486 = pneg %p95
        %p487 = pneg %p92
        %p488 = pneg %p116
        %p489 = pneg %p113
        %p490 = pneg %p137
        %p491 = pneg %p134
        %p492 = pneg %p158
        %p493 = pneg %p155
        %p494 = pneg %p179
        %p495 = pneg %p176
        %p496 = pneg %p200
        %p497 = pneg %p197
        %p498 = pneg %p221
        %p499 = pneg %p218
        %p500 = pneg %p242
        %p501 = pneg %p239
        %p502 = pneg %p263
        %p503 = pneg %p260
        %p504 = pneg %p284
        %p505 = pneg %p281
        %p506 = pneg %p305
        %p507 = pneg %p302
        %p508 = pneg %p326
        %p509 = pneg %p323
        %p510 = pneg %p352
        %p511 = pneg %p349
        %p512 = scmp.lt.s32.totalorder %s27, 1
        %s513 = scalar_select %p512, %s27, 1
        %s514 = smul.addr %s513, 8
        %s515 = scalar_lea.vmem %s14, %s514
        %p516 = scmp.lt.s32.totalorder %s27, 1
        %s517 = scalar_select %p516, %s27, 1
        %s518 = smul.addr %s517, 8
        %s519 = scalar_lea.vmem %s0, %s518
        %p520 = scmp.lt.s32.totalorder %s27, 1
        %s521 = scalar_select %p520, %s27, 1
        %s522 = scalar_lea.vmem %s1, %s521
        %p523 = scmp.lt.s32.totalorder %s27, 1
        %s524 = scalar_select %p523, %s27, 1
        %s525 = smul.addr %s524, 8
        %s526 = scalar_lea.vmem %s14, %s525
        %v528 = vld [vmem:[%s519] sm:$0xff]
        %v529 = vld [vmem:[%s522] sm:$0x1]
        %v530 = vpack.c.bf16 %v528, %v528
        %v531 = vld [vmem:[#allocation2] sm:$0xff]
        %v532 = vld [vmem:[#allocation2 + $0x8] sm:$0xf]
        %v533 = vld [vmem:[#allocation2 + $0xc] sm:$0xff]
        %v534 = vld [vmem:[#allocation2 + $0x14] sm:$0xf]
        %v535 = vld [vmem:[#allocation2 + $0x18] sm:$0xff]
        %v536 = vld [vmem:[#allocation2 + $0x20] sm:$0xf]
        %v537 = vld [vmem:[#allocation2 + $0x24] sm:$0xff]
        %v538 = vld [vmem:[#allocation2 + $0x2c] sm:$0xf]
        %v539 = vld [vmem:[#allocation2 + $0x30] sm:$0xff]
        %v540 = vld [vmem:[#allocation2 + $0x38] sm:$0xf]
        %v541 = vld [vmem:[#allocation2 + $0x3c] sm:$0xff]
        %v542 = vld [vmem:[#allocation2 + $0x44] sm:$0xf]
        %v543 = vld [vmem:[#allocation2 + $0x48] sm:$0xff]
        %v544 = vld [vmem:[#allocation2 + $0x50] sm:$0xf]
        %v545 = vld [vmem:[#allocation2 + $0x54] sm:$0xff]
        %v546 = vld [vmem:[#allocation2 + $0x5c] sm:$0xf]
        %v547 = vld [vmem:[#allocation2 + $0x60] sm:$0xff]
        %v548 = vld [vmem:[#allocation2 + $0x68] sm:$0xf]
        %v549 = vld [vmem:[#allocation2 + $0x6c] sm:$0xff]
        %v550 = vld [vmem:[#allocation2 + $0x74] sm:$0xf]
        %v551 = vld [vmem:[#allocation2 + $0x78] sm:$0xff]
        %v552 = vld [vmem:[#allocation2 + $0x80] sm:$0xf]
        %v553 = vld [vmem:[#allocation2 + $0x84] sm:$0xff]
        %v554 = vld [vmem:[#allocation2 + $0x8c] sm:$0xf]
        %v555 = vld [vmem:[#allocation2 + $0x90] sm:$0xff]
        %v556 = vld [vmem:[#allocation2 + $0x98] sm:$0xf]
        %v557 = vld [vmem:[#allocation2 + $0x9c] sm:$0xff]
        %v558 = vld [vmem:[#allocation2 + $0xa4] sm:$0xf]
        %v559 = vld [vmem:[#allocation2 + $0xa8] sm:$0xff]
        %v560 = vld [vmem:[#allocation2 + $0xb0] sm:$0xf]
        %v561 = vld [vmem:[#allocation2 + $0xb4] sm:$0xff]
        %v562 = vld [vmem:[#allocation2 + $0xbc] sm:$0xf]
        %v563 = vld [vmem:[%s3] sm:$0x7]
        %v565 = vperm.slane %v563, 0
        %v566 = vperm.slane %v563, 1
        %v567 = vperm.slane %v563, 2
        %v603 = vunpack.c.l.b16 %v531
        %v604 = vunpack.c.h.b16 %v531
        %v605 = vunpack.c.l.b16 %v532
        %v606 = vunpack.c.l.b16 %v533
        %v607 = vunpack.c.h.b16 %v533
        %v608 = vunpack.c.l.b16 %v534
        %v609 = vunpack.c.l.b16 %v535
        %v610 = vunpack.c.h.b16 %v535
        %v611 = vunpack.c.l.b16 %v536
        %v612 = vunpack.c.l.b16 %v537
        %v613 = vunpack.c.h.b16 %v537
        %v614 = vunpack.c.l.b16 %v538
        %v615 = vunpack.c.l.b16 %v539
        %v616 = vunpack.c.h.b16 %v539
        %v617 = vunpack.c.l.b16 %v540
        %v618 = vunpack.c.l.b16 %v541
        %v619 = vunpack.c.h.b16 %v541
        %v620 = vunpack.c.l.b16 %v542
        %v621 = vunpack.c.l.b16 %v543
        %v622 = vunpack.c.h.b16 %v543
        %v623 = vunpack.c.l.b16 %v544
        %v624 = vunpack.c.l.b16 %v545
        %v625 = vunpack.c.h.b16 %v545
        %v626 = vunpack.c.l.b16 %v546
        %v627 = vunpack.c.l.b16 %v547
        %v628 = vunpack.c.h.b16 %v547
        %v629 = vunpack.c.l.b16 %v548
        %v630 = vunpack.c.l.b16 %v549
        %v631 = vunpack.c.h.b16 %v549
        %v632 = vunpack.c.l.b16 %v550
        %v633 = vunpack.c.l.b16 %v551
        %v634 = vunpack.c.h.b16 %v551
        %v635 = vunpack.c.l.b16 %v552
        %v636 = vunpack.c.l.b16 %v553
        %v637 = vunpack.c.h.b16 %v553
        %v638 = vunpack.c.l.b16 %v554
        %v639 = vunpack.c.l.b16 %v555
        %v640 = vunpack.c.h.b16 %v555
        %v641 = vunpack.c.l.b16 %v556
        %v642 = vunpack.c.l.b16 %v557
        %v643 = vunpack.c.h.b16 %v557
        %v644 = vunpack.c.l.b16 %v558
        %v645 = vunpack.c.l.b16 %v559
        %v646 = vunpack.c.h.b16 %v559
        %v647 = vunpack.c.l.b16 %v560
        %v648 = vunpack.c.l.b16 %v561
        %v649 = vunpack.c.h.b16 %v561
        %v650 = vunpack.c.l.b16 %v562
        %v651 = vpack.c.b16 %v606, %v603
        %v652 = vpack.c.b16 %v607, %v604
        %v653 = vpack.c.b16 %v608, %v605
        %v654 = vpack.c.b16 %v612, %v609
        %v655 = vpack.c.b16 %v613, %v610
        %v656 = vpack.c.b16 %v614, %v611
        %v657 = vpack.c.b16 %v618, %v615
        %v658 = vpack.c.b16 %v619, %v616
        %v659 = vpack.c.b16 %v620, %v617
        %v660 = vpack.c.b16 %v624, %v621
        %v661 = vpack.c.b16 %v625, %v622
        %v662 = vpack.c.b16 %v626, %v623
        %v663 = vpack.c.b16 %v630, %v627
        %v664 = vpack.c.b16 %v631, %v628
        %v665 = vpack.c.b16 %v632, %v629
        %v666 = vpack.c.b16 %v636, %v633
        %v667 = vpack.c.b16 %v637, %v634
        %v668 = vpack.c.b16 %v638, %v635
        %v669 = vpack.c.b16 %v642, %v639
        %v670 = vpack.c.b16 %v643, %v640
        %v671 = vpack.c.b16 %v644, %v641
        %v672 = vpack.c.b16 %v648, %v645
        %v673 = vpack.c.b16 %v649, %v646
        %v674 = vpack.c.b16 %v650, %v647
        %699 = vmatpush.bf16.msra.mxu0 %v672
        %700 = vmatpush.bf16.msra.mxu0 %v669
        %701 = vmatpush.bf16.msra.mxu0 %v666
        %702 = vmatpush.bf16.msra.mxu0 %v663
        %703 = vmatpush.bf16.msra.mxu0 %v660
        %704 = vmatpush.bf16.msra.mxu0 %v657
        %705 = vmatpush.bf16.msra.mxu0 %v654
        %706 = vmatpush.bf16.msra.mxu0 %v651
        %707 = vmatmul.bf16.gmra.mxu0 %v530
        %v708 = vpop.f32.mrf.mxu0
        %v709 = vadd.f32 %v565, %v708
        %v710 = vpop.f32.mrf.mxu0
        %711 = vdwg.mxu0
        %712 = vmatpush.bf16.msra.mxu0 %v673
        %713 = vmatpush.bf16.msra.mxu0 %v670
        %714 = vmatpush.bf16.msra.mxu0 %v667
        %715 = vmatpush.bf16.msra.mxu0 %v664
        %716 = vmatpush.bf16.msra.mxu0 %v661
        %717 = vmatpush.bf16.msra.mxu0 %v658
        %718 = vmatpush.bf16.msra.mxu0 %v655
        %719 = vmatpush.bf16.msra.mxu0 %v652
        %720 = vmatmul.bf16.gmra.mxu0 %v530
        %v721 = vpop.f32.mrf.mxu0
        %v722 = vadd.f32 %v566, %v721
        %v723 = vpop.f32.mrf.mxu0
        %724 = vdwg.mxu0
        %725 = vmatpush.bf16.msra.mxu0 %v674
        %726 = vmatpush.bf16.msra.mxu0 %v671
        %727 = vmatpush.bf16.msra.mxu0 %v668
        %728 = vmatpush.bf16.msra.mxu0 %v665
        %729 = vmatpush.bf16.msra.mxu0 %v662
        %730 = vmatpush.bf16.msra.mxu0 %v659
        %731 = vmatpush.bf16.msra.mxu0 %v656
        %732 = vmatpush.bf16.msra.mxu0 %v653
        %733 = vmatmul.bf16.gmra.mxu0 %v530
        %v734 = vpop.f32.mrf.mxu0
        %v735 = vadd.f32 %v567, %v734
        %v736 = vpop.f32.mrf.mxu0
        %737 = vdwg.mxu0
        %v738 = vpack.c.bf16 %v709, %v709
        %v739 = vpack.c.bf16 %v722, %v722
        %v740 = vpack.c.bf16 %v735, %v735
        %vm741 = vcmask 523264
        %v743 = vsel %vm741, %v738, 0
        %v746 = vsel %vm741, %v739, 0
        %748 = vmatpush.bf16.xpose.msra.mxu0 0
        %749 = vmatpush.bf16.xpose.msra.mxu0 0
        %750 = vmatpush.bf16.xpose.msra.mxu0 0
        %751 = vmatpush.bf16.xpose.msra.mxu0 0
        %752 = vmatpush.bf16.xpose.msra.mxu0 0
        %753 = vmatpush.bf16.xpose.msra.mxu0 0
        %754 = vmatpush.bf16.xpose.msra.mxu0 0
        %755 = vmatpush.bf16.xpose.msra.mxu0 %v746
        %756 = vmatmul.bf16.gmra.mxu0 %v743
        %v757 = vpop.f32.mrf.mxu0
        %v758 = vadd.f32 0.0, %v757
        %v759 = vpop.f32.mrf.mxu0
        %760 = vdwg.mxu0
        %v761 = vmul.f32 %v758, 0.125
        %v763 = vperm.slane %v529, 0
        %v765 = vadd.f32 %v761, %v763
        %vm766 = vcmask 64512
        %v767 = vsel %vm766, %v765, -inf
        %768 = vmax.xlane.f32.xlu0 %v767
        %v769 = vpop.xlane.xlu0 %768
        %v770 = vsub.f32 %v765, %v769
        %v771 = vmul.f32 %v770, 1.442695
        %v772 = vpow.pop %v771
        %v773 = vsel %vm766, %v772, 0.0
        %774 = vadd.xlane.f32.xlu0 %v773
        %v775 = vpop.xlane.xlu0 %774
        %v776 = vrcp.pop %v775
        %v777 = vmul.f32 %v772, %v776
        %v778 = vpack.c.bf16 %v777, %v777
        %v780 = vsel %vm766, %v778, 0
        %vm782 = vcmask 1043456
        %v784 = vsel %vm782, %v740, 0
        %786 = vmatpush.bf16.msra.mxu0 0
        %787 = vmatpush.bf16.msra.mxu0 0
        %788 = vmatpush.bf16.msra.mxu0 0
        %789 = vmatpush.bf16.msra.mxu0 0
        %790 = vmatpush.bf16.msra.mxu0 0
        %791 = vmatpush.bf16.msra.mxu0 0
        %792 = vmatpush.bf16.msra.mxu0 0
        %793 = vmatpush.bf16.msra.mxu0 %v784
        %794 = vmatmul.bf16.gmra.mxu0 %v780
        %v795 = vpop.f32.mrf.mxu0
        %v796 = vadd.f32 0.0, %v795
        %v797 = vpop.f32.mrf.mxu0
        %798 = vdwg.mxu0
        %800 = vrot.lane.b32.xlu0 %v738, 64
        %v801 = vpop.permute.xlu0 %800
        %803 = vrot.lane.b32.xlu0 %v739, 64
        %v804 = vpop.permute.xlu0 %803
        %v806 = vsel %vm741, %v801, 0
        %v809 = vsel %vm741, %v804, 0
        %811 = vmatpush.bf16.xpose.msra.mxu0 0
        %812 = vmatpush.bf16.xpose.msra.mxu0 0
        %813 = vmatpush.bf16.xpose.msra.mxu0 0
        %814 = vmatpush.bf16.xpose.msra.mxu0 0
        %815 = vmatpush.bf16.xpose.msra.mxu0 0
        %816 = vmatpush.bf16.xpose.msra.mxu0 0
        %817 = vmatpush.bf16.xpose.msra.mxu0 0
        %818 = vmatpush.bf16.xpose.msra.mxu0 %v809
        %819 = vmatmul.bf16.gmra.mxu0 %v806
        %v820 = vpop.f32.mrf.mxu0
        %v821 = vadd.f32 0.0, %v820
        %v822 = vpop.f32.mrf.mxu0
        %823 = vdwg.mxu0
        %v824 = vmul.f32 %v821, 0.125
        %v825 = vadd.f32 %v824, %v763
        %v826 = vsel %vm766, %v825, -inf
        %827 = vmax.xlane.f32.xlu0 %v826
        %v828 = vpop.xlane.xlu0 %827
        %v829 = vsub.f32 %v825, %v828
        %v830 = vmul.f32 %v829, 1.442695
        %v831 = vpow.pop %v830
        %v832 = vsel %vm766, %v831, 0.0
        %833 = vadd.xlane.f32.xlu0 %v832
        %v834 = vpop.xlane.xlu0 %833
        %v835 = vrcp.pop %v834
        %v836 = vmul.f32 %v831, %v835
        %v837 = vpack.c.bf16 %v836, %v836
        %839 = vrot.lane.b32.xlu0 %v740, 64
        %v840 = vpop.permute.xlu0 %839
        %v842 = vsel %vm766, %v837, 0
        %v845 = vsel %vm782, %v840, 0
        %847 = vmatpush.bf16.msra.mxu0 0
        %848 = vmatpush.bf16.msra.mxu0 0
        %849 = vmatpush.bf16.msra.mxu0 0
        %850 = vmatpush.bf16.msra.mxu0 0
        %851 = vmatpush.bf16.msra.mxu0 0
        %852 = vmatpush.bf16.msra.mxu0 0
        %853 = vmatpush.bf16.msra.mxu0 0
        %854 = vmatpush.bf16.msra.mxu0 %v845
        %855 = vmatmul.bf16.gmra.mxu0 %v842
        %v856 = vpop.f32.mrf.mxu0
        %v857 = vadd.f32 0.0, %v856
        %v858 = vpop.f32.mrf.mxu0
        %859 = vdwg.mxu0
        %861 = vrot.lane.b32.xlu0 %v857, 64
        %v862 = vpop.permute.xlu0 %861
        %v864 = vsel %vm741, %v796, %v862
        %v865 = vpack.c.bf16 %v864, %v864
        %v866 = vld [vmem:[#allocation4] sm:$0xf]
        %v867 = vld [vmem:[#allocation4 + $0x4] sm:$0xf]
        %v868 = vld [vmem:[#allocation4 + $0x8] sm:$0xf]
        %v869 = vld [vmem:[#allocation4 + $0xc] sm:$0xf]
        %v870 = vld [vmem:[#allocation4 + $0x10] sm:$0xf]
        %v871 = vld [vmem:[#allocation4 + $0x14] sm:$0xf]
        %v872 = vld [vmem:[#allocation4 + $0x18] sm:$0xf]
        %v873 = vld [vmem:[#allocation4 + $0x1c] sm:$0xf]
        %v874 = vld [vmem:[#allocation4 + $0x20] sm:$0xf]
        %v875 = vld [vmem:[#allocation4 + $0x24] sm:$0xf]
        %v876 = vld [vmem:[#allocation4 + $0x28] sm:$0xf]
        %v877 = vld [vmem:[#allocation4 + $0x2c] sm:$0xf]
        %v878 = vld [vmem:[#allocation4 + $0x30] sm:$0xf]
        %v879 = vld [vmem:[#allocation4 + $0x34] sm:$0xf]
        %v880 = vld [vmem:[#allocation4 + $0x38] sm:$0xf]
        %v881 = vld [vmem:[#allocation4 + $0x3c] sm:$0xf]
        %v882 = vld [vmem:[%s5] sm:$0x1]
        %v884 = vperm.slane %v882, 0
        %v902 = vunpack.c.l.b16 %v866
        %v903 = vunpack.c.l.b16 %v867
        %v904 = vunpack.c.l.b16 %v868
        %v905 = vunpack.c.l.b16 %v869
        %v906 = vunpack.c.l.b16 %v870
        %v907 = vunpack.c.l.b16 %v871
        %v908 = vunpack.c.l.b16 %v872
        %v909 = vunpack.c.l.b16 %v873
        %v910 = vunpack.c.l.b16 %v874
        %v911 = vunpack.c.l.b16 %v875
        %v912 = vunpack.c.l.b16 %v876
        %v913 = vunpack.c.l.b16 %v877
        %v914 = vunpack.c.l.b16 %v878
        %v915 = vunpack.c.l.b16 %v879
        %v916 = vunpack.c.l.b16 %v880
        %v917 = vunpack.c.l.b16 %v881
        %v918 = vpack.c.b16 %v903, %v902
        %v919 = vpack.c.b16 %v905, %v904
        %v920 = vpack.c.b16 %v907, %v906
        %v921 = vpack.c.b16 %v909, %v908
        %v922 = vpack.c.b16 %v911, %v910
        %v923 = vpack.c.b16 %v913, %v912
        %v924 = vpack.c.b16 %v915, %v914
        %v925 = vpack.c.b16 %v917, %v916
        %934 = vmatpush.bf16.msra.mxu0 %v925
        %935 = vmatpush.bf16.msra.mxu0 %v924
        %936 = vmatpush.bf16.msra.mxu0 %v923
        %937 = vmatpush.bf16.msra.mxu0 %v922
        %938 = vmatpush.bf16.msra.mxu0 %v921
        %939 = vmatpush.bf16.msra.mxu0 %v920
        %940 = vmatpush.bf16.msra.mxu0 %v919
        %941 = vmatpush.bf16.msra.mxu0 %v918
        %942 = vmatmul.bf16.gmra.mxu0 %v865
        %v943 = vpop.f32.mrf.mxu0
        %v944 = vadd.f32 %v884, %v943
        %v945 = vpop.f32.mrf.mxu0
        %946 = vdwg.mxu0
        %v947 = vadd.f32 %v944, %v528
        %v948 = vld [vmem:[%s6] sm:$0x1]
        %v949 = vld [vmem:[%s7] sm:$0x1]
        %950 = vadd.xlane.f32.xlu0 %v947
        %v951 = vpop.xlane.xlu0 %950
        %v952 = vrcp.pop 128.0
        %v953 = vmul.f32 128.0, %v952
        %v954 = vsub.f32 1.0, %v953
        %v955 = vmul.f32 %v952, %v954
        %v956 = vadd.f32 %v952, %v955
        %vm957 = vweird.f32 %v952
        %v958 = vsel %vm957, %v952, %v956
        %v959 = vmul.f32 %v951, %v958
        %v960 = vsub.f32 %v947, %v959
        %v961 = vmul.f32 %v960, %v960
        %962 = vadd.xlane.f32.xlu0 %v961
        %v963 = vpop.xlane.xlu0 %962
        %v964 = vmul.f32 %v963, %v958
        %v965 = vadd.f32 %v964, 1e-07
        %v966 = vrsqrt.pop %v965
        %v967 = vmul.f32 %v966, %v965
        %v968 = vmul.f32 %v967, %v966
        %v969 = vmul.f32 0.5, %v968
        %v970 = vsub.f32 1.5, %v969
        %v971 = vmul.f32 %v966, %v970
        %vm972 = vweird.f32 %v965
        %vm973 = vweird.f32 %v966
        %vm974 = vmor %vm972, %vm973
        %v975 = vsel %vm974, %v966, %v971
        %v976 = vmul.f32 %v960, %v975
        %v978 = vperm.slane %v948, 0
        %v980 = vmul.f32 %v976, %v978
        %v982 = vperm.slane %v949, 0
        %v984 = vadd.f32 %v980, %v982
        %v985 = vpack.c.bf16 %v984, %v984
        %v986 = vld [vmem:[%s8] sm:$0xff]
        %v987 = vld [vmem:[%s8 + $0x8] sm:$0xff]
        %v988 = vld [vmem:[%s8 + $0x10] sm:$0xff]
        %v989 = vld [vmem:[%s8 + $0x18] sm:$0xff]
        %v990 = vld [vmem:[%s8 + $0x20] sm:$0xff]
        %v991 = vld [vmem:[%s8 + $0x28] sm:$0xff]
        %v992 = vld [vmem:[%s8 + $0x30] sm:$0xff]
        %v993 = vld [vmem:[%s8 + $0x38] sm:$0xff]
        %v994 = vld [vmem:[%s8 + $0x40] sm:$0xff]
        %v995 = vld [vmem:[%s8 + $0x48] sm:$0xff]
        %v996 = vld [vmem:[%s8 + $0x50] sm:$0xff]
        %v997 = vld [vmem:[%s8 + $0x58] sm:$0xff]
        %v998 = vld [vmem:[%s8 + $0x60] sm:$0xff]
        %v999 = vld [vmem:[%s8 + $0x68] sm:$0xff]
        %v1000 = vld [vmem:[%s8 + $0x70] sm:$0xff]
        %v1001 = vld [vmem:[%s8 + $0x78] sm:$0xff]
        %v1002 = vld [vmem:[%s9] sm:$0x3]
        %v1004 = vperm.slane %v1002, 0
        %v1005 = vperm.slane %v1002, 1
        %v1024 = vunpack.c.l.b16 %v986
        %v1025 = vunpack.c.h.b16 %v986
        %v1026 = vunpack.c.l.b16 %v987
        %v1027 = vunpack.c.h.b16 %v987
        %v1028 = vunpack.c.l.b16 %v988
        %v1029 = vunpack.c.h.b16 %v988
        %v1030 = vunpack.c.l.b16 %v989
        %v1031 = vunpack.c.h.b16 %v989
        %v1032 = vunpack.c.l.b16 %v990
        %v1033 = vunpack.c.h.b16 %v990
        %v1034 = vunpack.c.l.b16 %v991
        %v1035 = vunpack.c.h.b16 %v991
        %v1036 = vunpack.c.l.b16 %v992
        %v1037 = vunpack.c.h.b16 %v992
        %v1038 = vunpack.c.l.b16 %v993
        %v1039 = vunpack.c.h.b16 %v993
        %v1040 = vunpack.c.l.b16 %v994
        %v1041 = vunpack.c.h.b16 %v994
        %v1042 = vunpack.c.l.b16 %v995
        %v1043 = vunpack.c.h.b16 %v995
        %v1044 = vunpack.c.l.b16 %v996
        %v1045 = vunpack.c.h.b16 %v996
        %v1046 = vunpack.c.l.b16 %v997
        %v1047 = vunpack.c.h.b16 %v997
        %v1048 = vunpack.c.l.b16 %v998
        %v1049 = vunpack.c.h.b16 %v998
        %v1050 = vunpack.c.l.b16 %v999
        %v1051 = vunpack.c.h.b16 %v999
        %v1052 = vunpack.c.l.b16 %v1000
        %v1053 = vunpack.c.h.b16 %v1000
        %v1054 = vunpack.c.l.b16 %v1001
        %v1055 = vunpack.c.h.b16 %v1001
        %v1056 = vpack.c.b16 %v1026, %v1024
        %v1057 = vpack.c.b16 %v1027, %v1025
        %v1058 = vpack.c.b16 %v1030, %v1028
        %v1059 = vpack.c.b16 %v1031, %v1029
        %v1060 = vpack.c.b16 %v1034, %v1032
        %v1061 = vpack.c.b16 %v1035, %v1033
        %v1062 = vpack.c.b16 %v1038, %v1036
        %v1063 = vpack.c.b16 %v1039, %v1037
        %v1064 = vpack.c.b16 %v1042, %v1040
        %v1065 = vpack.c.b16 %v1043, %v1041
        %v1066 = vpack.c.b16 %v1046, %v1044
        %v1067 = vpack.c.b16 %v1047, %v1045
        %v1068 = vpack.c.b16 %v1050, %v1048
        %v1069 = vpack.c.b16 %v1051, %v1049
        %v1070 = vpack.c.b16 %v1054, %v1052
        %v1071 = vpack.c.b16 %v1055, %v1053
        %1088 = vmatpush.bf16.msra.mxu0 %v1070
        %1089 = vmatpush.bf16.msra.mxu0 %v1068
        %1090 = vmatpush.bf16.msra.mxu0 %v1066
        %1091 = vmatpush.bf16.msra.mxu0 %v1064
        %1092 = vmatpush.bf16.msra.mxu0 %v1062
        %1093 = vmatpush.bf16.msra.mxu0 %v1060
        %1094 = vmatpush.bf16.msra.mxu0 %v1058
        %1095 = vmatpush.bf16.msra.mxu0 %v1056
        %1096 = vmatmul.bf16.gmra.mxu0 %v985
        %v1097 = vpop.f32.mrf.mxu0
        %v1098 = vadd.f32 %v1004, %v1097
        %v1099 = vpop.f32.mrf.mxu0
        %1100 = vdwg.mxu0
        %1101 = vmatpush.bf16.msra.mxu0 %v1071
        %1102 = vmatpush.bf16.msra.mxu0 %v1069
        %1103 = vmatpush.bf16.msra.mxu0 %v1067
        %1104 = vmatpush.bf16.msra.mxu0 %v1065
        %1105 = vmatpush.bf16.msra.mxu0 %v1063
        %1106 = vmatpush.bf16.msra.mxu0 %v1061
        %1107 = vmatpush.bf16.msra.mxu0 %v1059
        %1108 = vmatpush.bf16.msra.mxu0 %v1057
        %1109 = vmatmul.bf16.gmra.mxu0 %v985
        %v1110 = vpop.f32.mrf.mxu0
        %v1111 = vadd.f32 %v1005, %v1110
        %v1112 = vpop.f32.mrf.mxu0
        %1113 = vdwg.mxu0
        %v1114 = vmul.f32 %v1098, %v1098
        %v1115 = vmul.f32 %v1111, %v1111
        %v1116 = vmul.f32 %v1098, %v1114
        %v1117 = vmul.f32 %v1111, %v1115
        %v1118 = vmul.f32 %v1116, 0.044715
        %v1119 = vmul.f32 %v1117, 0.044715
        %v1120 = vadd.f32 %v1098, %v1118
        %v1121 = vadd.f32 %v1111, %v1119
        %v1122 = vmul.f32 %v1120, 0.7978846
        %v1123 = vmul.f32 %v1121, 0.7978846
        %v1124 = vtanh.pop %v1122
        %v1125 = vtanh.pop %v1123
        %v1126 = vadd.f32 %v1124, 1.0
        %v1127 = vadd.f32 %v1125, 1.0
        %v1128 = vmul.f32 %v1126, 0.5
        %v1129 = vmul.f32 %v1127, 0.5
        %v1130 = vmul.f32 %v1098, %v1128
        %v1131 = vmul.f32 %v1111, %v1129
        %v1132 = vpack.c.bf16 %v1130, %v1130
        %v1133 = vpack.c.bf16 %v1131, %v1131
        %v1134 = vld [vmem:[#allocation6] sm:$0xf]
        %v1135 = vld [vmem:[#allocation6 + $0x4] sm:$0xf]
        %v1136 = vld [vmem:[#allocation6 + $0x8] sm:$0xf]
        %v1137 = vld [vmem:[#allocation6 + $0xc] sm:$0xf]
        %v1138 = vld [vmem:[#allocation6 + $0x10] sm:$0xf]
        %v1139 = vld [vmem:[#allocation6 + $0x14] sm:$0xf]
        %v1140 = vld [vmem:[#allocation6 + $0x18] sm:$0xf]
        %v1141 = vld [vmem:[#allocation6 + $0x1c] sm:$0xf]
        %v1142 = vld [vmem:[#allocation6 + $0x20] sm:$0xf]
        %v1143 = vld [vmem:[#allocation6 + $0x24] sm:$0xf]
        %v1144 = vld [vmem:[#allocation6 + $0x28] sm:$0xf]
        %v1145 = vld [vmem:[#allocation6 + $0x2c] sm:$0xf]
        %v1146 = vld [vmem:[#allocation6 + $0x30] sm:$0xf]
        %v1147 = vld [vmem:[#allocation6 + $0x34] sm:$0xf]
        %v1148 = vld [vmem:[#allocation6 + $0x38] sm:$0xf]
        %v1149 = vld [vmem:[#allocation6 + $0x3c] sm:$0xf]
        %v1150 = vld [vmem:[#allocation6 + $0x40] sm:$0xf]
        %v1151 = vld [vmem:[#allocation6 + $0x44] sm:$0xf]
        %v1152 = vld [vmem:[#allocation6 + $0x48] sm:$0xf]
        %v1153 = vld [vmem:[#allocation6 + $0x4c] sm:$0xf]
        %v1154 = vld [vmem:[#allocation6 + $0x50] sm:$0xf]
        %v1155 = vld [vmem:[#allocation6 + $0x54] sm:$0xf]
        %v1156 = vld [vmem:[#allocation6 + $0x58] sm:$0xf]
        %v1157 = vld [vmem:[#allocation6 + $0x5c] sm:$0xf]
        %v1158 = vld [vmem:[#allocation6 + $0x60] sm:$0xf]
        %v1159 = vld [vmem:[#allocation6 + $0x64] sm:$0xf]
        %v1160 = vld [vmem:[#allocation6 + $0x68] sm:$0xf]
        %v1161 = vld [vmem:[#allocation6 + $0x6c] sm:$0xf]
        %v1162 = vld [vmem:[#allocation6 + $0x70] sm:$0xf]
        %v1163 = vld [vmem:[#allocation6 + $0x74] sm:$0xf]
        %v1164 = vld [vmem:[#allocation6 + $0x78] sm:$0xf]
        %v1165 = vld [vmem:[#allocation6 + $0x7c] sm:$0xf]
        %v1166 = vld [vmem:[%s11] sm:$0x1]
        %v1168 = vperm.slane %v1166, 0
        %v1202 = vunpack.c.l.b16 %v1134
        %v1203 = vunpack.c.l.b16 %v1135
        %v1204 = vunpack.c.l.b16 %v1136
        %v1205 = vunpack.c.l.b16 %v1137
        %v1206 = vunpack.c.l.b16 %v1138
        %v1207 = vunpack.c.l.b16 %v1139
        %v1208 = vunpack.c.l.b16 %v1140
        %v1209 = vunpack.c.l.b16 %v1141
        %v1210 = vunpack.c.l.b16 %v1142
        %v1211 = vunpack.c.l.b16 %v1143
        %v1212 = vunpack.c.l.b16 %v1144
        %v1213 = vunpack.c.l.b16 %v1145
        %v1214 = vunpack.c.l.b16 %v1146
        %v1215 = vunpack.c.l.b16 %v1147
        %v1216 = vunpack.c.l.b16 %v1148
        %v1217 = vunpack.c.l.b16 %v1149
        %v1218 = vunpack.c.l.b16 %v1150
        %v1219 = vunpack.c.l.b16 %v1151
        %v1220 = vunpack.c.l.b16 %v1152
        %v1221 = vunpack.c.l.b16 %v1153
        %v1222 = vunpack.c.l.b16 %v1154
        %v1223 = vunpack.c.l.b16 %v1155
        %v1224 = vunpack.c.l.b16 %v1156
        %v1225 = vunpack.c.l.b16 %v1157
        %v1226 = vunpack.c.l.b16 %v1158
        %v1227 = vunpack.c.l.b16 %v1159
        %v1228 = vunpack.c.l.b16 %v1160
        %v1229 = vunpack.c.l.b16 %v1161
        %v1230 = vunpack.c.l.b16 %v1162
        %v1231 = vunpack.c.l.b16 %v1163
        %v1232 = vunpack.c.l.b16 %v1164
        %v1233 = vunpack.c.l.b16 %v1165
        %v1234 = vpack.c.b16 %v1203, %v1202
        %v1235 = vpack.c.b16 %v1205, %v1204
        %v1236 = vpack.c.b16 %v1207, %v1206
        %v1237 = vpack.c.b16 %v1209, %v1208
        %v1238 = vpack.c.b16 %v1211, %v1210
        %v1239 = vpack.c.b16 %v1213, %v1212
        %v1240 = vpack.c.b16 %v1215, %v1214
        %v1241 = vpack.c.b16 %v1217, %v1216
        %v1242 = vpack.c.b16 %v1219, %v1218
        %v1243 = vpack.c.b16 %v1221, %v1220
        %v1244 = vpack.c.b16 %v1223, %v1222
        %v1245 = vpack.c.b16 %v1225, %v1224
        %v1246 = vpack.c.b16 %v1227, %v1226
        %v1247 = vpack.c.b16 %v1229, %v1228
        %v1248 = vpack.c.b16 %v1231, %v1230
        %v1249 = vpack.c.b16 %v1233, %v1232
        %1266 = vmatpush.bf16.msra.mxu0 %v1241
        %1267 = vmatpush.bf16.msra.mxu0 %v1240
        %1268 = vmatpush.bf16.msra.mxu0 %v1239
        %1269 = vmatpush.bf16.msra.mxu0 %v1238
        %1270 = vmatpush.bf16.msra.mxu0 %v1237
        %1271 = vmatpush.bf16.msra.mxu0 %v1236
        %1272 = vmatpush.bf16.msra.mxu0 %v1235
        %1273 = vmatpush.bf16.msra.mxu0 %v1234
        %1274 = vmatmul.bf16.gmra.mxu0 %v1132
        %v1275 = vpop.f32.mrf.mxu0
        %v1276 = vadd.f32 %v1168, %v1275
        %v1277 = vpop.f32.mrf.mxu0
        %1278 = vdwg.mxu0
        %1279 = vmatpush.bf16.msra.mxu0 %v1249
        %1280 = vmatpush.bf16.msra.mxu0 %v1248
        %1281 = vmatpush.bf16.msra.mxu0 %v1247
        %1282 = vmatpush.bf16.msra.mxu0 %v1246
        %1283 = vmatpush.bf16.msra.mxu0 %v1245
        %1284 = vmatpush.bf16.msra.mxu0 %v1244
        %1285 = vmatpush.bf16.msra.mxu0 %v1243
        %1286 = vmatpush.bf16.msra.mxu0 %v1242
        %1287 = vmatmul.bf16.gmra.mxu0 %v1133
        %v1288 = vpop.f32.mrf.mxu0
        %v1289 = vadd.f32 %v1276, %v1288
        %v1290 = vpop.f32.mrf.mxu0
        %1291 = vdwg.mxu0
        %v1292 = vadd.f32 %v1289, %v984
        %v1293 = vld [vmem:[%s12] sm:$0x1]
        %v1294 = vld [vmem:[%s13] sm:$0x1]
        %1295 = vadd.xlane.f32.xlu0 %v1292
        %v1296 = vpop.xlane.xlu0 %1295
        %v1297 = vmul.f32 %v1296, %v958
        %v1298 = vsub.f32 %v1292, %v1297
        %v1299 = vmul.f32 %v1298, %v1298
        %1300 = vadd.xlane.f32.xlu0 %v1299
        %v1301 = vpop.xlane.xlu0 %1300
        %v1302 = vmul.f32 %v1301, %v958
        %v1303 = vadd.f32 %v1302, 1e-07
        %v1304 = vrsqrt.pop %v1303
        %v1305 = vmul.f32 %v1304, %v1303
        %v1306 = vmul.f32 %v1305, %v1304
        %v1307 = vmul.f32 0.5, %v1306
        %v1308 = vsub.f32 1.5, %v1307
        %v1309 = vmul.f32 %v1304, %v1308
        %vm1310 = vweird.f32 %v1303
        %vm1311 = vweird.f32 %v1304
        %vm1312 = vmor %vm1310, %vm1311
        %v1313 = vsel %vm1312, %v1304, %v1309
        %v1314 = vmul.f32 %v1298, %v1313
        %v1316 = vperm.slane %v1293, 0
        %v1318 = vmul.f32 %v1314, %v1316
        %v1320 = vperm.slane %v1294, 0
        %v1322 = vadd.f32 %v1318, %v1320
        %1323 = vst [vmem:[%s526] sm:$0xff] %v1322
        %p1324 = scmp.lt.s32.totalorder %s27, 1
        %s1325 = scalar_select %p1324, %s27, 1
        %s1326 = smul.addr %s1325, 8
        %s1327 = scalar_lea.vmem %s14, %s1326
        // Predicated region
        $region89: #{nlp_model_forward.6} parent=75 // pred_check
          %p1328 = pneg %p349
        $region90: #{nlp_model_forward.6} parent=75 // pred_check_branch
          %1330 = sbr.rel (%p1328) target = $region92
        $region91: #{nlp_model_forward.6} parent=75 // pred_region
          _
        $region92: #{nlp_model_forward.6} parent=75 // pred_fallthru
          _
      $region76: #{nlp_model_forward.6} parent=5 // pred_fallthru
        _
      %p1331 = scmp.le.s32.totalorder 2, %s22
      // Predicated region
      $region93: #{nlp_model_forward.6} parent=5 // pred_check
        %p1332 = pneg %p1331
      $region94: #{nlp_model_forward.6} parent=5 // pred_check_branch
        %1334 = sbr.rel (%p1332) target = $region96
      $region95: #{nlp_model_forward.6} parent=5 // pred_region
        %s1335 = ssub.s32 %s22, 2
        // Predicated region
        $region97: #{nlp_model_forward.6} parent=95 // pred_check
          %p1336 = pneg %p355
        $region98: #{nlp_model_forward.6} parent=95 // pred_check_branch
          %1338 = sbr.rel (%p1336) target = $region100
        $region99: #{nlp_model_forward.6} parent=95 // pred_region
          %p1339 = scmp.lt.s32.totalorder %s28, 1
          %s1340 = scalar_select %p1339, %s28, 1
          %s1341 = smul.addr %s1340, 8
          %s1342 = scalar_lea.vmem %s14, %s1341
        $region100: #{nlp_model_forward.6} parent=95 // pred_fallthru
          _
      $region96: #{nlp_model_forward.6} parent=5 // pred_fallthru
        _
    $region6: #{nlp_model_forward.6} parent=1 // loop_footer
      %s26 = sadd.s32 1, %s22
    $region7: #{nlp_model_forward.6} parent=1 // loop_footer_branch
      %21 = sbr.rel target = $region3
    $region8: #{nlp_model_forward.6} parent=1 // loop_exit
      _
    %1343 = vsyncpa [#allocation3], 1
    %s1344 = scalar_lea.sflag [#allocation3], 1
    %1345 = vsyncpa %s1344, 1
    %1346 = vsyncpa [#allocation5], 1

// kernel: nlp_model_forward.5
$region0: #{nlp_model_forward.5}
  #allocation0 [shape = 'u32[]', space=smem, size = 0x4, offset = 0x4, fixed_abs, tag = 'smem constant byte address 0x4 - core index']
  #allocation1 [shape = 'u32[72,128]{1,0:T(1,128)}', space=vmem, size = 0x9000, scoped, tag = 'internal scratch']
  %s0 = inlined_call_operand.vmem [shape: f32[2,8,128], index: 0, kind: input, shape index: {}]
  %s1 = inlined_call_operand.vmem [shape: f32[2,1,8], index: 1, kind: input, shape index: {}]
  %s2 = inlined_call_operand.hbm [shape: bf16[128,384], index: 2, kind: input, shape index: {}]
  %s3 = inlined_call_operand.vmem [shape: f32[1,384], index: 3, kind: input, shape index: {}]
  %s4 = inlined_call_operand.hbm [shape: bf16[128,128], index: 4, kind: input, shape index: {}]
  %s5 = inlined_call_operand.vmem [shape: f32[1,128], index: 5, kind: input, shape index: {}, may-alias: {5,7,11,13}]
  %s6 = inlined_call_operand.vmem [shape: f32[1,128], index: 6, kind: input, shape index: {}, may-alias: {6,12}]
  %s7 = inlined_call_operand.vmem [shape: f32[1,128], index: 7, kind: input, shape index: {}, may-alias: {5,7,11,13}]
  %s8 = inlined_call_operand.hbm [shape: bf16[128,256], index: 8, kind: input, shape index: {}]
  %s9 = inlined_call_operand.vmem [shape: f32[1,256], index: 9, kind: input, shape index: {}]
  %s10 = inlined_call_operand.hbm [shape: bf16[256,128], index: 10, kind: input, shape index: {}]
  %s11 = inlined_call_operand.vmem [shape: f32[1,128], index: 11, kind: input, shape index: {}, may-alias: {5,7,11,13}]
  %s12 = inlined_call_operand.vmem [shape: f32[1,128], index: 12, kind: input, shape index: {}, may-alias: {6,12}]
  %s13 = inlined_call_operand.vmem [shape: f32[1,128], index: 13, kind: input, shape index: {}, may-alias: {5,7,11,13}]
  %s14 = inlined_call_operand.vmem [shape: f32[2,8,128], index: 14, kind: output, shape index: {}]
  %s15 = sld [smem:[#allocation0]]
  $region105: #{nlp_model_forward.5} parent=0
    _
  %s17 = ssub.s32 1, %s15
  %s18 = scalar_select 0, %s17, %s15
  $region1: #{nlp_model_forward.5} parent=0
    #allocation2 [shape = 'u8[98304]{0}', space=vmem, size = 0x18000, scoped, tag = 'input window, operand 2, single buffered']
    #allocation3 [shape = 's32[2]{0}', space=sflag, size = 0x8, scoped, tag = 'scoped memory for nlp_model_forward.5']
    #allocation4 [shape = 'u8[32768]{0}', space=vmem, size = 0x8000, scoped, tag = 'input window, operand 4, single buffered']
    #allocation5 [shape = 's32[1]{0}', space=sflag, size = 0x4, scoped, tag = 'scoped memory for nlp_model_forward.5']
    #allocation6 [shape = 'u8[65536]{0}', space=vmem, size = 0x10000, scoped, tag = 'input window, operand 8, single buffered']
    #allocation7 [shape = 'u8[65536]{0}', space=vmem, size = 0x10000, scoped, tag = 'input window, operand 10, single buffered']
    #allocation8 [shape = 's32[1]{0}', space=sflag, size = 0x4, scoped, tag = 'scoped memory for nlp_model_forward.5']
    %19 = vsyncpa [#allocation3], 0
    %20 = vsyncpa [#allocation5], 0
    %21 = vsyncpa [#allocation8], 0
    loop: start=0, step=1, limit=4
    $region2: #{nlp_model_forward.5} parent=1 // loop_pre_header
      _
    $region3: #{nlp_model_forward.5} parent=1 // loop_header
      %s23 = sphi 0, %s27
      %p24 = scmp.ge.s32.totalorder %s23, 4
      %s33 = sphi 0, %s35
      %s36 = sphi 0, %s33
      %s37 = sphi 0, %s36
      %s53 = sphi 0, %s37
      %s59 = sphi 0, %s61
      %s62 = sphi 0, %s59
      %s63 = sphi 0, %s62
      %s79 = sphi 0, %s63
      %s83 = sphi 0, %s83
      %s85 = sphi 0, %s83
      %s86 = sphi 0, %s85
      %s100 = sphi 0, %s86
      %s104 = sphi 0, %s104
      %s106 = sphi 0, %s104
      %s107 = sphi 0, %s106
      %s121 = sphi 0, %s107
      %s125 = sphi 0, %s125
      %s127 = sphi 0, %s125
      %s128 = sphi 0, %s127
      %s142 = sphi 0, %s128
      %s146 = sphi 0, %s146
      %s148 = sphi 0, %s146
      %s149 = sphi 0, %s148
      %s163 = sphi 0, %s149
      %s167 = sphi 0, %s167
      %s169 = sphi 0, %s167
      %s170 = sphi 0, %s169
      %s184 = sphi 0, %s170
      %s188 = sphi 0, %s188
      %s190 = sphi 0, %s188
      %s191 = sphi 0, %s190
      %s205 = sphi 0, %s191
      %s209 = sphi 0, %s209
      %s211 = sphi 0, %s209
      %s212 = sphi 0, %s211
      %s226 = sphi 0, %s212
      %s230 = sphi 0, %s230
      %s232 = sphi 0, %s230
      %s233 = sphi 0, %s232
      %s247 = sphi 0, %s233
      %s251 = sphi 0, %s251
      %s253 = sphi 0, %s251
      %s254 = sphi 0, %s253
      %s268 = sphi 0, %s254
      %s272 = sphi 0, %s272
      %s274 = sphi 0, %s272
      %s275 = sphi 0, %s274
      %s289 = sphi 0, %s275
      %s293 = sphi 0, %s293
      %s295 = sphi 0, %s293
      %s296 = sphi 0, %s295
      %s310 = sphi 0, %s296
      %s314 = sphi 0, %s314
      %s316 = sphi 0, %s314
      %s317 = sphi 0, %s316
      %s331 = sphi 0, %s317
      %s337 = sphi 0, %s339
      %s340 = sphi 0, %s337
      %s341 = sphi 0, %s340
      %s357 = sphi 0, %s341
    $region4: #{nlp_model_forward.5} parent=1 // loop_header_branch
      %26 = sbr.rel (%p24) target = $region8
    $region5: #{nlp_model_forward.5} parent=1 // loop_body
      %s28 = ssub.s32 %s23, 1
      %s29 = ssub.s32 %s23, 2
      %s30 = sadd.s32 %s23, 1
      %s31 = ssub.s32 %s23, %s30
      %p32 = scmp.eq.s32.totalorder %s31, 0
      %s34 = sadd.s32 %s33, 1
      %s35 = scalar_select %p32, %s33, %s34
      %p38 = pneg %p32
      %p39 = scmp.eq.s32.totalorder %s23, 1
      %p40 = por %p38, %p39
      %p41 = scmp.ne.s32.totalorder %s33, %s36
      %p42 = scmp.eq.s32.totalorder %s23, 0
      %p43 = por %p41, %p42
      %p44 = scmp.ne.s32.totalorder %s33, %s36
      %p45 = scmp.eq.s32.totalorder %s28, 1
      %p46 = por %p44, %p45
      %p47 = scmp.ne.s32.totalorder %s36, %s37
      %p48 = scmp.eq.s32.totalorder %s28, 0
      %p49 = por %p47, %p48
      %p50 = scmp.ne.s32.totalorder %s36, %s37
      %p51 = scmp.eq.s32.totalorder %s29, 1
      %p52 = por %p50, %p51
      %p54 = scmp.ne.s32.totalorder %s37, %s53
      %p55 = scmp.eq.s32.totalorder %s29, 0
      %p56 = por %p54, %p55
      %s57 = ssub.s32 %s23, %s30
      %p58 = scmp.eq.s32.totalorder %s57, 0
      %s60 = sadd.s32 %s59, 1
      %s61 = scalar_select %p58, %s59, %s60
      %p64 = pneg %p58
      %p65 = scmp.eq.s32.totalorder %s23, 1
      %p66 = por %p64, %p65
      %p67 = scmp.ne.s32.totalorder %s59, %s62
      %p68 = scmp.eq.s32.totalorder %s23, 0
      %p69 = por %p67, %p68
      %p70 = scmp.ne.s32.totalorder %s59, %s62
      %p71 = scmp.eq.s32.totalorder %s28, 1
      %p72 = por %p70, %p71
      %p73 = scmp.ne.s32.totalorder %s62, %s63
      %p74 = scmp.eq.s32.totalorder %s28, 0
      %p75 = por %p73, %p74
      %p76 = scmp.ne.s32.totalorder %s62, %s63
      %p77 = scmp.eq.s32.totalorder %s29, 1
      %p78 = por %p76, %p77
      %p80 = scmp.ne.s32.totalorder %s63, %s79
      %p81 = scmp.eq.s32.totalorder %s29, 0
      %p82 = por %p80, %p81
      %s84 = sadd.s32 %s83, 1
      %p87 = scmp.eq.s32.totalorder %s23, 1
      %p88 = scmp.ne.s32.totalorder %s83, %s85
      %p89 = scmp.eq.s32.totalorder %s23, 0
      %p90 = por %p88, %p89
      %p91 = scmp.ne.s32.totalorder %s83, %s85
      %p92 = scmp.eq.s32.totalorder %s28, 1
      %p93 = por %p91, %p92
      %p94 = scmp.ne.s32.totalorder %s85, %s86
      %p95 = scmp.eq.s32.totalorder %s28, 0
      %p96 = por %p94, %p95
      %p97 = scmp.ne.s32.totalorder %s85, %s86
      %p98 = scmp.eq.s32.totalorder %s29, 1
      %p99 = por %p97, %p98
      %p101 = scmp.ne.s32.totalorder %s86, %s100
      %p102 = scmp.eq.s32.totalorder %s29, 0
      %p103 = por %p101, %p102
      %s105 = sadd.s32 %s104, 1
      %p108 = scmp.eq.s32.totalorder %s23, 1
      %p109 = scmp.ne.s32.totalorder %s104, %s106
      %p110 = scmp.eq.s32.totalorder %s23, 0
      %p111 = por %p109, %p110
      %p112 = scmp.ne.s32.totalorder %s104, %s106
      %p113 = scmp.eq.s32.totalorder %s28, 1
      %p114 = por %p112, %p113
      %p115 = scmp.ne.s32.totalorder %s106, %s107
      %p116 = scmp.eq.s32.totalorder %s28, 0
      %p117 = por %p115, %p116
      %p118 = scmp.ne.s32.totalorder %s106, %s107
      %p119 = scmp.eq.s32.totalorder %s29, 1
      %p120 = por %p118, %p119
      %p122 = scmp.ne.s32.totalorder %s107, %s121
      %p123 = scmp.eq.s32.totalorder %s29, 0
      %p124 = por %p122, %p123
      %s126 = sadd.s32 %s125, 1
      %p129 = scmp.eq.s32.totalorder %s23, 1
      %p130 = scmp.ne.s32.totalorder %s125, %s127
      %p131 = scmp.eq.s32.totalorder %s23, 0
      %p132 = por %p130, %p131
      %p133 = scmp.ne.s32.totalorder %s125, %s127
      %p134 = scmp.eq.s32.totalorder %s28, 1
      %p135 = por %p133, %p134
      %p136 = scmp.ne.s32.totalorder %s127, %s128
      %p137 = scmp.eq.s32.totalorder %s28, 0
      %p138 = por %p136, %p137
      %p139 = scmp.ne.s32.totalorder %s127, %s128
      %p140 = scmp.eq.s32.totalorder %s29, 1
      %p141 = por %p139, %p140
      %p143 = scmp.ne.s32.totalorder %s128, %s142
      %p144 = scmp.eq.s32.totalorder %s29, 0
      %p145 = por %p143, %p144
      %s147 = sadd.s32 %s146, 1
      %p150 = scmp.eq.s32.totalorder %s23, 1
      %p151 = scmp.ne.s32.totalorder %s146, %s148
      %p152 = scmp.eq.s32.totalorder %s23, 0
      %p153 = por %p151, %p152
      %p154 = scmp.ne.s32.totalorder %s146, %s148
      %p155 = scmp.eq.s32.totalorder %s28, 1
      %p156 = por %p154, %p155
      %p157 = scmp.ne.s32.totalorder %s148, %s149
      %p158 = scmp.eq.s32.totalorder %s28, 0
      %p159 = por %p157, %p158
      %p160 = scmp.ne.s32.totalorder %s148, %s149
      %p161 = scmp.eq.s32.totalorder %s29, 1
      %p162 = por %p160, %p161
      %p164 = scmp.ne.s32.totalorder %s149, %s163
      %p165 = scmp.eq.s32.totalorder %s29, 0
      %p166 = por %p164, %p165
      %s168 = sadd.s32 %s167, 1
      %p171 = scmp.eq.s32.totalorder %s23, 1
      %p172 = scmp.ne.s32.totalorder %s167, %s169
      %p173 = scmp.eq.s32.totalorder %s23, 0
      %p174 = por %p172, %p173
      %p175 = scmp.ne.s32.totalorder %s167, %s169
      %p176 = scmp.eq.s32.totalorder %s28, 1
      %p177 = por %p175, %p176
      %p178 = scmp.ne.s32.totalorder %s169, %s170
      %p179 = scmp.eq.s32.totalorder %s28, 0
      %p180 = por %p178, %p179
      %p181 = scmp.ne.s32.totalorder %s169, %s170
      %p182 = scmp.eq.s32.totalorder %s29, 1
      %p183 = por %p181, %p182
      %p185 = scmp.ne.s32.totalorder %s170, %s184
      %p186 = scmp.eq.s32.totalorder %s29, 0
      %p187 = por %p185, %p186
      %s189 = sadd.s32 %s188, 1
      %p192 = scmp.eq.s32.totalorder %s23, 1
      %p193 = scmp.ne.s32.totalorder %s188, %s190
      %p194 = scmp.eq.s32.totalorder %s23, 0
      %p195 = por %p193, %p194
      %p196 = scmp.ne.s32.totalorder %s188, %s190
      %p197 = scmp.eq.s32.totalorder %s28, 1
      %p198 = por %p196, %p197
      %p199 = scmp.ne.s32.totalorder %s190, %s191
      %p200 = scmp.eq.s32.totalorder %s28, 0
      %p201 = por %p199, %p200
      %p202 = scmp.ne.s32.totalorder %s190, %s191
      %p203 = scmp.eq.s32.totalorder %s29, 1
      %p204 = por %p202, %p203
      %p206 = scmp.ne.s32.totalorder %s191, %s205
      %p207 = scmp.eq.s32.totalorder %s29, 0
      %p208 = por %p206, %p207
      %s210 = sadd.s32 %s209, 1
      %p213 = scmp.eq.s32.totalorder %s23, 1
      %p214 = scmp.ne.s32.totalorder %s209, %s211
      %p215 = scmp.eq.s32.totalorder %s23, 0
      %p216 = por %p214, %p215
      %p217 = scmp.ne.s32.totalorder %s209, %s211
      %p218 = scmp.eq.s32.totalorder %s28, 1
      %p219 = por %p217, %p218
      %p220 = scmp.ne.s32.totalorder %s211, %s212
      %p221 = scmp.eq.s32.totalorder %s28, 0
      %p222 = por %p220, %p221
      %p223 = scmp.ne.s32.totalorder %s211, %s212
      %p224 = scmp.eq.s32.totalorder %s29, 1
      %p225 = por %p223, %p224
      %p227 = scmp.ne.s32.totalorder %s212, %s226
      %p228 = scmp.eq.s32.totalorder %s29, 0
      %p229 = por %p227, %p228
      %s231 = sadd.s32 %s230, 1
      %p234 = scmp.eq.s32.totalorder %s23, 1
      %p235 = scmp.ne.s32.totalorder %s230, %s232
      %p236 = scmp.eq.s32.totalorder %s23, 0
      %p237 = por %p235, %p236
      %p238 = scmp.ne.s32.totalorder %s230, %s232
      %p239 = scmp.eq.s32.totalorder %s28, 1
      %p240 = por %p238, %p239
      %p241 = scmp.ne.s32.totalorder %s232, %s233
      %p242 = scmp.eq.s32.totalorder %s28, 0
      %p243 = por %p241, %p242
      %p244 = scmp.ne.s32.totalorder %s232, %s233
      %p245 = scmp.eq.s32.totalorder %s29, 1
      %p246 = por %p244, %p245
      %p248 = scmp.ne.s32.totalorder %s233, %s247
      %p249 = scmp.eq.s32.totalorder %s29, 0
      %p250 = por %p248, %p249
      %s252 = sadd.s32 %s251, 1
      %p255 = scmp.eq.s32.totalorder %s23, 1
      %p256 = scmp.ne.s32.totalorder %s251, %s253
      %p257 = scmp.eq.s32.totalorder %s23, 0
      %p258 = por %p256, %p257
      %p259 = scmp.ne.s32.totalorder %s251, %s253
      %p260 = scmp.eq.s32.totalorder %s28, 1
      %p261 = por %p259, %p260
      %p262 = scmp.ne.s32.totalorder %s253, %s254
      %p263 = scmp.eq.s32.totalorder %s28, 0
      %p264 = por %p262, %p263
      %p265 = scmp.ne.s32.totalorder %s253, %s254
      %p266 = scmp.eq.s32.totalorder %s29, 1
      %p267 = por %p265, %p266
      %p269 = scmp.ne.s32.totalorder %s254, %s268
      %p270 = scmp.eq.s32.totalorder %s29, 0
      %p271 = por %p269, %p270
      %s273 = sadd.s32 %s272, 1
      %p276 = scmp.eq.s32.totalorder %s23, 1
      %p277 = scmp.ne.s32.totalorder %s272, %s274
      %p278 = scmp.eq.s32.totalorder %s23, 0
      %p279 = por %p277, %p278
      %p280 = scmp.ne.s32.totalorder %s272, %s274
      %p281 = scmp.eq.s32.totalorder %s28, 1
      %p282 = por %p280, %p281
      %p283 = scmp.ne.s32.totalorder %s274, %s275
      %p284 = scmp.eq.s32.totalorder %s28, 0
      %p285 = por %p283, %p284
      %p286 = scmp.ne.s32.totalorder %s274, %s275
      %p287 = scmp.eq.s32.totalorder %s29, 1
      %p288 = por %p286, %p287
      %p290 = scmp.ne.s32.totalorder %s275, %s289
      %p291 = scmp.eq.s32.totalorder %s29, 0
      %p292 = por %p290, %p291
      %s294 = sadd.s32 %s293, 1
      %p297 = scmp.eq.s32.totalorder %s23, 1
      %p298 = scmp.ne.s32.totalorder %s293, %s295
      %p299 = scmp.eq.s32.totalorder %s23, 0
      %p300 = por %p298, %p299
      %p301 = scmp.ne.s32.totalorder %s293, %s295
      %p302 = scmp.eq.s32.totalorder %s28, 1
      %p303 = por %p301, %p302
      %p304 = scmp.ne.s32.totalorder %s295, %s296
      %p305 = scmp.eq.s32.totalorder %s28, 0
      %p306 = por %p304, %p305
      %p307 = scmp.ne.s32.totalorder %s295, %s296
      %p308 = scmp.eq.s32.totalorder %s29, 1
      %p309 = por %p307, %p308
      %p311 = scmp.ne.s32.totalorder %s296, %s310
      %p312 = scmp.eq.s32.totalorder %s29, 0
      %p313 = por %p311, %p312
      %s315 = sadd.s32 %s314, 1
      %p318 = scmp.eq.s32.totalorder %s23, 1
      %p319 = scmp.ne.s32.totalorder %s314, %s316
      %p320 = scmp.eq.s32.totalorder %s23, 0
      %p321 = por %p319, %p320
      %p322 = scmp.ne.s32.totalorder %s314, %s316
      %p323 = scmp.eq.s32.totalorder %s28, 1
      %p324 = por %p322, %p323
      %p325 = scmp.ne.s32.totalorder %s316, %s317
      %p326 = scmp.eq.s32.totalorder %s28, 0
      %p327 = por %p325, %p326
      %p328 = scmp.ne.s32.totalorder %s316, %s317
      %p329 = scmp.eq.s32.totalorder %s29, 1
      %p330 = por %p328, %p329
      %p332 = scmp.ne.s32.totalorder %s317, %s331
      %p333 = scmp.eq.s32.totalorder %s29, 0
      %p334 = por %p332, %p333
      %s335 = ssub.s32 %s23, %s30
      %p336 = scmp.eq.s32.totalorder %s335, 0
      %s338 = sadd.s32 %s337, 1
      %s339 = scalar_select %p336, %s337, %s338
      %p342 = pneg %p336
      %p343 = scmp.eq.s32.totalorder %s23, 1
      %p344 = por %p342, %p343
      %p345 = scmp.ne.s32.totalorder %s337, %s340
      %p346 = scmp.eq.s32.totalorder %s23, 0
      %p347 = por %p345, %p346
      %p348 = scmp.ne.s32.totalorder %s337, %s340
      %p349 = scmp.eq.s32.totalorder %s28, 1
      %p350 = por %p348, %p349
      %p351 = scmp.ne.s32.totalorder %s340, %s341
      %p352 = scmp.eq.s32.totalorder %s28, 0
      %p353 = por %p351, %p352
      %p354 = scmp.ne.s32.totalorder %s340, %s341
      %p355 = scmp.eq.s32.totalorder %s29, 1
      %p356 = por %p354, %p355
      %p358 = scmp.ne.s32.totalorder %s341, %s357
      %p359 = scmp.eq.s32.totalorder %s29, 0
      %p360 = por %p358, %p359
      %p361 = scmp.le.s32.totalorder 1, %s23
      %p362 = scmp.lt.s32.totalorder %s23, 3
      %p363 = pnand %p361, %p362
      %p364 = pneg %p363
      // Predicated region
      $region9: #{nlp_model_forward.5} parent=5 // pred_check
        _
      $region10: #{nlp_model_forward.5} parent=5 // pred_check_branch
        %366 = sbr.rel (%p363) target = $region12
      $region11: #{nlp_model_forward.5} parent=5 // pred_region
        %s367 = ssub.s32 %s23, 1
        // Predicated region
        $region13: #{nlp_model_forward.5} parent=11 // pred_check
          %p368 = pneg %p96
        $region14: #{nlp_model_forward.5} parent=11 // pred_check_branch
          %370 = sbr.rel (%p368) target = $region16
        $region15: #{nlp_model_forward.5} parent=11 // pred_region
          %372 = vsyncadd [#allocation3], 0
          %s373 = sshll.u32 %s2, 4
          %s374 = int_to_ptr.hbm [resolvable:$true] %s373
          %s375 = sshll.u32 [#allocation2], 4
          %s376 = int_to_ptr.vmem [resolvable:$true] %s375
          %381 = dma.hbm_to_vmem [thread:$0]  %s374, 3072, %s376, [#allocation3], 192, 192, 12
        $region16: #{nlp_model_forward.5} parent=11 // pred_fallthru
          _
        // Predicated region
        $region17: #{nlp_model_forward.5} parent=11 // pred_check
          %p382 = pneg %p117
        $region18: #{nlp_model_forward.5} parent=11 // pred_check_branch
          %384 = sbr.rel (%p382) target = $region20
        $region19: #{nlp_model_forward.5} parent=11 // pred_region
          _
        $region20: #{nlp_model_forward.5} parent=11 // pred_fallthru
          _
        // Predicated region
        $region21: #{nlp_model_forward.5} parent=11 // pred_check
          %p385 = pneg %p138
        $region22: #{nlp_model_forward.5} parent=11 // pred_check_branch
          %387 = sbr.rel (%p385) target = $region24
        $region23: #{nlp_model_forward.5} parent=11 // pred_region
          %389 = vsyncadd [#allocation5], 0
          %s390 = sshll.u32 %s4, 4
          %s391 = int_to_ptr.hbm [resolvable:$true] %s390
          %s392 = sshll.u32 [#allocation4], 4
          %s393 = int_to_ptr.vmem [resolvable:$true] %s392
          %398 = dma.hbm_to_vmem [thread:$0]  %s391, 1024, %s393, [#allocation5], 64, 64, 4
        $region24: #{nlp_model_forward.5} parent=11 // pred_fallthru
          _
        // Predicated region
        $region25: #{nlp_model_forward.5} parent=11 // pred_check
          %p399 = pneg %p159
        $region26: #{nlp_model_forward.5} parent=11 // pred_check_branch
          %401 = sbr.rel (%p399) target = $region28
        $region27: #{nlp_model_forward.5} parent=11 // pred_region
          _
        $region28: #{nlp_model_forward.5} parent=11 // pred_fallthru
          _
        // Predicated region
        $region29: #{nlp_model_forward.5} parent=11 // pred_check
          %p402 = pneg %p180
        $region30: #{nlp_model_forward.5} parent=11 // pred_check_branch
          %404 = sbr.rel (%p402) target = $region32
        $region31: #{nlp_model_forward.5} parent=11 // pred_region
          _
        $region32: #{nlp_model_forward.5} parent=11 // pred_fallthru
          _
        // Predicated region
        $region33: #{nlp_model_forward.5} parent=11 // pred_check
          %p405 = pneg %p201
        $region34: #{nlp_model_forward.5} parent=11 // pred_check_branch
          %407 = sbr.rel (%p405) target = $region36
        $region35: #{nlp_model_forward.5} parent=11 // pred_region
          _
        $region36: #{nlp_model_forward.5} parent=11 // pred_fallthru
          _
        // Predicated region
        $region37: #{nlp_model_forward.5} parent=11 // pred_check
          %p408 = pneg %p222
        $region38: #{nlp_model_forward.5} parent=11 // pred_check_branch
          %410 = sbr.rel (%p408) target = $region40
        $region39: #{nlp_model_forward.5} parent=11 // pred_region
          %412 = vsyncadd [#allocation5], 0
          %s413 = sshll.u32 %s8, 4
          %s414 = int_to_ptr.hbm [resolvable:$true] %s413
          %s415 = sshll.u32 [#allocation6], 4
          %s416 = int_to_ptr.vmem [resolvable:$true] %s415
          %421 = dma.hbm_to_vmem [thread:$0]  %s414, 2048, %s416, [#allocation5], 128, 128, 8
        $region40: #{nlp_model_forward.5} parent=11 // pred_fallthru
          _
        // Predicated region
        $region41: #{nlp_model_forward.5} parent=11 // pred_check
          %p422 = pneg %p243
        $region42: #{nlp_model_forward.5} parent=11 // pred_check_branch
          %424 = sbr.rel (%p422) target = $region44
        $region43: #{nlp_model_forward.5} parent=11 // pred_region
          _
        $region44: #{nlp_model_forward.5} parent=11 // pred_fallthru
          _
        // Predicated region
        $region45: #{nlp_model_forward.5} parent=11 // pred_check
          %p425 = pneg %p264
        $region46: #{nlp_model_forward.5} parent=11 // pred_check_branch
          %427 = sbr.rel (%p425) target = $region48
        $region47: #{nlp_model_forward.5} parent=11 // pred_region
          %429 = vsyncadd [#allocation8], 0
          %s430 = sshll.u32 %s10, 4
          %s431 = int_to_ptr.hbm [resolvable:$true] %s430
          %s432 = sshll.u32 [#allocation7], 4
          %s433 = int_to_ptr.vmem [resolvable:$true] %s432
          %438 = dma.hbm_to_vmem [thread:$0]  %s431, 2048, %s433, [#allocation8], 64, 64, 4
        $region48: #{nlp_model_forward.5} parent=11 // pred_fallthru
          _
        // Predicated region
        $region49: #{nlp_model_forward.5} parent=11 // pred_check
          %p439 = pneg %p285
        $region50: #{nlp_model_forward.5} parent=11 // pred_check_branch
          %441 = sbr.rel (%p439) target = $region52
        $region51: #{nlp_model_forward.5} parent=11 // pred_region
          _
        $region52: #{nlp_model_forward.5} parent=11 // pred_fallthru
          _
        // Predicated region
        $region53: #{nlp_model_forward.5} parent=11 // pred_check
          %p442 = pneg %p306
        $region54: #{nlp_model_forward.5} parent=11 // pred_check_branch
          %444 = sbr.rel (%p442) target = $region56
        $region55: #{nlp_model_forward.5} parent=11 // pred_region
          _
        $region56: #{nlp_model_forward.5} parent=11 // pred_fallthru
          _
        // Predicated region
        $region57: #{nlp_model_forward.5} parent=11 // pred_check
          %p445 = pneg %p327
        $region58: #{nlp_model_forward.5} parent=11 // pred_check_branch
          %447 = sbr.rel (%p445) target = $region60
        $region59: #{nlp_model_forward.5} parent=11 // pred_region
          _
        $region60: #{nlp_model_forward.5} parent=11 // pred_fallthru
          _
      $region12: #{nlp_model_forward.5} parent=5 // pred_fallthru
        _
      %p448 = scmp.lt.s32.totalorder %s23, 2
      // Predicated region
      $region61: #{nlp_model_forward.5} parent=5 // pred_check
        %p449 = pneg %p448
      $region62: #{nlp_model_forward.5} parent=5 // pred_check_branch
        %451 = sbr.rel (%p449) target = $region64
      $region63: #{nlp_model_forward.5} parent=5 // pred_region
        // Predicated region
        $region65: #{nlp_model_forward.5} parent=63 // pred_check
          %p452 = pneg %p43
        $region66: #{nlp_model_forward.5} parent=63 // pred_check_branch
          %454 = sbr.rel (%p452) target = $region68
        $region67: #{nlp_model_forward.5} parent=63 // pred_region
          %p455 = scmp.lt.s32.totalorder %s23, 1
          %s456 = scalar_select %p455, %s23, 1
          %s457 = smul.addr %s456, 8
          %s458 = scalar_lea.vmem %s0, %s457
        $region68: #{nlp_model_forward.5} parent=63 // pred_fallthru
          _
        // Predicated region
        $region69: #{nlp_model_forward.5} parent=63 // pred_check
          %p459 = pneg %p69
        $region70: #{nlp_model_forward.5} parent=63 // pred_check_branch
          %461 = sbr.rel (%p459) target = $region72
        $region71: #{nlp_model_forward.5} parent=63 // pred_region
          %p462 = scmp.lt.s32.totalorder %s23, 1
          %s463 = scalar_select %p462, %s23, 1
          %s464 = scalar_lea.vmem %s1, %s463
        $region72: #{nlp_model_forward.5} parent=63 // pred_fallthru
          _
      $region64: #{nlp_model_forward.5} parent=5 // pred_fallthru
        _
      %p465 = scmp.le.s32.totalorder 1, %s23
      %p466 = scmp.lt.s32.totalorder %s23, 3
      %p467 = pnand %p465, %p466
      %p468 = pneg %p467
      // Predicated region
      $region73: #{nlp_model_forward.5} parent=5 // pred_check
        _
      $region74: #{nlp_model_forward.5} parent=5 // pred_check_branch
        %470 = sbr.rel (%p467) target = $region76
      $region75: #{nlp_model_forward.5} parent=5 // pred_region
        %s471 = ssub.s32 %s23, 1
        // Predicated region
        $region77: #{nlp_model_forward.5} parent=75 // pred_check
          %p472 = pneg %p96
        $region78: #{nlp_model_forward.5} parent=75 // pred_check_branch
          %474 = sbr.rel (%p472) target = $region80
        $region79: #{nlp_model_forward.5} parent=75 // pred_region
          %476 = dma.done [#allocation3], 3072
        $region80: #{nlp_model_forward.5} parent=75 // pred_fallthru
          _
        // Predicated region
        $region81: #{nlp_model_forward.5} parent=75 // pred_check
          %p477 = pneg %p138
        $region82: #{nlp_model_forward.5} parent=75 // pred_check_branch
          %479 = sbr.rel (%p477) target = $region84
        $region83: #{nlp_model_forward.5} parent=75 // pred_region
          %481 = dma.done [#allocation5], 1024
        $region84: #{nlp_model_forward.5} parent=75 // pred_fallthru
          _
        // Predicated region
        $region85: #{nlp_model_forward.5} parent=75 // pred_check
          %p482 = pneg %p222
        $region86: #{nlp_model_forward.5} parent=75 // pred_check_branch
          %484 = sbr.rel (%p482) target = $region88
        $region87: #{nlp_model_forward.5} parent=75 // pred_region
          %486 = dma.done [#allocation5], 2048
        $region88: #{nlp_model_forward.5} parent=75 // pred_fallthru
          _
        // Predicated region
        $region89: #{nlp_model_forward.5} parent=75 // pred_check
          %p487 = pneg %p264
        $region90: #{nlp_model_forward.5} parent=75 // pred_check_branch
          %489 = sbr.rel (%p487) target = $region92
        $region91: #{nlp_model_forward.5} parent=75 // pred_region
          %491 = dma.done [#allocation8], 2048
        $region92: #{nlp_model_forward.5} parent=75 // pred_fallthru
          _
        %p492 = scmp.lt.s32.totalorder %s28, 1
        %s493 = scalar_select %p492, %s28, 1
        %s494 = smul.addr %s493, 8
        %s495 = scalar_lea.vmem %s0, %s494
        %p496 = pneg %p49
        %p497 = pneg %p46
        %p498 = scmp.lt.s32.totalorder %s28, 1
        %s499 = scalar_select %p498, %s28, 1
        %s500 = scalar_lea.vmem %s1, %s499
        %p501 = pneg %p75
        %p502 = pneg %p72
        %p503 = pneg %p96
        %p504 = pneg %p93
        %p505 = pneg %p117
        %p506 = pneg %p114
        %p507 = pneg %p138
        %p508 = pneg %p135
        %p509 = pneg %p159
        %p510 = pneg %p156
        %p511 = pneg %p180
        %p512 = pneg %p177
        %p513 = pneg %p201
        %p514 = pneg %p198
        %p515 = pneg %p222
        %p516 = pneg %p219
        %p517 = pneg %p243
        %p518 = pneg %p240
        %p519 = pneg %p264
        %p520 = pneg %p261
        %p521 = pneg %p285
        %p522 = pneg %p282
        %p523 = pneg %p306
        %p524 = pneg %p303
        %p525 = pneg %p327
        %p526 = pneg %p324
        %p527 = pneg %p353
        %p528 = pneg %p350
        %p529 = scmp.lt.s32.totalorder %s28, 1
        %s530 = scalar_select %p529, %s28, 1
        %s531 = smul.addr %s530, 8
        %s532 = scalar_lea.vmem %s14, %s531
        %p533 = scmp.lt.s32.totalorder %s28, 1
        %s534 = scalar_select %p533, %s28, 1
        %s535 = smul.addr %s534, 8
        %s536 = scalar_lea.vmem %s0, %s535
        %p537 = scmp.lt.s32.totalorder %s28, 1
        %s538 = scalar_select %p537, %s28, 1
        %s539 = scalar_lea.vmem %s1, %s538
        %p540 = scmp.lt.s32.totalorder %s28, 1
        %s541 = scalar_select %p540, %s28, 1
        %s542 = smul.addr %s541, 8
        %s543 = scalar_lea.vmem %s14, %s542
        %v545 = vld [vmem:[%s536] sm:$0xff]
        %v546 = vld [vmem:[%s539] sm:$0x1]
        %v547 = vpack.c.bf16 %v545, %v545
        %v548 = vld [vmem:[#allocation2] sm:$0xff]
        %v549 = vld [vmem:[#allocation2 + $0x8] sm:$0xf]
        %v550 = vld [vmem:[#allocation2 + $0xc] sm:$0xff]
        %v551 = vld [vmem:[#allocation2 + $0x14] sm:$0xf]
        %v552 = vld [vmem:[#allocation2 + $0x18] sm:$0xff]
        %v553 = vld [vmem:[#allocation2 + $0x20] sm:$0xf]
        %v554 = vld [vmem:[#allocation2 + $0x24] sm:$0xff]
        %v555 = vld [vmem:[#allocation2 + $0x2c] sm:$0xf]
        %v556 = vld [vmem:[#allocation2 + $0x30] sm:$0xff]
        %v557 = vld [vmem:[#allocation2 + $0x38] sm:$0xf]
        %v558 = vld [vmem:[#allocation2 + $0x3c] sm:$0xff]
        %v559 = vld [vmem:[#allocation2 + $0x44] sm:$0xf]
        %v560 = vld [vmem:[#allocation2 + $0x48] sm:$0xff]
        %v561 = vld [vmem:[#allocation2 + $0x50] sm:$0xf]
        %v562 = vld [vmem:[#allocation2 + $0x54] sm:$0xff]
        %v563 = vld [vmem:[#allocation2 + $0x5c] sm:$0xf]
        %v564 = vld [vmem:[#allocation2 + $0x60] sm:$0xff]
        %v565 = vld [vmem:[#allocation2 + $0x68] sm:$0xf]
        %v566 = vld [vmem:[#allocation2 + $0x6c] sm:$0xff]
        %v567 = vld [vmem:[#allocation2 + $0x74] sm:$0xf]
        %v568 = vld [vmem:[#allocation2 + $0x78] sm:$0xff]
        %v569 = vld [vmem:[#allocation2 + $0x80] sm:$0xf]
        %v570 = vld [vmem:[#allocation2 + $0x84] sm:$0xff]
        %v571 = vld [vmem:[#allocation2 + $0x8c] sm:$0xf]
        %v572 = vld [vmem:[#allocation2 + $0x90] sm:$0xff]
        %v573 = vld [vmem:[#allocation2 + $0x98] sm:$0xf]
        %v574 = vld [vmem:[#allocation2 + $0x9c] sm:$0xff]
        %v575 = vld [vmem:[#allocation2 + $0xa4] sm:$0xf]
        %v576 = vld [vmem:[#allocation2 + $0xa8] sm:$0xff]
        %v577 = vld [vmem:[#allocation2 + $0xb0] sm:$0xf]
        %v578 = vld [vmem:[#allocation2 + $0xb4] sm:$0xff]
        %v579 = vld [vmem:[#allocation2 + $0xbc] sm:$0xf]
        %v580 = vld [vmem:[%s3] sm:$0x7]
        %v582 = vperm.slane %v580, 0
        %v583 = vperm.slane %v580, 1
        %v584 = vperm.slane %v580, 2
        %v620 = vunpack.c.l.b16 %v548
        %v621 = vunpack.c.h.b16 %v548
        %v622 = vunpack.c.l.b16 %v549
        %v623 = vunpack.c.l.b16 %v550
        %v624 = vunpack.c.h.b16 %v550
        %v625 = vunpack.c.l.b16 %v551
        %v626 = vunpack.c.l.b16 %v552
        %v627 = vunpack.c.h.b16 %v552
        %v628 = vunpack.c.l.b16 %v553
        %v629 = vunpack.c.l.b16 %v554
        %v630 = vunpack.c.h.b16 %v554
        %v631 = vunpack.c.l.b16 %v555
        %v632 = vunpack.c.l.b16 %v556
        %v633 = vunpack.c.h.b16 %v556
        %v634 = vunpack.c.l.b16 %v557
        %v635 = vunpack.c.l.b16 %v558
        %v636 = vunpack.c.h.b16 %v558
        %v637 = vunpack.c.l.b16 %v559
        %v638 = vunpack.c.l.b16 %v560
        %v639 = vunpack.c.h.b16 %v560
        %v640 = vunpack.c.l.b16 %v561
        %v641 = vunpack.c.l.b16 %v562
        %v642 = vunpack.c.h.b16 %v562
        %v643 = vunpack.c.l.b16 %v563
        %v644 = vunpack.c.l.b16 %v564
        %v645 = vunpack.c.h.b16 %v564
        %v646 = vunpack.c.l.b16 %v565
        %v647 = vunpack.c.l.b16 %v566
        %v648 = vunpack.c.h.b16 %v566
        %v649 = vunpack.c.l.b16 %v567
        %v650 = vunpack.c.l.b16 %v568
        %v651 = vunpack.c.h.b16 %v568
        %v652 = vunpack.c.l.b16 %v569
        %v653 = vunpack.c.l.b16 %v570
        %v654 = vunpack.c.h.b16 %v570
        %v655 = vunpack.c.l.b16 %v571
        %v656 = vunpack.c.l.b16 %v572
        %v657 = vunpack.c.h.b16 %v572
        %v658 = vunpack.c.l.b16 %v573
        %v659 = vunpack.c.l.b16 %v574
        %v660 = vunpack.c.h.b16 %v574
        %v661 = vunpack.c.l.b16 %v575
        %v662 = vunpack.c.l.b16 %v576
        %v663 = vunpack.c.h.b16 %v576
        %v664 = vunpack.c.l.b16 %v577
        %v665 = vunpack.c.l.b16 %v578
        %v666 = vunpack.c.h.b16 %v578
        %v667 = vunpack.c.l.b16 %v579
        %v668 = vpack.c.b16 %v623, %v620
        %v669 = vpack.c.b16 %v624, %v621
        %v670 = vpack.c.b16 %v625, %v622
        %v671 = vpack.c.b16 %v629, %v626
        %v672 = vpack.c.b16 %v630, %v627
        %v673 = vpack.c.b16 %v631, %v628
        %v674 = vpack.c.b16 %v635, %v632
        %v675 = vpack.c.b16 %v636, %v633
        %v676 = vpack.c.b16 %v637, %v634
        %v677 = vpack.c.b16 %v641, %v638
        %v678 = vpack.c.b16 %v642, %v639
        %v679 = vpack.c.b16 %v643, %v640
        %v680 = vpack.c.b16 %v647, %v644
        %v681 = vpack.c.b16 %v648, %v645
        %v682 = vpack.c.b16 %v649, %v646
        %v683 = vpack.c.b16 %v653, %v650
        %v684 = vpack.c.b16 %v654, %v651
        %v685 = vpack.c.b16 %v655, %v652
        %v686 = vpack.c.b16 %v659, %v656
        %v687 = vpack.c.b16 %v660, %v657
        %v688 = vpack.c.b16 %v661, %v658
        %v689 = vpack.c.b16 %v665, %v662
        %v690 = vpack.c.b16 %v666, %v663
        %v691 = vpack.c.b16 %v667, %v664
        %716 = vmatpush.bf16.msra.mxu0 %v689
        %717 = vmatpush.bf16.msra.mxu0 %v686
        %718 = vmatpush.bf16.msra.mxu0 %v683
        %719 = vmatpush.bf16.msra.mxu0 %v680
        %720 = vmatpush.bf16.msra.mxu0 %v677
        %721 = vmatpush.bf16.msra.mxu0 %v674
        %722 = vmatpush.bf16.msra.mxu0 %v671
        %723 = vmatpush.bf16.msra.mxu0 %v668
        %724 = vmatmul.bf16.gmra.mxu0 %v547
        %v725 = vpop.f32.mrf.mxu0
        %v726 = vadd.f32 %v582, %v725
        %v727 = vpop.f32.mrf.mxu0
        %728 = vdwg.mxu0
        %729 = vmatpush.bf16.msra.mxu0 %v690
        %730 = vmatpush.bf16.msra.mxu0 %v687
        %731 = vmatpush.bf16.msra.mxu0 %v684
        %732 = vmatpush.bf16.msra.mxu0 %v681
        %733 = vmatpush.bf16.msra.mxu0 %v678
        %734 = vmatpush.bf16.msra.mxu0 %v675
        %735 = vmatpush.bf16.msra.mxu0 %v672
        %736 = vmatpush.bf16.msra.mxu0 %v669
        %737 = vmatmul.bf16.gmra.mxu0 %v547
        %v738 = vpop.f32.mrf.mxu0
        %v739 = vadd.f32 %v583, %v738
        %v740 = vpop.f32.mrf.mxu0
        %741 = vdwg.mxu0
        %742 = vmatpush.bf16.msra.mxu0 %v691
        %743 = vmatpush.bf16.msra.mxu0 %v688
        %744 = vmatpush.bf16.msra.mxu0 %v685
        %745 = vmatpush.bf16.msra.mxu0 %v682
        %746 = vmatpush.bf16.msra.mxu0 %v679
        %747 = vmatpush.bf16.msra.mxu0 %v676
        %748 = vmatpush.bf16.msra.mxu0 %v673
        %749 = vmatpush.bf16.msra.mxu0 %v670
        %750 = vmatmul.bf16.gmra.mxu0 %v547
        %v751 = vpop.f32.mrf.mxu0
        %v752 = vadd.f32 %v584, %v751
        %v753 = vpop.f32.mrf.mxu0
        %754 = vdwg.mxu0
        %v755 = vpack.c.bf16 %v726, %v726
        %v756 = vpack.c.bf16 %v739, %v739
        %v757 = vpack.c.bf16 %v752, %v752
        %vm758 = vcmask 523264
        %v760 = vsel %vm758, %v755, 0
        %v763 = vsel %vm758, %v756, 0
        %765 = vmatpush.bf16.xpose.msra.mxu0 0
        %766 = vmatpush.bf16.xpose.msra.mxu0 0
        %767 = vmatpush.bf16.xpose.msra.mxu0 0
        %768 = vmatpush.bf16.xpose.msra.mxu0 0
        %769 = vmatpush.bf16.xpose.msra.mxu0 0
        %770 = vmatpush.bf16.xpose.msra.mxu0 0
        %771 = vmatpush.bf16.xpose.msra.mxu0 0
        %772 = vmatpush.bf16.xpose.msra.mxu0 %v763
        %773 = vmatmul.bf16.gmra.mxu0 %v760
        %v774 = vpop.f32.mrf.mxu0
        %v775 = vadd.f32 0.0, %v774
        %v776 = vpop.f32.mrf.mxu0
        %777 = vdwg.mxu0
        %v778 = vmul.f32 %v775, 0.125
        %v780 = vperm.slane %v546, 0
        %v782 = vadd.f32 %v778, %v780
        %vm783 = vcmask 64512
        %v784 = vsel %vm783, %v782, -inf
        %785 = vmax.xlane.f32.xlu0 %v784
        %v786 = vpop.xlane.xlu0 %785
        %v787 = vsub.f32 %v782, %v786
        %v788 = vmul.f32 %v787, 1.442695
        %v789 = vpow.pop %v788
        %v790 = vsel %vm783, %v789, 0.0
        %791 = vadd.xlane.f32.xlu0 %v790
        %v792 = vpop.xlane.xlu0 %791
        %v793 = vrcp.pop %v792
        %v794 = vmul.f32 %v789, %v793
        %v795 = vpack.c.bf16 %v794, %v794
        %v797 = vsel %vm783, %v795, 0
        %vm799 = vcmask 1043456
        %v801 = vsel %vm799, %v757, 0
        %803 = vmatpush.bf16.msra.mxu0 0
        %804 = vmatpush.bf16.msra.mxu0 0
        %805 = vmatpush.bf16.msra.mxu0 0
        %806 = vmatpush.bf16.msra.mxu0 0
        %807 = vmatpush.bf16.msra.mxu0 0
        %808 = vmatpush.bf16.msra.mxu0 0
        %809 = vmatpush.bf16.msra.mxu0 0
        %810 = vmatpush.bf16.msra.mxu0 %v801
        %811 = vmatmul.bf16.gmra.mxu0 %v797
        %v812 = vpop.f32.mrf.mxu0
        %v813 = vadd.f32 0.0, %v812
        %v814 = vpop.f32.mrf.mxu0
        %815 = vdwg.mxu0
        %817 = vrot.lane.b32.xlu0 %v755, 64
        %v818 = vpop.permute.xlu0 %817
        %820 = vrot.lane.b32.xlu0 %v756, 64
        %v821 = vpop.permute.xlu0 %820
        %v823 = vsel %vm758, %v818, 0
        %v826 = vsel %vm758, %v821, 0
        %828 = vmatpush.bf16.xpose.msra.mxu0 0
        %829 = vmatpush.bf16.xpose.msra.mxu0 0
        %830 = vmatpush.bf16.xpose.msra.mxu0 0
        %831 = vmatpush.bf16.xpose.msra.mxu0 0
        %832 = vmatpush.bf16.xpose.msra.mxu0 0
        %833 = vmatpush.bf16.xpose.msra.mxu0 0
        %834 = vmatpush.bf16.xpose.msra.mxu0 0
        %835 = vmatpush.bf16.xpose.msra.mxu0 %v826
        %836 = vmatmul.bf16.gmra.mxu0 %v823
        %v837 = vpop.f32.mrf.mxu0
        %v838 = vadd.f32 0.0, %v837
        %v839 = vpop.f32.mrf.mxu0
        %840 = vdwg.mxu0
        %v841 = vmul.f32 %v838, 0.125
        %v842 = vadd.f32 %v841, %v780
        %v843 = vsel %vm783, %v842, -inf
        %844 = vmax.xlane.f32.xlu0 %v843
        %v845 = vpop.xlane.xlu0 %844
        %v846 = vsub.f32 %v842, %v845
        %v847 = vmul.f32 %v846, 1.442695
        %v848 = vpow.pop %v847
        %v849 = vsel %vm783, %v848, 0.0
        %850 = vadd.xlane.f32.xlu0 %v849
        %v851 = vpop.xlane.xlu0 %850
        %v852 = vrcp.pop %v851
        %v853 = vmul.f32 %v848, %v852
        %v854 = vpack.c.bf16 %v853, %v853
        %856 = vrot.lane.b32.xlu0 %v757, 64
        %v857 = vpop.permute.xlu0 %856
        %v859 = vsel %vm783, %v854, 0
        %v862 = vsel %vm799, %v857, 0
        %864 = vmatpush.bf16.msra.mxu0 0
        %865 = vmatpush.bf16.msra.mxu0 0
        %866 = vmatpush.bf16.msra.mxu0 0
        %867 = vmatpush.bf16.msra.mxu0 0
        %868 = vmatpush.bf16.msra.mxu0 0
        %869 = vmatpush.bf16.msra.mxu0 0
        %870 = vmatpush.bf16.msra.mxu0 0
        %871 = vmatpush.bf16.msra.mxu0 %v862
        %872 = vmatmul.bf16.gmra.mxu0 %v859
        %v873 = vpop.f32.mrf.mxu0
        %v874 = vadd.f32 0.0, %v873
        %v875 = vpop.f32.mrf.mxu0
        %876 = vdwg.mxu0
        %878 = vrot.lane.b32.xlu0 %v874, 64
        %v879 = vpop.permute.xlu0 %878
        %v881 = vsel %vm758, %v813, %v879
        %v882 = vpack.c.bf16 %v881, %v881
        %v883 = vld [vmem:[#allocation4] sm:$0xf]
        %v884 = vld [vmem:[#allocation4 + $0x4] sm:$0xf]
        %v885 = vld [vmem:[#allocation4 + $0x8] sm:$0xf]
        %v886 = vld [vmem:[#allocation4 + $0xc] sm:$0xf]
        %v887 = vld [vmem:[#allocation4 + $0x10] sm:$0xf]
        %v888 = vld [vmem:[#allocation4 + $0x14] sm:$0xf]
        %v889 = vld [vmem:[#allocation4 + $0x18] sm:$0xf]
        %v890 = vld [vmem:[#allocation4 + $0x1c] sm:$0xf]
        %v891 = vld [vmem:[#allocation4 + $0x20] sm:$0xf]
        %v892 = vld [vmem:[#allocation4 + $0x24] sm:$0xf]
        %v893 = vld [vmem:[#allocation4 + $0x28] sm:$0xf]
        %v894 = vld [vmem:[#allocation4 + $0x2c] sm:$0xf]
        %v895 = vld [vmem:[#allocation4 + $0x30] sm:$0xf]
        %v896 = vld [vmem:[#allocation4 + $0x34] sm:$0xf]
        %v897 = vld [vmem:[#allocation4 + $0x38] sm:$0xf]
        %v898 = vld [vmem:[#allocation4 + $0x3c] sm:$0xf]
        %v899 = vld [vmem:[%s5] sm:$0x1]
        %v901 = vperm.slane %v899, 0
        %v919 = vunpack.c.l.b16 %v883
        %v920 = vunpack.c.l.b16 %v884
        %v921 = vunpack.c.l.b16 %v885
        %v922 = vunpack.c.l.b16 %v886
        %v923 = vunpack.c.l.b16 %v887
        %v924 = vunpack.c.l.b16 %v888
        %v925 = vunpack.c.l.b16 %v889
        %v926 = vunpack.c.l.b16 %v890
        %v927 = vunpack.c.l.b16 %v891
        %v928 = vunpack.c.l.b16 %v892
        %v929 = vunpack.c.l.b16 %v893
        %v930 = vunpack.c.l.b16 %v894
        %v931 = vunpack.c.l.b16 %v895
        %v932 = vunpack.c.l.b16 %v896
        %v933 = vunpack.c.l.b16 %v897
        %v934 = vunpack.c.l.b16 %v898
        %v935 = vpack.c.b16 %v920, %v919
        %v936 = vpack.c.b16 %v922, %v921
        %v937 = vpack.c.b16 %v924, %v923
        %v938 = vpack.c.b16 %v926, %v925
        %v939 = vpack.c.b16 %v928, %v927
        %v940 = vpack.c.b16 %v930, %v929
        %v941 = vpack.c.b16 %v932, %v931
        %v942 = vpack.c.b16 %v934, %v933
        %951 = vmatpush.bf16.msra.mxu0 %v942
        %952 = vmatpush.bf16.msra.mxu0 %v941
        %953 = vmatpush.bf16.msra.mxu0 %v940
        %954 = vmatpush.bf16.msra.mxu0 %v939
        %955 = vmatpush.bf16.msra.mxu0 %v938
        %956 = vmatpush.bf16.msra.mxu0 %v937
        %957 = vmatpush.bf16.msra.mxu0 %v936
        %958 = vmatpush.bf16.msra.mxu0 %v935
        %959 = vmatmul.bf16.gmra.mxu0 %v882
        %v960 = vpop.f32.mrf.mxu0
        %v961 = vadd.f32 %v901, %v960
        %v962 = vpop.f32.mrf.mxu0
        %963 = vdwg.mxu0
        %v964 = vadd.f32 %v961, %v545
        %v965 = vld [vmem:[%s6] sm:$0x1]
        %v966 = vld [vmem:[%s7] sm:$0x1]
        %967 = vadd.xlane.f32.xlu0 %v964
        %v968 = vpop.xlane.xlu0 %967
        %v969 = vrcp.pop 128.0
        %v970 = vmul.f32 128.0, %v969
        %v971 = vsub.f32 1.0, %v970
        %v972 = vmul.f32 %v969, %v971
        %v973 = vadd.f32 %v969, %v972
        %vm974 = vweird.f32 %v969
        %v975 = vsel %vm974, %v969, %v973
        %v976 = vmul.f32 %v968, %v975
        %v977 = vsub.f32 %v964, %v976
        %v978 = vmul.f32 %v977, %v977
        %979 = vadd.xlane.f32.xlu0 %v978
        %v980 = vpop.xlane.xlu0 %979
        %v981 = vmul.f32 %v980, %v975
        %v982 = vadd.f32 %v981, 1e-07
        %v983 = vrsqrt.pop %v982
        %v984 = vmul.f32 %v983, %v982
        %v985 = vmul.f32 %v984, %v983
        %v986 = vmul.f32 0.5, %v985
        %v987 = vsub.f32 1.5, %v986
        %v988 = vmul.f32 %v983, %v987
        %vm989 = vweird.f32 %v982
        %vm990 = vweird.f32 %v983
        %vm991 = vmor %vm989, %vm990
        %v992 = vsel %vm991, %v983, %v988
        %v993 = vmul.f32 %v977, %v992
        %v995 = vperm.slane %v965, 0
        %v997 = vmul.f32 %v993, %v995
        %v999 = vperm.slane %v966, 0
        %v1001 = vadd.f32 %v997, %v999
        %v1002 = vpack.c.bf16 %v1001, %v1001
        %v1003 = vld [vmem:[#allocation6] sm:$0xff]
        %v1004 = vld [vmem:[#allocation6 + $0x8] sm:$0xff]
        %v1005 = vld [vmem:[#allocation6 + $0x10] sm:$0xff]
        %v1006 = vld [vmem:[#allocation6 + $0x18] sm:$0xff]
        %v1007 = vld [vmem:[#allocation6 + $0x20] sm:$0xff]
        %v1008 = vld [vmem:[#allocation6 + $0x28] sm:$0xff]
        %v1009 = vld [vmem:[#allocation6 + $0x30] sm:$0xff]
        %v1010 = vld [vmem:[#allocation6 + $0x38] sm:$0xff]
        %v1011 = vld [vmem:[#allocation6 + $0x40] sm:$0xff]
        %v1012 = vld [vmem:[#allocation6 + $0x48] sm:$0xff]
        %v1013 = vld [vmem:[#allocation6 + $0x50] sm:$0xff]
        %v1014 = vld [vmem:[#allocation6 + $0x58] sm:$0xff]
        %v1015 = vld [vmem:[#allocation6 + $0x60] sm:$0xff]
        %v1016 = vld [vmem:[#allocation6 + $0x68] sm:$0xff]
        %v1017 = vld [vmem:[#allocation6 + $0x70] sm:$0xff]
        %v1018 = vld [vmem:[#allocation6 + $0x78] sm:$0xff]
        %v1019 = vld [vmem:[%s9] sm:$0x3]
        %v1021 = vperm.slane %v1019, 0
        %v1022 = vperm.slane %v1019, 1
        %v1041 = vunpack.c.l.b16 %v1003
        %v1042 = vunpack.c.h.b16 %v1003
        %v1043 = vunpack.c.l.b16 %v1004
        %v1044 = vunpack.c.h.b16 %v1004
        %v1045 = vunpack.c.l.b16 %v1005
        %v1046 = vunpack.c.h.b16 %v1005
        %v1047 = vunpack.c.l.b16 %v1006
        %v1048 = vunpack.c.h.b16 %v1006
        %v1049 = vunpack.c.l.b16 %v1007
        %v1050 = vunpack.c.h.b16 %v1007
        %v1051 = vunpack.c.l.b16 %v1008
        %v1052 = vunpack.c.h.b16 %v1008
        %v1053 = vunpack.c.l.b16 %v1009
        %v1054 = vunpack.c.h.b16 %v1009
        %v1055 = vunpack.c.l.b16 %v1010
        %v1056 = vunpack.c.h.b16 %v1010
        %v1057 = vunpack.c.l.b16 %v1011
        %v1058 = vunpack.c.h.b16 %v1011
        %v1059 = vunpack.c.l.b16 %v1012
        %v1060 = vunpack.c.h.b16 %v1012
        %v1061 = vunpack.c.l.b16 %v1013
        %v1062 = vunpack.c.h.b16 %v1013
        %v1063 = vunpack.c.l.b16 %v1014
        %v1064 = vunpack.c.h.b16 %v1014
        %v1065 = vunpack.c.l.b16 %v1015
        %v1066 = vunpack.c.h.b16 %v1015
        %v1067 = vunpack.c.l.b16 %v1016
        %v1068 = vunpack.c.h.b16 %v1016
        %v1069 = vunpack.c.l.b16 %v1017
        %v1070 = vunpack.c.h.b16 %v1017
        %v1071 = vunpack.c.l.b16 %v1018
        %v1072 = vunpack.c.h.b16 %v1018
        %v1073 = vpack.c.b16 %v1043, %v1041
        %v1074 = vpack.c.b16 %v1044, %v1042
        %v1075 = vpack.c.b16 %v1047, %v1045
        %v1076 = vpack.c.b16 %v1048, %v1046
        %v1077 = vpack.c.b16 %v1051, %v1049
        %v1078 = vpack.c.b16 %v1052, %v1050
        %v1079 = vpack.c.b16 %v1055, %v1053
        %v1080 = vpack.c.b16 %v1056, %v1054
        %v1081 = vpack.c.b16 %v1059, %v1057
        %v1082 = vpack.c.b16 %v1060, %v1058
        %v1083 = vpack.c.b16 %v1063, %v1061
        %v1084 = vpack.c.b16 %v1064, %v1062
        %v1085 = vpack.c.b16 %v1067, %v1065
        %v1086 = vpack.c.b16 %v1068, %v1066
        %v1087 = vpack.c.b16 %v1071, %v1069
        %v1088 = vpack.c.b16 %v1072, %v1070
        %1105 = vmatpush.bf16.msra.mxu0 %v1087
        %1106 = vmatpush.bf16.msra.mxu0 %v1085
        %1107 = vmatpush.bf16.msra.mxu0 %v1083
        %1108 = vmatpush.bf16.msra.mxu0 %v1081
        %1109 = vmatpush.bf16.msra.mxu0 %v1079
        %1110 = vmatpush.bf16.msra.mxu0 %v1077
        %1111 = vmatpush.bf16.msra.mxu0 %v1075
        %1112 = vmatpush.bf16.msra.mxu0 %v1073
        %1113 = vmatmul.bf16.gmra.mxu0 %v1002
        %v1114 = vpop.f32.mrf.mxu0
        %v1115 = vadd.f32 %v1021, %v1114
        %v1116 = vpop.f32.mrf.mxu0
        %1117 = vdwg.mxu0
        %1118 = vmatpush.bf16.msra.mxu0 %v1088
        %1119 = vmatpush.bf16.msra.mxu0 %v1086
        %1120 = vmatpush.bf16.msra.mxu0 %v1084
        %1121 = vmatpush.bf16.msra.mxu0 %v1082
        %1122 = vmatpush.bf16.msra.mxu0 %v1080
        %1123 = vmatpush.bf16.msra.mxu0 %v1078
        %1124 = vmatpush.bf16.msra.mxu0 %v1076
        %1125 = vmatpush.bf16.msra.mxu0 %v1074
        %1126 = vmatmul.bf16.gmra.mxu0 %v1002
        %v1127 = vpop.f32.mrf.mxu0
        %v1128 = vadd.f32 %v1022, %v1127
        %v1129 = vpop.f32.mrf.mxu0
        %1130 = vdwg.mxu0
        %v1131 = vmul.f32 %v1115, %v1115
        %v1132 = vmul.f32 %v1128, %v1128
        %v1133 = vmul.f32 %v1115, %v1131
        %v1134 = vmul.f32 %v1128, %v1132
        %v1135 = vmul.f32 %v1133, 0.044715
        %v1136 = vmul.f32 %v1134, 0.044715
        %v1137 = vadd.f32 %v1115, %v1135
        %v1138 = vadd.f32 %v1128, %v1136
        %v1139 = vmul.f32 %v1137, 0.7978846
        %v1140 = vmul.f32 %v1138, 0.7978846
        %v1141 = vtanh.pop %v1139
        %v1142 = vtanh.pop %v1140
        %v1143 = vadd.f32 %v1141, 1.0
        %v1144 = vadd.f32 %v1142, 1.0
        %v1145 = vmul.f32 %v1143, 0.5
        %v1146 = vmul.f32 %v1144, 0.5
        %v1147 = vmul.f32 %v1115, %v1145
        %v1148 = vmul.f32 %v1128, %v1146
        %v1149 = vpack.c.bf16 %v1147, %v1147
        %v1150 = vpack.c.bf16 %v1148, %v1148
        %v1151 = vld [vmem:[#allocation7] sm:$0xf]
        %v1152 = vld [vmem:[#allocation7 + $0x4] sm:$0xf]
        %v1153 = vld [vmem:[#allocation7 + $0x8] sm:$0xf]
        %v1154 = vld [vmem:[#allocation7 + $0xc] sm:$0xf]
        %v1155 = vld [vmem:[#allocation7 + $0x10] sm:$0xf]
        %v1156 = vld [vmem:[#allocation7 + $0x14] sm:$0xf]
        %v1157 = vld [vmem:[#allocation7 + $0x18] sm:$0xf]
        %v1158 = vld [vmem:[#allocation7 + $0x1c] sm:$0xf]
        %v1159 = vld [vmem:[#allocation7 + $0x20] sm:$0xf]
        %v1160 = vld [vmem:[#allocation7 + $0x24] sm:$0xf]
        %v1161 = vld [vmem:[#allocation7 + $0x28] sm:$0xf]
        %v1162 = vld [vmem:[#allocation7 + $0x2c] sm:$0xf]
        %v1163 = vld [vmem:[#allocation7 + $0x30] sm:$0xf]
        %v1164 = vld [vmem:[#allocation7 + $0x34] sm:$0xf]
        %v1165 = vld [vmem:[#allocation7 + $0x38] sm:$0xf]
        %v1166 = vld [vmem:[#allocation7 + $0x3c] sm:$0xf]
        %v1167 = vld [vmem:[#allocation7 + $0x40] sm:$0xf]
        %v1168 = vld [vmem:[#allocation7 + $0x44] sm:$0xf]
        %v1169 = vld [vmem:[#allocation7 + $0x48] sm:$0xf]
        %v1170 = vld [vmem:[#allocation7 + $0x4c] sm:$0xf]
        %v1171 = vld [vmem:[#allocation7 + $0x50] sm:$0xf]
        %v1172 = vld [vmem:[#allocation7 + $0x54] sm:$0xf]
        %v1173 = vld [vmem:[#allocation7 + $0x58] sm:$0xf]
        %v1174 = vld [vmem:[#allocation7 + $0x5c] sm:$0xf]
        %v1175 = vld [vmem:[#allocation7 + $0x60] sm:$0xf]
        %v1176 = vld [vmem:[#allocation7 + $0x64] sm:$0xf]
        %v1177 = vld [vmem:[#allocation7 + $0x68] sm:$0xf]
        %v1178 = vld [vmem:[#allocation7 + $0x6c] sm:$0xf]
        %v1179 = vld [vmem:[#allocation7 + $0x70] sm:$0xf]
        %v1180 = vld [vmem:[#allocation7 + $0x74] sm:$0xf]
        %v1181 = vld [vmem:[#allocation7 + $0x78] sm:$0xf]
        %v1182 = vld [vmem:[#allocation7 + $0x7c] sm:$0xf]
        %v1183 = vld [vmem:[%s11] sm:$0x1]
        %v1185 = vperm.slane %v1183, 0
        %v1219 = vunpack.c.l.b16 %v1151
        %v1220 = vunpack.c.l.b16 %v1152
        %v1221 = vunpack.c.l.b16 %v1153
        %v1222 = vunpack.c.l.b16 %v1154
        %v1223 = vunpack.c.l.b16 %v1155
        %v1224 = vunpack.c.l.b16 %v1156
        %v1225 = vunpack.c.l.b16 %v1157
        %v1226 = vunpack.c.l.b16 %v1158
        %v1227 = vunpack.c.l.b16 %v1159
        %v1228 = vunpack.c.l.b16 %v1160
        %v1229 = vunpack.c.l.b16 %v1161
        %v1230 = vunpack.c.l.b16 %v1162
        %v1231 = vunpack.c.l.b16 %v1163
        %v1232 = vunpack.c.l.b16 %v1164
        %v1233 = vunpack.c.l.b16 %v1165
        %v1234 = vunpack.c.l.b16 %v1166
        %v1235 = vunpack.c.l.b16 %v1167
        %v1236 = vunpack.c.l.b16 %v1168
        %v1237 = vunpack.c.l.b16 %v1169
        %v1238 = vunpack.c.l.b16 %v1170
        %v1239 = vunpack.c.l.b16 %v1171
        %v1240 = vunpack.c.l.b16 %v1172
        %v1241 = vunpack.c.l.b16 %v1173
        %v1242 = vunpack.c.l.b16 %v1174
        %v1243 = vunpack.c.l.b16 %v1175
        %v1244 = vunpack.c.l.b16 %v1176
        %v1245 = vunpack.c.l.b16 %v1177
        %v1246 = vunpack.c.l.b16 %v1178
        %v1247 = vunpack.c.l.b16 %v1179
        %v1248 = vunpack.c.l.b16 %v1180
        %v1249 = vunpack.c.l.b16 %v1181
        %v1250 = vunpack.c.l.b16 %v1182
        %v1251 = vpack.c.b16 %v1220, %v1219
        %v1252 = vpack.c.b16 %v1222, %v1221
        %v1253 = vpack.c.b16 %v1224, %v1223
        %v1254 = vpack.c.b16 %v1226, %v1225
        %v1255 = vpack.c.b16 %v1228, %v1227
        %v1256 = vpack.c.b16 %v1230, %v1229
        %v1257 = vpack.c.b16 %v1232, %v1231
        %v1258 = vpack.c.b16 %v1234, %v1233
        %v1259 = vpack.c.b16 %v1236, %v1235
        %v1260 = vpack.c.b16 %v1238, %v1237
        %v1261 = vpack.c.b16 %v1240, %v1239
        %v1262 = vpack.c.b16 %v1242, %v1241
        %v1263 = vpack.c.b16 %v1244, %v1243
        %v1264 = vpack.c.b16 %v1246, %v1245
        %v1265 = vpack.c.b16 %v1248, %v1247
        %v1266 = vpack.c.b16 %v1250, %v1249
        %1283 = vmatpush.bf16.msra.mxu0 %v1258
        %1284 = vmatpush.bf16.msra.mxu0 %v1257
        %1285 = vmatpush.bf16.msra.mxu0 %v1256
        %1286 = vmatpush.bf16.msra.mxu0 %v1255
        %1287 = vmatpush.bf16.msra.mxu0 %v1254
        %1288 = vmatpush.bf16.msra.mxu0 %v1253
        %1289 = vmatpush.bf16.msra.mxu0 %v1252
        %1290 = vmatpush.bf16.msra.mxu0 %v1251
        %1291 = vmatmul.bf16.gmra.mxu0 %v1149
        %v1292 = vpop.f32.mrf.mxu0
        %v1293 = vadd.f32 %v1185, %v1292
        %v1294 = vpop.f32.mrf.mxu0
        %1295 = vdwg.mxu0
        %1296 = vmatpush.bf16.msra.mxu0 %v1266
        %1297 = vmatpush.bf16.msra.mxu0 %v1265
        %1298 = vmatpush.bf16.msra.mxu0 %v1264
        %1299 = vmatpush.bf16.msra.mxu0 %v1263
        %1300 = vmatpush.bf16.msra.mxu0 %v1262
        %1301 = vmatpush.bf16.msra.mxu0 %v1261
        %1302 = vmatpush.bf16.msra.mxu0 %v1260
        %1303 = vmatpush.bf16.msra.mxu0 %v1259
        %1304 = vmatmul.bf16.gmra.mxu0 %v1150
        %v1305 = vpop.f32.mrf.mxu0
        %v1306 = vadd.f32 %v1293, %v1305
        %v1307 = vpop.f32.mrf.mxu0
        %1308 = vdwg.mxu0
        %v1309 = vadd.f32 %v1306, %v1001
        %v1310 = vld [vmem:[%s12] sm:$0x1]
        %v1311 = vld [vmem:[%s13] sm:$0x1]
        %1312 = vadd.xlane.f32.xlu0 %v1309
        %v1313 = vpop.xlane.xlu0 %1312
        %v1314 = vmul.f32 %v1313, %v975
        %v1315 = vsub.f32 %v1309, %v1314
        %v1316 = vmul.f32 %v1315, %v1315
        %1317 = vadd.xlane.f32.xlu0 %v1316
        %v1318 = vpop.xlane.xlu0 %1317
        %v1319 = vmul.f32 %v1318, %v975
        %v1320 = vadd.f32 %v1319, 1e-07
        %v1321 = vrsqrt.pop %v1320
        %v1322 = vmul.f32 %v1321, %v1320
        %v1323 = vmul.f32 %v1322, %v1321
        %v1324 = vmul.f32 0.5, %v1323
        %v1325 = vsub.f32 1.5, %v1324
        %v1326 = vmul.f32 %v1321, %v1325
        %vm1327 = vweird.f32 %v1320
        %vm1328 = vweird.f32 %v1321
        %vm1329 = vmor %vm1327, %vm1328
        %v1330 = vsel %vm1329, %v1321, %v1326
        %v1331 = vmul.f32 %v1315, %v1330
        %v1333 = vperm.slane %v1310, 0
        %v1335 = vmul.f32 %v1331, %v1333
        %v1337 = vperm.slane %v1311, 0
        %v1339 = vadd.f32 %v1335, %v1337
        %1340 = vst [vmem:[%s543] sm:$0xff] %v1339
        %p1341 = scmp.lt.s32.totalorder %s28, 1
        %s1342 = scalar_select %p1341, %s28, 1
        %s1343 = smul.addr %s1342, 8
        %s1344 = scalar_lea.vmem %s14, %s1343
        // Predicated region
        $region93: #{nlp_model_forward.5} parent=75 // pred_check
          %p1345 = pneg %p350
        $region94: #{nlp_model_forward.5} parent=75 // pred_check_branch
          %1347 = sbr.rel (%p1345) target = $region96
        $region95: #{nlp_model_forward.5} parent=75 // pred_region
          _
        $region96: #{nlp_model_forward.5} parent=75 // pred_fallthru
          _
      $region76: #{nlp_model_forward.5} parent=5 // pred_fallthru
        _
      %p1348 = scmp.le.s32.totalorder 2, %s23
      // Predicated region
      $region97: #{nlp_model_forward.5} parent=5 // pred_check
        %p1349 = pneg %p1348
      $region98: #{nlp_model_forward.5} parent=5 // pred_check_branch
        %1351 = sbr.rel (%p1349) target = $region100
      $region99: #{nlp_model_forward.5} parent=5 // pred_region
        %s1352 = ssub.s32 %s23, 2
        // Predicated region
        $region101: #{nlp_model_forward.5} parent=99 // pred_check
          %p1353 = pneg %p356
        $region102: #{nlp_model_forward.5} parent=99 // pred_check_branch
          %1355 = sbr.rel (%p1353) target = $region104
        $region103: #{nlp_model_forward.5} parent=99 // pred_region
          %p1356 = scmp.lt.s32.totalorder %s29, 1
          %s1357 = scalar_select %p1356, %s29, 1
          %s1358 = smul.addr %s1357, 8
          %s1359 = scalar_lea.vmem %s14, %s1358
        $region104: #{nlp_model_forward.5} parent=99 // pred_fallthru
          _
      $region100: #{nlp_model_forward.5} parent=5 // pred_fallthru
        _
    $region6: #{nlp_model_forward.5} parent=1 // loop_footer
      %s27 = sadd.s32 1, %s23
    $region7: #{nlp_model_forward.5} parent=1 // loop_footer_branch
      %22 = sbr.rel target = $region3
    $region8: #{nlp_model_forward.5} parent=1 // loop_exit
      _
    %1360 = vsyncpa [#allocation3], 1
    %s1361 = scalar_lea.sflag [#allocation3], 1
    %1362 = vsyncpa %s1361, 1
    %1363 = vsyncpa [#allocation5], 1
    %1364 = vsyncpa [#allocation8], 1

</llo_original>
